<compile_context>
chip_gen: v5e
topology: v5e:2x2
jax: 0.10.0
libtpu: 0.0.40
codegen_flags: <defaults>
</compile_context>

<pallas_src>
import functools
import math

import jax
import jax.numpy as jnp
import numpy as np
from jax.experimental import pallas as pl
from jax.experimental.pallas import tpu as pltpu

_GELU_C = math.sqrt(2.0 / math.pi)


# ----------------------------- Pallas kernels --------------------------------

def _window_attention_kernel(x_ref, wq_ref, wk_ref, wv_ref, bq_ref, bv_ref,
                             scale_ref, rpb_ref, mask_ref, wp_ref, bp_ref,
                             o_ref, *, num_heads):
    """One grid step = one (batch image, window-tile) pair.

    x_ref   : (1, wt, N, C)   window tokens
    wq/wk/wv: (C, C)          qkv weight split (x @ W form), k has no bias
    bq/bv   : (1, C)
    scale   : (num_heads,N,N) exp(clamped logit_scale), pre-broadcast per head
    rpb     : (num_heads,N,N) 16*sigmoid(cpb) relative position bias
    mask    : (wt, N, N)      shifted-window mask (0 / -100); zeros if no shift
    wp/bp   : (C, C) / (1, C) output projection
    """
    _, wt, N, C = x_ref.shape
    hd = C // num_heads
    rows = wt * N

    x2 = x_ref[0].reshape(rows, C)
    q2 = jnp.dot(x2, wq_ref[...], preferred_element_type=jnp.float32) + bq_ref[...]
    k2 = jnp.dot(x2, wk_ref[...], preferred_element_type=jnp.float32)
    v2 = jnp.dot(x2, wv_ref[...], preferred_element_type=jnp.float32) + bv_ref[...]

    mask = mask_ref[...]
    heads = []
    for h in range(num_heads):          # static unroll, num_heads is small
        sl = slice(h * hd, (h + 1) * hd)
        qh = q2[:, sl].reshape(wt, N, hd)
        kh = k2[:, sl].reshape(wt, N, hd)
        vh = v2[:, sl].reshape(wt, N, hd)
        # cosine attention: L2-normalise along the head dim (F.normalize equiv.)
        qn = qh * jax.lax.rsqrt(jnp.sum(qh * qh, axis=-1, keepdims=True) + 1e-12)
        kn = kh * jax.lax.rsqrt(jnp.sum(kh * kh, axis=-1, keepdims=True) + 1e-12)
        s = jnp.einsum("wnd,wmd->wnm", qn, kn, preferred_element_type=jnp.float32)
        s = s * scale_ref[h] + rpb_ref[h] + mask
        s = s - jnp.max(s, axis=-1, keepdims=True)
        p = jnp.exp(s)
        p = p / jnp.sum(p, axis=-1, keepdims=True)
        oh = jnp.einsum("wnm,wmd->wnd", p, vh, preferred_element_type=jnp.float32)
        heads.append(oh.reshape(rows, hd))

    o = jnp.concatenate(heads, axis=-1)
    y = jnp.dot(o, wp_ref[...], preferred_element_type=jnp.float32) + bp_ref[...]
    o_ref[0] = y.reshape(wt, N, C).astype(o_ref.dtype)


def _token_epilogue_kernel(short_ref, attn_ref, g1_ref, b1_ref, w1_ref, c1_ref,
                           w2_ref, c2_ref, g2_ref, b2_ref, o_ref, *, eps):
    """x1 = shortcut + LN1(attn);  out = x1 + LN2(GELU(x1@W1+c1)@W2+c2)."""
    a = attn_ref[...].astype(jnp.float32)
    mu = jnp.mean(a, axis=-1, keepdims=True)
    var = jnp.maximum(jnp.mean(a * a, axis=-1, keepdims=True) - mu * mu, 0.0)
    x1 = (short_ref[...].astype(jnp.float32)
          + (a - mu) * jax.lax.rsqrt(var + eps) * g1_ref[...] + b1_ref[...])

    h = jnp.dot(x1, w1_ref[...], preferred_element_type=jnp.float32) + c1_ref[...]
    # TODO(synk): nn.GELU default is exact erf; tanh approximation used (Mosaic-safe).
    h = 0.5 * h * (1.0 + jnp.tanh(_GELU_C * (h + 0.044715 * h * h * h)))
    m = jnp.dot(h, w2_ref[...], preferred_element_type=jnp.float32) + c2_ref[...]

    mu2 = jnp.mean(m, axis=-1, keepdims=True)
    var2 = jnp.maximum(jnp.mean(m * m, axis=-1, keepdims=True) - mu2 * mu2, 0.0)
    y = x1 + (m - mu2) * jax.lax.rsqrt(var2 + eps) * g2_ref[...] + b2_ref[...]
    o_ref[...] = y.astype(o_ref.dtype)


# ----------------------------- plain-JAX helpers ------------------------------

def _window_partition(x, ws):
    B, Hp, Wp, C = x.shape
    x = x.reshape(B, Hp // ws, ws, Wp // ws, ws, C).transpose(0, 1, 3, 2, 4, 5)
    return x.reshape(B, (Hp // ws) * (Wp // ws), ws * ws, C)


def _window_reverse(win, ws, Hp, Wp):
    B, _, _, C = win.shape
    x = win.reshape(B, Hp // ws, Wp // ws, ws, ws, C).transpose(0, 1, 3, 2, 4, 5)
    return x.reshape(B, Hp, Wp, C)


def _relative_position_bias(params, window_size, pretrained_window_size, num_heads):
    ws = window_size
    N = ws * ws
    coords = np.arange(-(ws - 1), ws, dtype=np.float32)
    table = np.stack(np.meshgrid(coords, coords, indexing="ij"), axis=-1)
    table = table / float(pretrained_window_size - 1)
    table = table * 8.0
    table = np.sign(table) * np.log2(np.abs(table) + 1.0) / np.log2(8.0)
    table = jnp.asarray(table.reshape(-1, 2).astype(np.float32))

    c = np.stack(np.meshgrid(np.arange(ws), np.arange(ws), indexing="ij"))
    cf = c.reshape(2, -1)
    rel = (cf[:, :, None] - cf[:, None, :]).transpose(1, 2, 0)
    rel[:, :, 0] += ws - 1
    rel[:, :, 1] += ws - 1
    rel[:, :, 0] *= 2 * ws - 1
    idx = jnp.asarray(rel.sum(-1).reshape(-1), dtype=jnp.int32)

    hid = jnp.maximum(table @ params["cpb_w1"].T + params["cpb_b1"], 0.0)
    tbl = hid @ params["cpb_w2"].T                            # ((2ws-1)^2, nh)
    rpb = tbl[idx].reshape(N, N, num_heads).transpose(2, 0, 1)
    return 16.0 * jax.nn.sigmoid(rpb)


def _build_shift_mask(Hp, Wp, ws, shift):
    img = np.zeros((Hp, Wp), np.float32)
    cnt = 0
    for hs in (slice(0, -ws), slice(-ws, -shift), slice(-shift, None)):
        for wsl in (slice(0, -ws), slice(-ws, -shift), slice(-shift, None)):
            img[hs, wsl] = cnt
            cnt += 1
    m = img.reshape(Hp // ws, ws, Wp // ws, ws).transpose(0, 2, 1, 3).reshape(-1, ws * ws)
    diff = m[:, None, :] - m[:, :, None]
    return jnp.asarray(np.where(diff != 0, -100.0, 0.0).astype(np.float32))


# ----------------------------- Pallas wrapper ---------------------------------

def swin_block_forward(x, H, W, mask_matrix, params, *, num_heads, window_size,
                       shift_size, pretrained_window_size, eps=1e-5):
    """Pallas-backed SwinTransformerBlock.forward (inference, dropout/DropPath=0)."""
    B, L, C = x.shape
    assert L == H * W, "input feature has wrong size"
    assert C % num_heads == 0
    ws = window_size
    shortcut = x

    # ---- pad, cyclic shift, window partition (plain JAX, matches torch ops) ----
    xs = x.reshape(B, H, W, C)
    pad_b, pad_r = (-H) % ws, (-W) % ws
    if pad_b or pad_r:
        xs = jnp.pad(xs, ((0, 0), (0, pad_b), (0, pad_r), (0, 0)))
    Hp, Wp = H + pad_b, W + pad_r

    if shift_size > 0:
        xs = jnp.roll(xs, (-shift_size, -shift_size), axis=(1, 2))
        attn_mask = mask_matrix.astype(jnp.float32)
    else:
        attn_mask = jnp.zeros(((Hp // ws) * (Wp // ws), ws * ws, ws * ws), jnp.float32)

    x_win = _window_partition(xs, ws)                  # (B, nW, N, C)
    nW, N = x_win.shape[1], x_win.shape[2]

    # ---- attention parameters ----
    wqkv = params["qkv_weight"]                        # (3C, C) PyTorch layout
    wq, wk, wv = wqkv[:C].T, wqkv[C:2 * C].T, wqkv[2 * C:].T
    bq = params["q_bias"].reshape(1, C)
    bv = params["v_bias"].reshape(1, C)
    wp = params["proj_weight"].T                       # (C, C)
    bp = params["proj_bias"].reshape(1, C)

    logit_scale = params["logit_scale"].reshape(-1).astype(jnp.float32)
    scale = jnp.exp(jnp.minimum(logit_scale, math.log(1.0 / 0.01)))
    scale_b = jnp.broadcast_to(scale.reshape(num_heads, 1, 1), (num_heads, N, N))
    rpb = _relative_position_bias(params, ws, pretrained_window_size, num_heads)

    # windows per grid step: largest divisor of nW keeping ~<=1024 token rows/step
    wt = 1
    for d in range(nW, 0, -1):
        if nW % d == 0 and d * N <= 1024:
            wt = d
            break
    n_wtiles = nW // wt
    hd = C // num_heads

    attn_cost = pl.CostEstimate(
        flops=int(B * nW * N * (8 * C * C + 4 * num_heads * N * hd)),
        transcendentals=int(B * nW * num_heads * N * N),
        bytes_accessed=int(4 * (2 * B * nW * N * C + 4 * C * C
                                + (num_heads + nW) * N * N)),
    )
    attn_win = pl.pallas_call(
        functools.partial(_window_attention_kernel, num_heads=num_heads),
        out_shape=jax.ShapeDtypeStruct((B, nW, N, C), x.dtype),
        grid=(B, n_wtiles),
        in_specs=[
            pl.BlockSpec((1, wt, N, C), lambda b, t: (b, t, 0, 0)),
            pl.BlockSpec((C, C), lambda b, t: (0, 0)),
            pl.BlockSpec((C, C), lambda b, t: (0, 0)),
            pl.BlockSpec((C, C), lambda b, t: (0, 0)),
            pl.BlockSpec((1, C), lambda b, t: (0, 0)),
            pl.BlockSpec((1, C), lambda b, t: (0, 0)),
            pl.BlockSpec((num_heads, N, N), lambda b, t: (0, 0, 0)),
            pl.BlockSpec((num_heads, N, N), lambda b, t: (0, 0, 0)),
            pl.BlockSpec((wt, N, N), lambda b, t: (t, 0, 0)),
            pl.BlockSpec((C, C), lambda b, t: (0, 0)),
            pl.BlockSpec((1, C), lambda b, t: (0, 0)),
        ],
        out_specs=pl.BlockSpec((1, wt, N, C), lambda b, t: (b, t, 0, 0)),
        compiler_params=pltpu.CompilerParams(
            dimension_semantics=("parallel", "parallel")),
        cost_estimate=attn_cost,
    )(x_win, wq, wk, wv, bq, bv, scale_b, rpb, attn_mask, wp, bp)

    # ---- window reverse, un-shift, un-pad (plain JAX) ----
    shifted = _window_reverse(attn_win, ws, Hp, Wp)
    if shift_size > 0:
        shifted = jnp.roll(shifted, (shift_size, shift_size), axis=(1, 2))
    attn_tok = shifted[:, :H, :W, :].reshape(B * L, C)

    # ---- kernel 2: residual + LN1 + MLP(GELU) + LN2 + residual ----
    hidden = params["mlp_w1"].shape[0]
    g1 = params["norm1_g"].reshape(1, C)
    b1 = params["norm1_b"].reshape(1, C)
    g2 = params["norm2_g"].reshape(1, C)
    b2 = params["norm2_b"].reshape(1, C)
    w1t = params["mlp_w1"].T                           # (C, hidden)
    c1 = params["mlp_b1"].reshape(1, hidden)
    w2t = params["mlp_w2"].T                           # (hidden, C)
    c2 = params["mlp_b2"].reshape(1, C)

    M = B * L
    short2 = shortcut.reshape(M, C)
    m8 = ((M + 7) // 8) * 8
    tm = min(512, m8)                                  # big row tile: amortise grid-step cost
    Mp = ((m8 + tm - 1) // tm) * tm
    if Mp != M:
        short2 = jnp.pad(short2, ((0, Mp - M), (0, 0)))
        attn_tok = jnp.pad(attn_tok, ((0, Mp - M), (0, 0)))

    tok_cost = pl.CostEstimate(
        flops=int(4 * Mp * C * hidden),
        transcendentals=int(Mp * hidden),
        bytes_accessed=int(4 * (3 * Mp * C + 2 * C * hidden)),
    )
    out = pl.pallas_call(
        functools.partial(_token_epilogue_kernel, eps=eps),
        out_shape=jax.ShapeDtypeStruct((Mp, C), x.dtype),
        grid=(Mp // tm,),
        in_specs=[
            pl.BlockSpec((tm, C), lambda i: (i, 0)),
            pl.BlockSpec((tm, C), lambda i: (i, 0)),
            pl.BlockSpec((1, C), lambda i: (0, 0)),
            pl.BlockSpec((1, C), lambda i: (0, 0)),
            pl.BlockSpec((C, hidden), lambda i: (0, 0)),
            pl.BlockSpec((1, hidden), lambda i: (0, 0)),
            pl.BlockSpec((hidden, C), lambda i: (0, 0)),
            pl.BlockSpec((1, C), lambda i: (0, 0)),
            pl.BlockSpec((1, C), lambda i: (0, 0)),
            pl.BlockSpec((1, C), lambda i: (0, 0)),
        ],
        out_specs=pl.BlockSpec((tm, C), lambda i: (i, 0)),
        compiler_params=pltpu.CompilerParams(dimension_semantics=("parallel",)),
        cost_estimate=tok_cost,
    )(short2, attn_tok, g1, b1, w1t, c1, w2t, c2, g2, b2)

    return out[:M].reshape(B, L, C)


# ----------------------------- pure-JAX reference ------------------------------

def _layer_norm(a, g, b, eps):
    mu = a.mean(-1, keepdims=True)
    var = ((a - mu) ** 2).mean(-1, keepdims=True)
    return (a - mu) / jnp.sqrt(var + eps) * g + b


def swin_block_reference(x, H, W, mask_matrix, params, *, num_heads, window_size,
                         shift_size, pretrained_window_size, eps=1e-5):
    B, L, C = x.shape
    ws, nh = window_size, num_heads
    hd = C // nh
    shortcut = x
    xs = x.reshape(B, H, W, C)
    pad_b, pad_r = (-H) % ws, (-W) % ws
    if pad_b or pad_r:
        xs = jnp.pad(xs, ((0, 0), (0, pad_b), (0, pad_r), (0, 0)))
    Hp, Wp = H + pad_b, W + pad_r
    if shift_size > 0:
        xs = jnp.roll(xs, (-shift_size, -shift_size), axis=(1, 2))
    xw = _window_partition(xs, ws)
    nW, N = xw.shape[1], xw.shape[2]
    xw = xw.reshape(B * nW, N, C)

    qkv_bias = jnp.concatenate(
        [params["q_bias"], jnp.zeros_like(params["v_bias"]), params["v_bias"]])
    qkv = xw @ params["qkv_weight"].T + qkv_bias
    qkv = qkv.reshape(B * nW, N, 3, nh, hd).transpose(2, 0, 3, 1, 4)
    q, k, v = qkv[0], qkv[1], qkv[2]
    qn = q / jnp.maximum(jnp.linalg.norm(q, axis=-1, keepdims=True), 1e-12)
    kn = k / jnp.maximum(jnp.linalg.norm(k, axis=-1, keepdims=True), 1e-12)
    attn = qn @ jnp.swapaxes(kn, -2, -1)
    scale = jnp.exp(jnp.minimum(params["logit_scale"].astype(jnp.float32).reshape(nh),
                                math.log(1.0 / 0.01)))
    attn = attn * scale.reshape(1, nh, 1, 1)
    rpb = _relative_position_bias(params, ws, pretrained_window_size, nh)
    attn = attn + rpb[None]
    if shift_size > 0:
        attn = attn.reshape(B, nW, nh, N, N) + mask_matrix[None, :, None]
        attn = attn.reshape(B * nW, nh, N, N)
    attn = jax.nn.softmax(attn, axis=-1)
    o = jnp.swapaxes(attn @ v, 1, 2).reshape(B * nW, N, C)
    o = o @ params["proj_weight"].T + params["proj_bias"]
    o = o.reshape(B, nW, N, C)
    shifted = _window_reverse(o, ws, Hp, Wp)
    if shift_size > 0:
        shifted = jnp.roll(shifted, (shift_size, shift_size), axis=(1, 2))
    attn_tok = shifted[:, :H, :W, :].reshape(B, L, C)

    x1 = shortcut + _layer_norm(attn_tok, params["norm1_g"], params["norm1_b"], eps)
    h = x1 @ params["mlp_w1"].T + params["mlp_b1"]
    h = 0.5 * h * (1.0 + jnp.tanh(_GELU_C * (h + 0.044715 * h ** 3)))
    m = h @ params["mlp_w2"].T + params["mlp_b2"]
    return x1 + _layer_norm(m, params["norm2_g"], params["norm2_b"], eps)


# ----------------------------------- demo -------------------------------------

if __name__ == "__main__":
    key = jax.random.PRNGKey(0)
    B, H, W = 2, 6, 7                # non-divisible spatial size exercises padding
    C, num_heads = 32, 4
    window_size = 4
    pretrained_window_size = 4
    hidden = int(C * 4.0)
    L = H * W

    ks = jax.random.split(key, 18)
    x = jax.random.normal(ks[0], (B, L, C), jnp.float32)
    params = {
        "qkv_weight": 0.1 * jax.random.normal(ks[1], (3 * C, C), jnp.float32),
        "q_bias": 0.05 * jax.random.normal(ks[2], (C,), jnp.float32),
        "v_bias": 0.05 * jax.random.normal(ks[3], (C,), jnp.float32),
        "proj_weight": 0.1 * jax.random.normal(ks[4], (C, C), jnp.float32),
        "proj_bias": 0.05 * jax.random.normal(ks[5], (C,), jnp.float32),
        "logit_scale": jnp.log(10.0 * jnp.ones((num_heads,), jnp.float32)),
        "cpb_w1": 0.1 * jax.random.normal(ks[6], (512, 2), jnp.float32),
        "cpb_b1": 0.05 * jax.random.normal(ks[7], (512,), jnp.float32),
        "cpb_w2": 0.1 * jax.random.normal(ks[8], (num_heads, 512), jnp.float32),
        "norm1_g": 1.0 + 0.1 * jax.random.normal(ks[9], (C,), jnp.float32),
        "norm1_b": 0.05 * jax.random.normal(ks[10], (C,), jnp.float32),
        "norm2_g": 1.0 + 0.1 * jax.random.normal(ks[11], (C,), jnp.float32),
        "norm2_b": 0.05 * jax.random.normal(ks[12], (C,), jnp.float32),
        "mlp_w1": 0.1 * jax.random.normal(ks[13], (hidden, C), jnp.float32),
        "mlp_b1": 0.05 * jax.random.normal(ks[14], (hidden,), jnp.float32),
        "mlp_w2": 0.1 * jax.random.normal(ks[15], (C, hidden), jnp.float32),
        "mlp_b2": 0.05 * jax.random.normal(ks[16], (C,), jnp.float32),
    }

    Hp, Wp = H + (-H) % window_size, W + (-W) % window_size
    shift = window_size // 2
    mask_matrix = _build_shift_mask(Hp, Wp, window_size, shift)

    common = dict(num_heads=num_heads, window_size=window_size,
                  pretrained_window_size=pretrained_window_size)

    # --- shifted-window (SW-MSA) path ---
    out_sw = jax.block_until_ready(
        swin_block_forward(x, H, W, mask_matrix, params, shift_size=shift, **common))
    ref_sw = swin_block_reference(x, H, W, mask_matrix, params, shift_size=shift, **common)
    assert out_sw.shape == (B, L, C)
    err_sw = float(jnp.max(jnp.abs(out_sw - ref_sw)))
    assert jnp.allclose(out_sw, ref_sw, atol=2e-3, rtol=2e-3), f"SW-MSA mismatch {err_sw}"

    # --- non-shifted (W-MSA) path ---
    out_w = jax.block_until_ready(
        swin_block_forward(x, H, W, None, params, shift_size=0, **common))
    ref_w = swin_block_reference(x, H, W, None, params, shift_size=0, **common)
    err_w = float(jnp.max(jnp.abs(out_w - ref_w)))
    assert jnp.allclose(out_w, ref_w, atol=2e-3, rtol=2e-3), f"W-MSA mismatch {err_w}"

    print("KERNEL_OK")
</pallas_src>

<mosaic_0001>
module attributes {stable_mosaic.version = 11 : i64} {
  func.func @_window_attention_kernel(%arg0: i32, %arg1: i32, %arg2: memref<1x4x16x32xf32, #tpu.memory_space<vmem>>, %arg3: memref<32x32xf32, #tpu.memory_space<vmem>>, %arg4: memref<32x32xf32, #tpu.memory_space<vmem>>, %arg5: memref<32x32xf32, #tpu.memory_space<vmem>>, %arg6: memref<1x32xf32, #tpu.memory_space<vmem>>, %arg7: memref<1x32xf32, #tpu.memory_space<vmem>>, %arg8: memref<4x16x16xf32, #tpu.memory_space<vmem>>, %arg9: memref<4x16x16xf32, #tpu.memory_space<vmem>>, %arg10: memref<4x16x16xf32, #tpu.memory_space<vmem>>, %arg11: memref<32x32xf32, #tpu.memory_space<vmem>>, %arg12: memref<1x32xf32, #tpu.memory_space<vmem>>, %arg13: memref<1x4x16x32xf32, #tpu.memory_space<vmem>>) attributes {dimension_semantics = [#tpu.dimension_semantics<parallel>, #tpu.dimension_semantics<parallel>], iteration_bounds = array<i64: 2, 1>, scalar_prefetch = 0 : i64, scratch_operands = 0 : i64, tpu.core_type = #tpu.core_type<tc>, window_params = [{transform_indices = @transform_0, window_bounds = array<i64: 1, 4, 16, 32>}, {pipeline_mode = #tpu.pipeline_mode<synchronous>, transform_indices = @transform_1, window_bounds = array<i64: 32, 32>}, {pipeline_mode = #tpu.pipeline_mode<synchronous>, transform_indices = @transform_2, window_bounds = array<i64: 32, 32>}, {pipeline_mode = #tpu.pipeline_mode<synchronous>, transform_indices = @transform_3, window_bounds = array<i64: 32, 32>}, {pipeline_mode = #tpu.pipeline_mode<synchronous>, transform_indices = @transform_4, window_bounds = array<i64: 1, 32>}, {pipeline_mode = #tpu.pipeline_mode<synchronous>, transform_indices = @transform_5, window_bounds = array<i64: 1, 32>}, {pipeline_mode = #tpu.pipeline_mode<synchronous>, transform_indices = @transform_6, window_bounds = array<i64: 4, 16, 16>}, {pipeline_mode = #tpu.pipeline_mode<synchronous>, transform_indices = @transform_7, window_bounds = array<i64: 4, 16, 16>}, {transform_indices = @transform_8, window_bounds = array<i64: 4, 16, 16>}, {pipeline_mode = #tpu.pipeline_mode<synchronous>, transform_indices = @transform_9, window_bounds = array<i64: 32, 32>}, {pipeline_mode = #tpu.pipeline_mode<synchronous>, transform_indices = @transform_10, window_bounds = array<i64: 1, 32>}, {transform_indices = @transform_11, window_bounds = array<i64: 1, 4, 16, 32>}]} {
    %c0 = arith.constant 0 : index
    %c0_0 = arith.constant 0 : index
    %c0_1 = arith.constant 0 : index
    %c0_2 = arith.constant 0 : index
    %0 = vector.load %arg2[%c0, %c0_0, %c0_1, %c0_2] : memref<1x4x16x32xf32, #tpu.memory_space<vmem>>, vector<1x4x16x32xf32>
    %1 = vector.shape_cast %0 : vector<1x4x16x32xf32> to vector<4x16x32xf32>
    %2 = vector.shape_cast %1 : vector<4x16x32xf32> to vector<64x32xf32>
    %c0_3 = arith.constant 0 : index
    %c0_4 = arith.constant 0 : index
    %3 = vector.load %arg3[%c0_3, %c0_4] : memref<32x32xf32, #tpu.memory_space<vmem>>, vector<32x32xf32>
    %cst = arith.constant dense<0.000000e+00> : vector<64x32xf32>
    %4 = tpu.matmul %2, %3, %cst {dimension_numbers = #tpu.dot_dimension_numbers<[1], [0], [0], [1], [0, 0, 1, 1], [], []>} : vector<64x32xf32>, vector<32x32xf32>, vector<64x32xf32> -> vector<64x32xf32>
    %c0_5 = arith.constant 0 : index
    %c0_6 = arith.constant 0 : index
    %5 = vector.load %arg6[%c0_5, %c0_6] : memref<1x32xf32, #tpu.memory_space<vmem>>, vector<1x32xf32>
    %6 = vector.broadcast %5 : vector<1x32xf32> to vector<64x32xf32>
    %7 = arith.addf %4, %6 : vector<64x32xf32>
    %c0_7 = arith.constant 0 : index
    %c0_8 = arith.constant 0 : index
    %8 = vector.load %arg4[%c0_7, %c0_8] : memref<32x32xf32, #tpu.memory_space<vmem>>, vector<32x32xf32>
    %cst_9 = arith.constant dense<0.000000e+00> : vector<64x32xf32>
    %9 = tpu.matmul %2, %8, %cst_9 {dimension_numbers = #tpu.dot_dimension_numbers<[1], [0], [0], [1], [0, 0, 1, 1], [], []>} : vector<64x32xf32>, vector<32x32xf32>, vector<64x32xf32> -> vector<64x32xf32>
    %c0_10 = arith.constant 0 : index
    %c0_11 = arith.constant 0 : index
    %10 = vector.load %arg5[%c0_10, %c0_11] : memref<32x32xf32, #tpu.memory_space<vmem>>, vector<32x32xf32>
    %cst_12 = arith.constant dense<0.000000e+00> : vector<64x32xf32>
    %11 = tpu.matmul %2, %10, %cst_12 {dimension_numbers = #tpu.dot_dimension_numbers<[1], [0], [0], [1], [0, 0, 1, 1], [], []>} : vector<64x32xf32>, vector<32x32xf32>, vector<64x32xf32> -> vector<64x32xf32>
    %c0_13 = arith.constant 0 : index
    %c0_14 = arith.constant 0 : index
    %12 = vector.load %arg7[%c0_13, %c0_14] : memref<1x32xf32, #tpu.memory_space<vmem>>, vector<1x32xf32>
    %13 = vector.broadcast %12 : vector<1x32xf32> to vector<64x32xf32>
    %14 = arith.addf %11, %13 : vector<64x32xf32>
    %c0_15 = arith.constant 0 : index
    %c0_16 = arith.constant 0 : index
    %c0_17 = arith.constant 0 : index
    %15 = vector.load %arg10[%c0_15, %c0_16, %c0_17] : memref<4x16x16xf32, #tpu.memory_space<vmem>>, vector<4x16x16xf32>
    %16 = vector.extract_strided_slice %7 {offsets = [0, 0], sizes = [64, 8], strides = [1, 1]} : vector<64x32xf32> to vector<64x8xf32>
    %17 = vector.shape_cast %16 : vector<64x8xf32> to vector<4x16x8xf32>
    %18 = vector.extract_strided_slice %9 {offsets = [0, 0], sizes = [64, 8], strides = [1, 1]} : vector<64x32xf32> to vector<64x8xf32>
    %19 = vector.shape_cast %18 : vector<64x8xf32> to vector<4x16x8xf32>
    %20 = vector.extract_strided_slice %14 {offsets = [0, 0], sizes = [64, 8], strides = [1, 1]} : vector<64x32xf32> to vector<64x8xf32>
    %21 = vector.shape_cast %20 : vector<64x8xf32> to vector<4x16x8xf32>
    %22 = arith.mulf %17, %17 : vector<4x16x8xf32>
    %cst_18 = arith.constant dense<0.000000e+00> : vector<4x16xf32>
    %23 = vector.multi_reduction <add>, %22, %cst_18 [2] : vector<4x16x8xf32> to vector<4x16xf32>
    %24 = vector.shape_cast %23 : vector<4x16xf32> to vector<4x16x1xf32>
    %cst_19 = arith.constant 9.99999996E-13 : f32
    %25 = vector.broadcast %cst_19 : f32 to vector<4x16x1xf32>
    %26 = arith.addf %24, %25 : vector<4x16x1xf32>
    %27 = math.rsqrt %26 : vector<4x16x1xf32>
    %28 = vector.broadcast %27 : vector<4x16x1xf32> to vector<4x16x8xf32>
    %29 = arith.mulf %17, %28 : vector<4x16x8xf32>
    %30 = arith.mulf %19, %19 : vector<4x16x8xf32>
    %cst_20 = arith.constant dense<0.000000e+00> : vector<4x16xf32>
    %31 = vector.multi_reduction <add>, %30, %cst_20 [2] : vector<4x16x8xf32> to vector<4x16xf32>
    %32 = vector.shape_cast %31 : vector<4x16xf32> to vector<4x16x1xf32>
    %cst_21 = arith.constant 9.99999996E-13 : f32
    %33 = vector.broadcast %cst_21 : f32 to vector<4x16x1xf32>
    %34 = arith.addf %32, %33 : vector<4x16x1xf32>
    %35 = math.rsqrt %34 : vector<4x16x1xf32>
    %36 = vector.broadcast %35 : vector<4x16x1xf32> to vector<4x16x8xf32>
    %37 = arith.mulf %19, %36 : vector<4x16x8xf32>
    "tpu.trace_start"() <{level = 10 : i32, message = "wnd,wmd->wnm"}> : () -> ()
    %cst_22 = arith.constant dense<0.000000e+00> : vector<4x16x16xf32>
    %38 = tpu.matmul %29, %37, %cst_22 {dimension_numbers = #tpu.dot_dimension_numbers<[2], [2], [1], [1], [0, 0, 0, 1, 1, 1], [0], [0]>} : vector<4x16x8xf32>, vector<4x16x8xf32>, vector<4x16x16xf32> -> vector<4x16x16xf32>
    "tpu.trace_stop"() : () -> ()
    %c0_23 = arith.constant 0 : index
    %c0_24 = arith.constant 0 : index
    %c0_25 = arith.constant 0 : index
    %39 = vector.load %arg8[%c0_23, %c0_24, %c0_25] : memref<4x16x16xf32, #tpu.memory_space<vmem>>, vector<1x16x16xf32>
    %40 = vector.shape_cast %39 : vector<1x16x16xf32> to vector<16x16xf32>
    %41 = vector.shape_cast %40 : vector<16x16xf32> to vector<1x16x16xf32>
    %42 = vector.broadcast %41 : vector<1x16x16xf32> to vector<4x16x16xf32>
    %43 = arith.mulf %38, %42 : vector<4x16x16xf32>
    %c0_26 = arith.constant 0 : index
    %c0_27 = arith.constant 0 : index
    %c0_28 = arith.constant 0 : index
    %44 = vector.load %arg9[%c0_26, %c0_27, %c0_28] : memref<4x16x16xf32, #tpu.memory_space<vmem>>, vector<1x16x16xf32>
    %45 = vector.shape_cast %44 : vector<1x16x16xf32> to vector<16x16xf32>
    %46 = vector.shape_cast %45 : vector<16x16xf32> to vector<1x16x16xf32>
    %47 = vector.broadcast %46 : vector<1x16x16xf32> to vector<4x16x16xf32>
    %48 = arith.addf %43, %47 : vector<4x16x16xf32>
    %49 = arith.addf %48, %15 : vector<4x16x16xf32>
    %cst_29 = arith.constant dense<0xFF800000> : vector<4x16xf32>
    %50 = vector.multi_reduction <maximumf>, %49, %cst_29 [2] : vector<4x16x16xf32> to vector<4x16xf32>
    %51 = vector.shape_cast %50 : vector<4x16xf32> to vector<4x16x1xf32>
    %52 = vector.broadcast %51 : vector<4x16x1xf32> to vector<4x16x16xf32>
    %53 = arith.subf %49, %52 : vector<4x16x16xf32>
    %54 = math.exp %53 : vector<4x16x16xf32>
    %cst_30 = arith.constant dense<0.000000e+00> : vector<4x16xf32>
    %55 = vector.multi_reduction <add>, %54, %cst_30 [2] : vector<4x16x16xf32> to vector<4x16xf32>
    %56 = vector.shape_cast %55 : vector<4x16xf32> to vector<4x16x1xf32>
    %57 = vector.broadcast %56 : vector<4x16x1xf32> to vector<4x16x16xf32>
    %58 = arith.divf %54, %57 : vector<4x16x16xf32>
    "tpu.trace_start"() <{level = 10 : i32, message = "wnm,wmd->wnd"}> : () -> ()
    %cst_31 = arith.constant dense<0.000000e+00> : vector<4x16x8xf32>
    %59 = tpu.matmul %58, %21, %cst_31 {dimension_numbers = #tpu.dot_dimension_numbers<[2], [1], [1], [2], [0, 0, 0, 1, 1, 2], [0], [0]>} : vector<4x16x16xf32>, vector<4x16x8xf32>, vector<4x16x8xf32> -> vector<4x16x8xf32>
    "tpu.trace_stop"() : () -> ()
    %60 = vector.shape_cast %59 : vector<4x16x8xf32> to vector<64x8xf32>
    %61 = vector.extract_strided_slice %7 {offsets = [0, 8], sizes = [64, 8], strides = [1, 1]} : vector<64x32xf32> to vector<64x8xf32>
    %62 = vector.shape_cast %61 : vector<64x8xf32> to vector<4x16x8xf32>
    %63 = vector.extract_strided_slice %9 {offsets = [0, 8], sizes = [64, 8], strides = [1, 1]} : vector<64x32xf32> to vector<64x8xf32>
    %64 = vector.shape_cast %63 : vector<64x8xf32> to vector<4x16x8xf32>
    %65 = vector.extract_strided_slice %14 {offsets = [0, 8], sizes = [64, 8], strides = [1, 1]} : vector<64x32xf32> to vector<64x8xf32>
    %66 = vector.shape_cast %65 : vector<64x8xf32> to vector<4x16x8xf32>
    %67 = arith.mulf %62, %62 : vector<4x16x8xf32>
    %cst_32 = arith.constant dense<0.000000e+00> : vector<4x16xf32>
    %68 = vector.multi_reduction <add>, %67, %cst_32 [2] : vector<4x16x8xf32> to vector<4x16xf32>
    %69 = vector.shape_cast %68 : vector<4x16xf32> to vector<4x16x1xf32>
    %cst_33 = arith.constant 9.99999996E-13 : f32
    %70 = vector.broadcast %cst_33 : f32 to vector<4x16x1xf32>
    %71 = arith.addf %69, %70 : vector<4x16x1xf32>
    %72 = math.rsqrt %71 : vector<4x16x1xf32>
    %73 = vector.broadcast %72 : vector<4x16x1xf32> to vector<4x16x8xf32>
    %74 = arith.mulf %62, %73 : vector<4x16x8xf32>
    %75 = arith.mulf %64, %64 : vector<4x16x8xf32>
    %cst_34 = arith.constant dense<0.000000e+00> : vector<4x16xf32>
    %76 = vector.multi_reduction <add>, %75, %cst_34 [2] : vector<4x16x8xf32> to vector<4x16xf32>
    %77 = vector.shape_cast %76 : vector<4x16xf32> to vector<4x16x1xf32>
    %cst_35 = arith.constant 9.99999996E-13 : f32
    %78 = vector.broadcast %cst_35 : f32 to vector<4x16x1xf32>
    %79 = arith.addf %77, %78 : vector<4x16x1xf32>
    %80 = math.rsqrt %79 : vector<4x16x1xf32>
    %81 = vector.broadcast %80 : vector<4x16x1xf32> to vector<4x16x8xf32>
    %82 = arith.mulf %64, %81 : vector<4x16x8xf32>
    "tpu.trace_start"() <{level = 10 : i32, message = "wnd,wmd->wnm"}> : () -> ()
    %cst_36 = arith.constant dense<0.000000e+00> : vector<4x16x16xf32>
    %83 = tpu.matmul %74, %82, %cst_36 {dimension_numbers = #tpu.dot_dimension_numbers<[2], [2], [1], [1], [0, 0, 0, 1, 1, 1], [0], [0]>} : vector<4x16x8xf32>, vector<4x16x8xf32>, vector<4x16x16xf32> -> vector<4x16x16xf32>
    "tpu.trace_stop"() : () -> ()
    %c1 = arith.constant 1 : index
    %c0_37 = arith.constant 0 : index
    %c0_38 = arith.constant 0 : index
    %84 = vector.load %arg8[%c1, %c0_37, %c0_38] : memref<4x16x16xf32, #tpu.memory_space<vmem>>, vector<1x16x16xf32>
    %85 = vector.shape_cast %84 : vector<1x16x16xf32> to vector<16x16xf32>
    %86 = vector.shape_cast %85 : vector<16x16xf32> to vector<1x16x16xf32>
    %87 = vector.broadcast %86 : vector<1x16x16xf32> to vector<4x16x16xf32>
    %88 = arith.mulf %83, %87 : vector<4x16x16xf32>
    %c1_39 = arith.constant 1 : index
    %c0_40 = arith.constant 0 : index
    %c0_41 = arith.constant 0 : index
    %89 = vector.load %arg9[%c1_39, %c0_40, %c0_41] : memref<4x16x16xf32, #tpu.memory_space<vmem>>, vector<1x16x16xf32>
    %90 = vector.shape_cast %89 : vector<1x16x16xf32> to vector<16x16xf32>
    %91 = vector.shape_cast %90 : vector<16x16xf32> to vector<1x16x16xf32>
    %92 = vector.broadcast %91 : vector<1x16x16xf32> to vector<4x16x16xf32>
    %93 = arith.addf %88, %92 : vector<4x16x16xf32>
    %94 = arith.addf %93, %15 : vector<4x16x16xf32>
    %cst_42 = arith.constant dense<0xFF800000> : vector<4x16xf32>
    %95 = vector.multi_reduction <maximumf>, %94, %cst_42 [2] : vector<4x16x16xf32> to vector<4x16xf32>
    %96 = vector.shape_cast %95 : vector<4x16xf32> to vector<4x16x1xf32>
    %97 = vector.broadcast %96 : vector<4x16x1xf32> to vector<4x16x16xf32>
    %98 = arith.subf %94, %97 : vector<4x16x16xf32>
    %99 = math.exp %98 : vector<4x16x16xf32>
    %cst_43 = arith.constant dense<0.000000e+00> : vector<4x16xf32>
    %100 = vector.multi_reduction <add>, %99, %cst_43 [2] : vector<4x16x16xf32> to vector<4x16xf32>
    %101 = vector.shape_cast %100 : vector<4x16xf32> to vector<4x16x1xf32>
    %102 = vector.broadcast %101 : vector<4x16x1xf32> to vector<4x16x16xf32>
    %103 = arith.divf %99, %102 : vector<4x16x16xf32>
    "tpu.trace_start"() <{level = 10 : i32, message = "wnm,wmd->wnd"}> : () -> ()
    %cst_44 = arith.constant dense<0.000000e+00> : vector<4x16x8xf32>
    %104 = tpu.matmul %103, %66, %cst_44 {dimension_numbers = #tpu.dot_dimension_numbers<[2], [1], [1], [2], [0, 0, 0, 1, 1, 2], [0], [0]>} : vector<4x16x16xf32>, vector<4x16x8xf32>, vector<4x16x8xf32> -> vector<4x16x8xf32>
    "tpu.trace_stop"() : () -> ()
    %105 = vector.shape_cast %104 : vector<4x16x8xf32> to vector<64x8xf32>
    %106 = vector.extract_strided_slice %7 {offsets = [0, 16], sizes = [64, 8], strides = [1, 1]} : vector<64x32xf32> to vector<64x8xf32>
    %107 = vector.shape_cast %106 : vector<64x8xf32> to vector<4x16x8xf32>
    %108 = vector.extract_strided_slice %9 {offsets = [0, 16], sizes = [64, 8], strides = [1, 1]} : vector<64x32xf32> to vector<64x8xf32>
    %109 = vector.shape_cast %108 : vector<64x8xf32> to vector<4x16x8xf32>
    %110 = vector.extract_strided_slice %14 {offsets = [0, 16], sizes = [64, 8], strides = [1, 1]} : vector<64x32xf32> to vector<64x8xf32>
    %111 = vector.shape_cast %110 : vector<64x8xf32> to vector<4x16x8xf32>
    %112 = arith.mulf %107, %107 : vector<4x16x8xf32>
    %cst_45 = arith.constant dense<0.000000e+00> : vector<4x16xf32>
    %113 = vector.multi_reduction <add>, %112, %cst_45 [2] : vector<4x16x8xf32> to vector<4x16xf32>
    %114 = vector.shape_cast %113 : vector<4x16xf32> to vector<4x16x1xf32>
    %cst_46 = arith.constant 9.99999996E-13 : f32
    %115 = vector.broadcast %cst_46 : f32 to vector<4x16x1xf32>
    %116 = arith.addf %114, %115 : vector<4x16x1xf32>
    %117 = math.rsqrt %116 : vector<4x16x1xf32>
    %118 = vector.broadcast %117 : vector<4x16x1xf32> to vector<4x16x8xf32>
    %119 = arith.mulf %107, %118 : vector<4x16x8xf32>
    %120 = arith.mulf %109, %109 : vector<4x16x8xf32>
    %cst_47 = arith.constant dense<0.000000e+00> : vector<4x16xf32>
    %121 = vector.multi_reduction <add>, %120, %cst_47 [2] : vector<4x16x8xf32> to vector<4x16xf32>
    %122 = vector.shape_cast %121 : vector<4x16xf32> to vector<4x16x1xf32>
    %cst_48 = arith.constant 9.99999996E-13 : f32
    %123 = vector.broadcast %cst_48 : f32 to vector<4x16x1xf32>
    %124 = arith.addf %122, %123 : vector<4x16x1xf32>
    %125 = math.rsqrt %124 : vector<4x16x1xf32>
    %126 = vector.broadcast %125 : vector<4x16x1xf32> to vector<4x16x8xf32>
    %127 = arith.mulf %109, %126 : vector<4x16x8xf32>
    "tpu.trace_start"() <{level = 10 : i32, message = "wnd,wmd->wnm"}> : () -> ()
    %cst_49 = arith.constant dense<0.000000e+00> : vector<4x16x16xf32>
    %128 = tpu.matmul %119, %127, %cst_49 {dimension_numbers = #tpu.dot_dimension_numbers<[2], [2], [1], [1], [0, 0, 0, 1, 1, 1], [0], [0]>} : vector<4x16x8xf32>, vector<4x16x8xf32>, vector<4x16x16xf32> -> vector<4x16x16xf32>
    "tpu.trace_stop"() : () -> ()
    %c2 = arith.constant 2 : index
    %c0_50 = arith.constant 0 : index
    %c0_51 = arith.constant 0 : index
    %129 = vector.load %arg8[%c2, %c0_50, %c0_51] : memref<4x16x16xf32, #tpu.memory_space<vmem>>, vector<1x16x16xf32>
    %130 = vector.shape_cast %129 : vector<1x16x16xf32> to vector<16x16xf32>
    %131 = vector.shape_cast %130 : vector<16x16xf32> to vector<1x16x16xf32>
    %132 = vector.broadcast %131 : vector<1x16x16xf32> to vector<4x16x16xf32>
    %133 = arith.mulf %128, %132 : vector<4x16x16xf32>
    %c2_52 = arith.constant 2 : index
    %c0_53 = arith.constant 0 : index
    %c0_54 = arith.constant 0 : index
    %134 = vector.load %arg9[%c2_52, %c0_53, %c0_54] : memref<4x16x16xf32, #tpu.memory_space<vmem>>, vector<1x16x16xf32>
    %135 = vector.shape_cast %134 : vector<1x16x16xf32> to vector<16x16xf32>
    %136 = vector.shape_cast %135 : vector<16x16xf32> to vector<1x16x16xf32>
    %137 = vector.broadcast %136 : vector<1x16x16xf32> to vector<4x16x16xf32>
    %138 = arith.addf %133, %137 : vector<4x16x16xf32>
    %139 = arith.addf %138, %15 : vector<4x16x16xf32>
    %cst_55 = arith.constant dense<0xFF800000> : vector<4x16xf32>
    %140 = vector.multi_reduction <maximumf>, %139, %cst_55 [2] : vector<4x16x16xf32> to vector<4x16xf32>
    %141 = vector.shape_cast %140 : vector<4x16xf32> to vector<4x16x1xf32>
    %142 = vector.broadcast %141 : vector<4x16x1xf32> to vector<4x16x16xf32>
    %143 = arith.subf %139, %142 : vector<4x16x16xf32>
    %144 = math.exp %143 : vector<4x16x16xf32>
    %cst_56 = arith.constant dense<0.000000e+00> : vector<4x16xf32>
    %145 = vector.multi_reduction <add>, %144, %cst_56 [2] : vector<4x16x16xf32> to vector<4x16xf32>
    %146 = vector.shape_cast %145 : vector<4x16xf32> to vector<4x16x1xf32>
    %147 = vector.broadcast %146 : vector<4x16x1xf32> to vector<4x16x16xf32>
    %148 = arith.divf %144, %147 : vector<4x16x16xf32>
    "tpu.trace_start"() <{level = 10 : i32, message = "wnm,wmd->wnd"}> : () -> ()
    %cst_57 = arith.constant dense<0.000000e+00> : vector<4x16x8xf32>
    %149 = tpu.matmul %148, %111, %cst_57 {dimension_numbers = #tpu.dot_dimension_numbers<[2], [1], [1], [2], [0, 0, 0, 1, 1, 2], [0], [0]>} : vector<4x16x16xf32>, vector<4x16x8xf32>, vector<4x16x8xf32> -> vector<4x16x8xf32>
    "tpu.trace_stop"() : () -> ()
    %150 = vector.shape_cast %149 : vector<4x16x8xf32> to vector<64x8xf32>
    %151 = vector.extract_strided_slice %7 {offsets = [0, 24], sizes = [64, 8], strides = [1, 1]} : vector<64x32xf32> to vector<64x8xf32>
    %152 = vector.shape_cast %151 : vector<64x8xf32> to vector<4x16x8xf32>
    %153 = vector.extract_strided_slice %9 {offsets = [0, 24], sizes = [64, 8], strides = [1, 1]} : vector<64x32xf32> to vector<64x8xf32>
    %154 = vector.shape_cast %153 : vector<64x8xf32> to vector<4x16x8xf32>
    %155 = vector.extract_strided_slice %14 {offsets = [0, 24], sizes = [64, 8], strides = [1, 1]} : vector<64x32xf32> to vector<64x8xf32>
    %156 = vector.shape_cast %155 : vector<64x8xf32> to vector<4x16x8xf32>
    %157 = arith.mulf %152, %152 : vector<4x16x8xf32>
    %cst_58 = arith.constant dense<0.000000e+00> : vector<4x16xf32>
    %158 = vector.multi_reduction <add>, %157, %cst_58 [2] : vector<4x16x8xf32> to vector<4x16xf32>
    %159 = vector.shape_cast %158 : vector<4x16xf32> to vector<4x16x1xf32>
    %cst_59 = arith.constant 9.99999996E-13 : f32
    %160 = vector.broadcast %cst_59 : f32 to vector<4x16x1xf32>
    %161 = arith.addf %159, %160 : vector<4x16x1xf32>
    %162 = math.rsqrt %161 : vector<4x16x1xf32>
    %163 = vector.broadcast %162 : vector<4x16x1xf32> to vector<4x16x8xf32>
    %164 = arith.mulf %152, %163 : vector<4x16x8xf32>
    %165 = arith.mulf %154, %154 : vector<4x16x8xf32>
    %cst_60 = arith.constant dense<0.000000e+00> : vector<4x16xf32>
    %166 = vector.multi_reduction <add>, %165, %cst_60 [2] : vector<4x16x8xf32> to vector<4x16xf32>
    %167 = vector.shape_cast %166 : vector<4x16xf32> to vector<4x16x1xf32>
    %cst_61 = arith.constant 9.99999996E-13 : f32
    %168 = vector.broadcast %cst_61 : f32 to vector<4x16x1xf32>
    %169 = arith.addf %167, %168 : vector<4x16x1xf32>
    %170 = math.rsqrt %169 : vector<4x16x1xf32>
    %171 = vector.broadcast %170 : vector<4x16x1xf32> to vector<4x16x8xf32>
    %172 = arith.mulf %154, %171 : vector<4x16x8xf32>
    "tpu.trace_start"() <{level = 10 : i32, message = "wnd,wmd->wnm"}> : () -> ()
    %cst_62 = arith.constant dense<0.000000e+00> : vector<4x16x16xf32>
    %173 = tpu.matmul %164, %172, %cst_62 {dimension_numbers = #tpu.dot_dimension_numbers<[2], [2], [1], [1], [0, 0, 0, 1, 1, 1], [0], [0]>} : vector<4x16x8xf32>, vector<4x16x8xf32>, vector<4x16x16xf32> -> vector<4x16x16xf32>
    "tpu.trace_stop"() : () -> ()
    %c3 = arith.constant 3 : index
    %c0_63 = arith.constant 0 : index
    %c0_64 = arith.constant 0 : index
    %174 = vector.load %arg8[%c3, %c0_63, %c0_64] : memref<4x16x16xf32, #tpu.memory_space<vmem>>, vector<1x16x16xf32>
    %175 = vector.shape_cast %174 : vector<1x16x16xf32> to vector<16x16xf32>
    %176 = vector.shape_cast %175 : vector<16x16xf32> to vector<1x16x16xf32>
    %177 = vector.broadcast %176 : vector<1x16x16xf32> to vector<4x16x16xf32>
    %178 = arith.mulf %173, %177 : vector<4x16x16xf32>
    %c3_65 = arith.constant 3 : index
    %c0_66 = arith.constant 0 : index
    %c0_67 = arith.constant 0 : index
    %179 = vector.load %arg9[%c3_65, %c0_66, %c0_67] : memref<4x16x16xf32, #tpu.memory_space<vmem>>, vector<1x16x16xf32>
    %180 = vector.shape_cast %179 : vector<1x16x16xf32> to vector<16x16xf32>
    %181 = vector.shape_cast %180 : vector<16x16xf32> to vector<1x16x16xf32>
    %182 = vector.broadcast %181 : vector<1x16x16xf32> to vector<4x16x16xf32>
    %183 = arith.addf %178, %182 : vector<4x16x16xf32>
    %184 = arith.addf %183, %15 : vector<4x16x16xf32>
    %cst_68 = arith.constant dense<0xFF800000> : vector<4x16xf32>
    %185 = vector.multi_reduction <maximumf>, %184, %cst_68 [2] : vector<4x16x16xf32> to vector<4x16xf32>
    %186 = vector.shape_cast %185 : vector<4x16xf32> to vector<4x16x1xf32>
    %187 = vector.broadcast %186 : vector<4x16x1xf32> to vector<4x16x16xf32>
    %188 = arith.subf %184, %187 : vector<4x16x16xf32>
    %189 = math.exp %188 : vector<4x16x16xf32>
    %cst_69 = arith.constant dense<0.000000e+00> : vector<4x16xf32>
    %190 = vector.multi_reduction <add>, %189, %cst_69 [2] : vector<4x16x16xf32> to vector<4x16xf32>
    %191 = vector.shape_cast %190 : vector<4x16xf32> to vector<4x16x1xf32>
    %192 = vector.broadcast %191 : vector<4x16x1xf32> to vector<4x16x16xf32>
    %193 = arith.divf %189, %192 : vector<4x16x16xf32>
    "tpu.trace_start"() <{level = 10 : i32, message = "wnm,wmd->wnd"}> : () -> ()
    %cst_70 = arith.constant dense<0.000000e+00> : vector<4x16x8xf32>
    %194 = tpu.matmul %193, %156, %cst_70 {dimension_numbers = #tpu.dot_dimension_numbers<[2], [1], [1], [2], [0, 0, 0, 1, 1, 2], [0], [0]>} : vector<4x16x16xf32>, vector<4x16x8xf32>, vector<4x16x8xf32> -> vector<4x16x8xf32>
    "tpu.trace_stop"() : () -> ()
    %195 = vector.shape_cast %194 : vector<4x16x8xf32> to vector<64x8xf32>
    %196 = tpu.concatenate %60, %105, %150, %195 in 1 : vector<64x8xf32>, vector<64x8xf32>, vector<64x8xf32>, vector<64x8xf32> -> vector<64x32xf32>
    %c0_71 = arith.constant 0 : index
    %c0_72 = arith.constant 0 : index
    %197 = vector.load %arg11[%c0_71, %c0_72] : memref<32x32xf32, #tpu.memory_space<vmem>>, vector<32x32xf32>
    %cst_73 = arith.constant dense<0.000000e+00> : vector<64x32xf32>
    %198 = tpu.matmul %196, %197, %cst_73 {dimension_numbers = #tpu.dot_dimension_numbers<[1], [0], [0], [1], [0, 0, 1, 1], [], []>} : vector<64x32xf32>, vector<32x32xf32>, vector<64x32xf32> -> vector<64x32xf32>
    %c0_74 = arith.constant 0 : index
    %c0_75 = arith.constant 0 : index
    %199 = vector.load %arg12[%c0_74, %c0_75] : memref<1x32xf32, #tpu.memory_space<vmem>>, vector<1x32xf32>
    %200 = vector.broadcast %199 : vector<1x32xf32> to vector<64x32xf32>
    %201 = arith.addf %198, %200 : vector<64x32xf32>
    %202 = vector.shape_cast %201 : vector<64x32xf32> to vector<4x16x32xf32>
    %c0_76 = arith.constant 0 : index
    %c0_77 = arith.constant 0 : index
    %c0_78 = arith.constant 0 : index
    %c0_79 = arith.constant 0 : index
    %203 = vector.load %arg13[%c0_76, %c0_77, %c0_78, %c0_79] : memref<1x4x16x32xf32, #tpu.memory_space<vmem>>, vector<1x4x16x32xf32>
    %204 = vector.shape_cast %203 : vector<1x4x16x32xf32> to vector<4x16x32xf32>
    %205 = vector.shape_cast %202 : vector<4x16x32xf32> to vector<1x4x16x32xf32>
    tpu.vector_store %arg13[%c0_76, %c0_77, %c0_78, %c0_79], %205 {strides = array<i32>} : memref<1x4x16x32xf32, #tpu.memory_space<vmem>>, vector<1x4x16x32xf32>,
    return
  }
  func.func @transform_0(%arg0: i32, %arg1: i32) -> (i32, i32, i32, i32) {
    %c0_i32 = arith.constant 0 : i32
    %c0_i32_0 = arith.constant 0 : i32
    %c0_i32_1 = arith.constant 0 : i32
    return %arg0, %arg1, %c0_i32, %c0_i32_0 : i32, i32, i32, i32
  }
  func.func @transform_1(%arg0: i32, %arg1: i32) -> (i32, i32) {
    %c0_i32 = arith.constant 0 : i32
    %c0_i32_0 = arith.constant 0 : i32
    %c0_i32_1 = arith.constant 0 : i32
    return %c0_i32, %c0_i32_0 : i32, i32
  }
  func.func @transform_2(%arg0: i32, %arg1: i32) -> (i32, i32) {
    %c0_i32 = arith.constant 0 : i32
    %c0_i32_0 = arith.constant 0 : i32
    %c0_i32_1 = arith.constant 0 : i32
    return %c0_i32, %c0_i32_0 : i32, i32
  }
  func.func @transform_3(%arg0: i32, %arg1: i32) -> (i32, i32) {
    %c0_i32 = arith.constant 0 : i32
    %c0_i32_0 = arith.constant 0 : i32
    %c0_i32_1 = arith.constant 0 : i32
    return %c0_i32, %c0_i32_0 : i32, i32
  }
  func.func @transform_4(%arg0: i32, %arg1: i32) -> (i32, i32) {
    %c0_i32 = arith.constant 0 : i32
    %c0_i32_0 = arith.constant 0 : i32
    %c0_i32_1 = arith.constant 0 : i32
    return %c0_i32, %c0_i32_0 : i32, i32
  }
  func.func @transform_5(%arg0: i32, %arg1: i32) -> (i32, i32) {
    %c0_i32 = arith.constant 0 : i32
    %c0_i32_0 = arith.constant 0 : i32
    %c0_i32_1 = arith.constant 0 : i32
    return %c0_i32, %c0_i32_0 : i32, i32
  }
  func.func @transform_6(%arg0: i32, %arg1: i32) -> (i32, i32, i32) {
    %c0_i32 = arith.constant 0 : i32
    %c0_i32_0 = arith.constant 0 : i32
    %c0_i32_1 = arith.constant 0 : i32
    %c0_i32_2 = arith.constant 0 : i32
    return %c0_i32, %c0_i32_0, %c0_i32_1 : i32, i32, i32
  }
  func.func @transform_7(%arg0: i32, %arg1: i32) -> (i32, i32, i32) {
    %c0_i32 = arith.constant 0 : i32
    %c0_i32_0 = arith.constant 0 : i32
    %c0_i32_1 = arith.constant 0 : i32
    %c0_i32_2 = arith.constant 0 : i32
    return %c0_i32, %c0_i32_0, %c0_i32_1 : i32, i32, i32
  }
  func.func @transform_8(%arg0: i32, %arg1: i32) -> (i32, i32, i32) {
    %c0_i32 = arith.constant 0 : i32
    %c0_i32_0 = arith.constant 0 : i32
    %c0_i32_1 = arith.constant 0 : i32
    return %arg1, %c0_i32, %c0_i32_0 : i32, i32, i32
  }
  func.func @transform_9(%arg0: i32, %arg1: i32) -> (i32, i32) {
    %c0_i32 = arith.constant 0 : i32
    %c0_i32_0 = arith.constant 0 : i32
    %c0_i32_1 = arith.constant 0 : i32
    return %c0_i32, %c0_i32_0 : i32, i32
  }
  func.func @transform_10(%arg0: i32, %arg1: i32) -> (i32, i32) {
    %c0_i32 = arith.constant 0 : i32
    %c0_i32_0 = arith.constant 0 : i32
    %c0_i32_1 = arith.constant 0 : i32
    return %c0_i32, %c0_i32_0 : i32, i32
  }
  func.func @transform_11(%arg0: i32, %arg1: i32) -> (i32, i32, i32, i32) {
    %c0_i32 = arith.constant 0 : i32
    %c0_i32_0 = arith.constant 0 : i32
    %c0_i32_1 = arith.constant 0 : i32
    return %arg0, %arg1, %c0_i32, %c0_i32_0 : i32, i32, i32, i32
  }
}

</mosaic_0001>

<llo_original>
// kernel: tpu_custom_call.1
$region0: #{tpu_custom_call.1}
  #allocation0 [shape = 'u32[]', space=smem, size = 0x4, offset = 0x4, fixed_abs, tag = 'smem constant byte address 0x4 - core index']
  #allocation1 [shape = 'u32[72,128]{1,0:T(1,128)}', space=vmem, size = 0x9000, scoped, tag = 'internal scratch']
  %s0 = inlined_call_operand.hbm [shape: f32[2,4,16,32], index: 0, kind: input, shape index: {}]
  %s1 = inlined_call_operand.hbm [shape: f32[32,32], index: 1, kind: input, shape index: {}]
  %s2 = inlined_call_operand.hbm [shape: f32[32,32], index: 2, kind: input, shape index: {}]
  %s3 = inlined_call_operand.hbm [shape: f32[32,32], index: 3, kind: input, shape index: {}]
  %s4 = inlined_call_operand.vmem [shape: f32[1,32], index: 4, kind: input, shape index: {}]
  %s5 = inlined_call_operand.vmem [shape: f32[1,32], index: 5, kind: input, shape index: {}]
  %s6 = inlined_call_operand.hbm [shape: f32[4,16,16], index: 6, kind: input, shape index: {}]
  %s7 = inlined_call_operand.hbm [shape: f32[4,16,16], index: 7, kind: input, shape index: {}]
  %s8 = inlined_call_operand.hbm [shape: f32[4,16,16], index: 8, kind: input, shape index: {}]
  %s9 = inlined_call_operand.hbm [shape: f32[32,32], index: 9, kind: input, shape index: {}]
  %s10 = inlined_call_operand.vmem [shape: f32[1,32], index: 10, kind: input, shape index: {}]
  %s11 = inlined_call_operand.hbm [shape: f32[2,4,16,32], index: 11, kind: output, shape index: {}]
  %s12 = sld [smem:[#allocation0]]
  $region109: #{tpu_custom_call.1} parent=0
    _
  %s14 = ssub.s32 1, %s12
  %s15 = scalar_select 0, %s14, %s12
  $region1: #{tpu_custom_call.1} parent=0
    #allocation2 [shape = 'u8[65536]{0}', space=vmem, size = 0x10000, scoped, tag = 'input window, operand 0']
    #allocation3 [shape = 's32[2]{0}', space=sflag, size = 0x8, scoped, tag = 'scoped memory for tpu_custom_call.1']
    #allocation4 [shape = 's32[2]{0}', space=sflag, size = 0x8, scoped, tag = 'scoped memory for tpu_custom_call.1']
    #allocation5 [shape = 'u8[16384]{0}', space=vmem, size = 0x4000, scoped, tag = 'input window, operand 1, single buffered']
    #allocation6 [shape = 's32[1]{0}', space=sflag, size = 0x4, scoped, tag = 'scoped memory for tpu_custom_call.1']
    #allocation7 [shape = 'u8[16384]{0}', space=vmem, size = 0x4000, scoped, tag = 'input window, operand 2, single buffered']
    #allocation8 [shape = 'u8[16384]{0}', space=vmem, size = 0x4000, scoped, tag = 'input window, operand 3, single buffered']
    #allocation9 [shape = 's32[1]{0}', space=sflag, size = 0x4, scoped, tag = 'scoped memory for tpu_custom_call.1']
    #allocation10 [shape = 'u8[32768]{0}', space=vmem, size = 0x8000, scoped, tag = 'input window, operand 6, single buffered']
    #allocation11 [shape = 'u8[32768]{0}', space=vmem, size = 0x8000, scoped, tag = 'input window, operand 7, single buffered']
    #allocation12 [shape = 's32[1]{0}', space=sflag, size = 0x4, scoped, tag = 'scoped memory for tpu_custom_call.1']
    #allocation13 [shape = 'u8[32768]{0}', space=vmem, size = 0x8000, scoped, tag = 'input window, operand 8, single buffered']
    #allocation14 [shape = 'u8[16384]{0}', space=vmem, size = 0x4000, scoped, tag = 'input window, operand 9, single buffered']
    #allocation15 [shape = 's32[1]{0}', space=sflag, size = 0x4, scoped, tag = 'scoped memory for tpu_custom_call.1']
    #allocation16 [shape = 'u8[65536]{0}', space=vmem, size = 0x10000, scoped, tag = 'output window, operand 0']
    %16 = vsyncpa [#allocation3], 0
    %s17 = scalar_lea.sflag [#allocation3], 1
    %18 = vsyncpa %s17, 0
    %19 = vsyncpa [#allocation6], 0
    %20 = vsyncpa [#allocation9], 0
    %21 = vsyncpa [#allocation12], 0
    %22 = vsyncpa [#allocation15], 0
    %23 = vsyncpa [#allocation4], 0
    %s24 = scalar_lea.sflag [#allocation4], 1
    %25 = vsyncpa %s24, 0
    loop: start=0, step=1, limit=4
    $region2: #{tpu_custom_call.1} parent=1 // loop_pre_header
      _
    $region3: #{tpu_custom_call.1} parent=1 // loop_header
      %s27 = sphi 0, %s31
      %p28 = scmp.ge.s32.totalorder %s27, 4
      %s34 = sphi 0, %s46
      %s35 = sphi 0, %s42
      %s36 = sphi 0, %s34
      %s37 = sphi 0, %s35
      %s38 = sphi 0, %s36
      %s39 = sphi 0, %s37
      %s51 = sphi 0, %s53
      %s54 = sphi 0, %s51
      %s55 = sphi 0, %s54
      %s71 = sphi 0, %s55
      %s75 = sphi 0, %s75
      %s77 = sphi 0, %s75
      %s78 = sphi 0, %s77
      %s92 = sphi 0, %s78
      %s96 = sphi 0, %s96
      %s98 = sphi 0, %s96
      %s99 = sphi 0, %s98
      %s113 = sphi 0, %s99
      %s117 = sphi 0, %s117
      %s119 = sphi 0, %s117
      %s120 = sphi 0, %s119
      %s134 = sphi 0, %s120
      %s138 = sphi 0, %s138
      %s140 = sphi 0, %s138
      %s141 = sphi 0, %s140
      %s155 = sphi 0, %s141
      %s159 = sphi 0, %s159
      %s161 = sphi 0, %s159
      %s162 = sphi 0, %s161
      %s176 = sphi 0, %s162
      %s180 = sphi 0, %s180
      %s182 = sphi 0, %s180
      %s183 = sphi 0, %s182
      %s197 = sphi 0, %s183
      %s201 = sphi 0, %s201
      %s203 = sphi 0, %s201
      %s204 = sphi 0, %s203
      %s218 = sphi 0, %s204
      %s224 = sphi 0, %s226
      %s227 = sphi 0, %s224
      %s228 = sphi 0, %s227
      %s244 = sphi 0, %s228
      %s248 = sphi 0, %s248
      %s250 = sphi 0, %s248
      %s251 = sphi 0, %s250
      %s265 = sphi 0, %s251
      %s269 = sphi 0, %s269
      %s271 = sphi 0, %s269
      %s272 = sphi 0, %s271
      %s286 = sphi 0, %s272
      %s294 = sphi 0, %s296
      %s297 = sphi 0, %s294
      %s298 = sphi 0, %s297
      %s314 = sphi 0, %s298
    $region4: #{tpu_custom_call.1} parent=1 // loop_header_branch
      %30 = sbr.rel (%p28) target = $region8
    $region5: #{tpu_custom_call.1} parent=1 // loop_body
      %s32 = ssub.s32 %s27, 1
      %s33 = ssub.s32 %s27, 2
      %s40 = sadd.s32 1, %s35
      %p41 = scmp.ge.s32.totalorder %s40, 1
      %s42 = scalar_select %p41, 0, %s40
      %s43 = sadd.s32 1, %s34
      %s44 = scalar_select %p41, %s43, %s34
      %p45 = scmp.ge.s32.totalorder %s44, 2
      %s46 = scalar_select %p45, 0, %s44
      %s47 = ssub.s32 %s34, %s46
      %s48 = ssub.s32 %s35, %s42
      %s49 = sor.u32 %s47, %s48
      %p50 = scmp.eq.s32.totalorder %s49, 0
      %s52 = sadd.s32 %s51, 1
      %s53 = scalar_select %p50, %s51, %s52
      %p56 = pneg %p50
      %p57 = scmp.eq.s32.totalorder %s27, 1
      %p58 = por %p56, %p57
      %p59 = scmp.ne.s32.totalorder %s51, %s54
      %p60 = scmp.eq.s32.totalorder %s27, 0
      %p61 = por %p59, %p60
      %p62 = scmp.ne.s32.totalorder %s51, %s54
      %p63 = scmp.eq.s32.totalorder %s32, 1
      %p64 = por %p62, %p63
      %p65 = scmp.ne.s32.totalorder %s54, %s55
      %p66 = scmp.eq.s32.totalorder %s32, 0
      %p67 = por %p65, %p66
      %p68 = scmp.ne.s32.totalorder %s54, %s55
      %p69 = scmp.eq.s32.totalorder %s33, 1
      %p70 = por %p68, %p69
      %p72 = scmp.ne.s32.totalorder %s55, %s71
      %p73 = scmp.eq.s32.totalorder %s33, 0
      %p74 = por %p72, %p73
      %s76 = sadd.s32 %s75, 1
      %p79 = scmp.eq.s32.totalorder %s27, 1
      %p80 = scmp.ne.s32.totalorder %s75, %s77
      %p81 = scmp.eq.s32.totalorder %s27, 0
      %p82 = por %p80, %p81
      %p83 = scmp.ne.s32.totalorder %s75, %s77
      %p84 = scmp.eq.s32.totalorder %s32, 1
      %p85 = por %p83, %p84
      %p86 = scmp.ne.s32.totalorder %s77, %s78
      %p87 = scmp.eq.s32.totalorder %s32, 0
      %p88 = por %p86, %p87
      %p89 = scmp.ne.s32.totalorder %s77, %s78
      %p90 = scmp.eq.s32.totalorder %s33, 1
      %p91 = por %p89, %p90
      %p93 = scmp.ne.s32.totalorder %s78, %s92
      %p94 = scmp.eq.s32.totalorder %s33, 0
      %p95 = por %p93, %p94
      %s97 = sadd.s32 %s96, 1
      %p100 = scmp.eq.s32.totalorder %s27, 1
      %p101 = scmp.ne.s32.totalorder %s96, %s98
      %p102 = scmp.eq.s32.totalorder %s27, 0
      %p103 = por %p101, %p102
      %p104 = scmp.ne.s32.totalorder %s96, %s98
      %p105 = scmp.eq.s32.totalorder %s32, 1
      %p106 = por %p104, %p105
      %p107 = scmp.ne.s32.totalorder %s98, %s99
      %p108 = scmp.eq.s32.totalorder %s32, 0
      %p109 = por %p107, %p108
      %p110 = scmp.ne.s32.totalorder %s98, %s99
      %p111 = scmp.eq.s32.totalorder %s33, 1
      %p112 = por %p110, %p111
      %p114 = scmp.ne.s32.totalorder %s99, %s113
      %p115 = scmp.eq.s32.totalorder %s33, 0
      %p116 = por %p114, %p115
      %s118 = sadd.s32 %s117, 1
      %p121 = scmp.eq.s32.totalorder %s27, 1
      %p122 = scmp.ne.s32.totalorder %s117, %s119
      %p123 = scmp.eq.s32.totalorder %s27, 0
      %p124 = por %p122, %p123
      %p125 = scmp.ne.s32.totalorder %s117, %s119
      %p126 = scmp.eq.s32.totalorder %s32, 1
      %p127 = por %p125, %p126
      %p128 = scmp.ne.s32.totalorder %s119, %s120
      %p129 = scmp.eq.s32.totalorder %s32, 0
      %p130 = por %p128, %p129
      %p131 = scmp.ne.s32.totalorder %s119, %s120
      %p132 = scmp.eq.s32.totalorder %s33, 1
      %p133 = por %p131, %p132
      %p135 = scmp.ne.s32.totalorder %s120, %s134
      %p136 = scmp.eq.s32.totalorder %s33, 0
      %p137 = por %p135, %p136
      %s139 = sadd.s32 %s138, 1
      %p142 = scmp.eq.s32.totalorder %s27, 1
      %p143 = scmp.ne.s32.totalorder %s138, %s140
      %p144 = scmp.eq.s32.totalorder %s27, 0
      %p145 = por %p143, %p144
      %p146 = scmp.ne.s32.totalorder %s138, %s140
      %p147 = scmp.eq.s32.totalorder %s32, 1
      %p148 = por %p146, %p147
      %p149 = scmp.ne.s32.totalorder %s140, %s141
      %p150 = scmp.eq.s32.totalorder %s32, 0
      %p151 = por %p149, %p150
      %p152 = scmp.ne.s32.totalorder %s140, %s141
      %p153 = scmp.eq.s32.totalorder %s33, 1
      %p154 = por %p152, %p153
      %p156 = scmp.ne.s32.totalorder %s141, %s155
      %p157 = scmp.eq.s32.totalorder %s33, 0
      %p158 = por %p156, %p157
      %s160 = sadd.s32 %s159, 1
      %p163 = scmp.eq.s32.totalorder %s27, 1
      %p164 = scmp.ne.s32.totalorder %s159, %s161
      %p165 = scmp.eq.s32.totalorder %s27, 0
      %p166 = por %p164, %p165
      %p167 = scmp.ne.s32.totalorder %s159, %s161
      %p168 = scmp.eq.s32.totalorder %s32, 1
      %p169 = por %p167, %p168
      %p170 = scmp.ne.s32.totalorder %s161, %s162
      %p171 = scmp.eq.s32.totalorder %s32, 0
      %p172 = por %p170, %p171
      %p173 = scmp.ne.s32.totalorder %s161, %s162
      %p174 = scmp.eq.s32.totalorder %s33, 1
      %p175 = por %p173, %p174
      %p177 = scmp.ne.s32.totalorder %s162, %s176
      %p178 = scmp.eq.s32.totalorder %s33, 0
      %p179 = por %p177, %p178
      %s181 = sadd.s32 %s180, 1
      %p184 = scmp.eq.s32.totalorder %s27, 1
      %p185 = scmp.ne.s32.totalorder %s180, %s182
      %p186 = scmp.eq.s32.totalorder %s27, 0
      %p187 = por %p185, %p186
      %p188 = scmp.ne.s32.totalorder %s180, %s182
      %p189 = scmp.eq.s32.totalorder %s32, 1
      %p190 = por %p188, %p189
      %p191 = scmp.ne.s32.totalorder %s182, %s183
      %p192 = scmp.eq.s32.totalorder %s32, 0
      %p193 = por %p191, %p192
      %p194 = scmp.ne.s32.totalorder %s182, %s183
      %p195 = scmp.eq.s32.totalorder %s33, 1
      %p196 = por %p194, %p195
      %p198 = scmp.ne.s32.totalorder %s183, %s197
      %p199 = scmp.eq.s32.totalorder %s33, 0
      %p200 = por %p198, %p199
      %s202 = sadd.s32 %s201, 1
      %p205 = scmp.eq.s32.totalorder %s27, 1
      %p206 = scmp.ne.s32.totalorder %s201, %s203
      %p207 = scmp.eq.s32.totalorder %s27, 0
      %p208 = por %p206, %p207
      %p209 = scmp.ne.s32.totalorder %s201, %s203
      %p210 = scmp.eq.s32.totalorder %s32, 1
      %p211 = por %p209, %p210
      %p212 = scmp.ne.s32.totalorder %s203, %s204
      %p213 = scmp.eq.s32.totalorder %s32, 0
      %p214 = por %p212, %p213
      %p215 = scmp.ne.s32.totalorder %s203, %s204
      %p216 = scmp.eq.s32.totalorder %s33, 1
      %p217 = por %p215, %p216
      %p219 = scmp.ne.s32.totalorder %s204, %s218
      %p220 = scmp.eq.s32.totalorder %s33, 0
      %p221 = por %p219, %p220
      %s222 = ssub.s32 %s35, %s42
      %p223 = scmp.eq.s32.totalorder %s222, 0
      %s225 = sadd.s32 %s224, 1
      %s226 = scalar_select %p223, %s224, %s225
      %p229 = pneg %p223
      %p230 = scmp.eq.s32.totalorder %s27, 1
      %p231 = por %p229, %p230
      %p232 = scmp.ne.s32.totalorder %s224, %s227
      %p233 = scmp.eq.s32.totalorder %s27, 0
      %p234 = por %p232, %p233
      %p235 = scmp.ne.s32.totalorder %s224, %s227
      %p236 = scmp.eq.s32.totalorder %s32, 1
      %p237 = por %p235, %p236
      %p238 = scmp.ne.s32.totalorder %s227, %s228
      %p239 = scmp.eq.s32.totalorder %s32, 0
      %p240 = por %p238, %p239
      %p241 = scmp.ne.s32.totalorder %s227, %s228
      %p242 = scmp.eq.s32.totalorder %s33, 1
      %p243 = por %p241, %p242
      %p245 = scmp.ne.s32.totalorder %s228, %s244
      %p246 = scmp.eq.s32.totalorder %s33, 0
      %p247 = por %p245, %p246
      %s249 = sadd.s32 %s248, 1
      %p252 = scmp.eq.s32.totalorder %s27, 1
      %p253 = scmp.ne.s32.totalorder %s248, %s250
      %p254 = scmp.eq.s32.totalorder %s27, 0
      %p255 = por %p253, %p254
      %p256 = scmp.ne.s32.totalorder %s248, %s250
      %p257 = scmp.eq.s32.totalorder %s32, 1
      %p258 = por %p256, %p257
      %p259 = scmp.ne.s32.totalorder %s250, %s251
      %p260 = scmp.eq.s32.totalorder %s32, 0
      %p261 = por %p259, %p260
      %p262 = scmp.ne.s32.totalorder %s250, %s251
      %p263 = scmp.eq.s32.totalorder %s33, 1
      %p264 = por %p262, %p263
      %p266 = scmp.ne.s32.totalorder %s251, %s265
      %p267 = scmp.eq.s32.totalorder %s33, 0
      %p268 = por %p266, %p267
      %s270 = sadd.s32 %s269, 1
      %p273 = scmp.eq.s32.totalorder %s27, 1
      %p274 = scmp.ne.s32.totalorder %s269, %s271
      %p275 = scmp.eq.s32.totalorder %s27, 0
      %p276 = por %p274, %p275
      %p277 = scmp.ne.s32.totalorder %s269, %s271
      %p278 = scmp.eq.s32.totalorder %s32, 1
      %p279 = por %p277, %p278
      %p280 = scmp.ne.s32.totalorder %s271, %s272
      %p281 = scmp.eq.s32.totalorder %s32, 0
      %p282 = por %p280, %p281
      %p283 = scmp.ne.s32.totalorder %s271, %s272
      %p284 = scmp.eq.s32.totalorder %s33, 1
      %p285 = por %p283, %p284
      %p287 = scmp.ne.s32.totalorder %s272, %s286
      %p288 = scmp.eq.s32.totalorder %s33, 0
      %p289 = por %p287, %p288
      %s290 = ssub.s32 %s34, %s46
      %s291 = ssub.s32 %s35, %s42
      %s292 = sor.u32 %s290, %s291
      %p293 = scmp.eq.s32.totalorder %s292, 0
      %s295 = sadd.s32 %s294, 1
      %s296 = scalar_select %p293, %s294, %s295
      %p299 = pneg %p293
      %p300 = scmp.eq.s32.totalorder %s27, 1
      %p301 = por %p299, %p300
      %p302 = scmp.ne.s32.totalorder %s294, %s297
      %p303 = scmp.eq.s32.totalorder %s27, 0
      %p304 = por %p302, %p303
      %p305 = scmp.ne.s32.totalorder %s294, %s297
      %p306 = scmp.eq.s32.totalorder %s32, 1
      %p307 = por %p305, %p306
      %p308 = scmp.ne.s32.totalorder %s297, %s298
      %p309 = scmp.eq.s32.totalorder %s32, 0
      %p310 = por %p308, %p309
      %p311 = scmp.ne.s32.totalorder %s297, %s298
      %p312 = scmp.eq.s32.totalorder %s33, 1
      %p313 = por %p311, %p312
      %p315 = scmp.ne.s32.totalorder %s298, %s314
      %p316 = scmp.eq.s32.totalorder %s33, 0
      %p317 = por %p315, %p316
      %p318 = scmp.le.s32.totalorder 1, %s27
      %p319 = scmp.lt.s32.totalorder %s27, 3
      %p320 = pnand %p318, %p319
      %p321 = pneg %p320
      // Predicated region
      $region9: #{tpu_custom_call.1} parent=5 // pred_check
        _
      $region10: #{tpu_custom_call.1} parent=5 // pred_check_branch
        %323 = sbr.rel (%p320) target = $region12
      $region11: #{tpu_custom_call.1} parent=5 // pred_region
        %s324 = ssub.s32 %s27, 1
        // Predicated region
        $region13: #{tpu_custom_call.1} parent=11 // pred_check
          %p325 = pneg %p88
        $region14: #{tpu_custom_call.1} parent=11 // pred_check_branch
          %327 = sbr.rel (%p325) target = $region16
        $region15: #{tpu_custom_call.1} parent=11 // pred_region
          %329 = vsyncadd [#allocation6], 0
          %s330 = sshll.u32 %s1, 4
          %s331 = int_to_ptr.hbm [resolvable:$true] %s330
          %s332 = sshll.u32 [#allocation5], 4
          %s333 = int_to_ptr.vmem [resolvable:$true] %s332
          %338 = dma.hbm_to_vmem [thread:$0]  %s331, 512, %s333, [#allocation6], 128, 128, 8
        $region16: #{tpu_custom_call.1} parent=11 // pred_fallthru
          _
        // Predicated region
        $region17: #{tpu_custom_call.1} parent=11 // pred_check
          %p339 = pneg %p109
        $region18: #{tpu_custom_call.1} parent=11 // pred_check_branch
          %341 = sbr.rel (%p339) target = $region20
        $region19: #{tpu_custom_call.1} parent=11 // pred_region
          %343 = vsyncadd [#allocation6], 0
          %s344 = sshll.u32 %s2, 4
          %s345 = int_to_ptr.hbm [resolvable:$true] %s344
          %s346 = sshll.u32 [#allocation7], 4
          %s347 = int_to_ptr.vmem [resolvable:$true] %s346
          %352 = dma.hbm_to_vmem [thread:$0]  %s345, 512, %s347, [#allocation6], 128, 128, 8
        $region20: #{tpu_custom_call.1} parent=11 // pred_fallthru
          _
        // Predicated region
        $region21: #{tpu_custom_call.1} parent=11 // pred_check
          %p353 = pneg %p130
        $region22: #{tpu_custom_call.1} parent=11 // pred_check_branch
          %355 = sbr.rel (%p353) target = $region24
        $region23: #{tpu_custom_call.1} parent=11 // pred_region
          %357 = vsyncadd [#allocation9], 0
          %s358 = sshll.u32 %s3, 4
          %s359 = int_to_ptr.hbm [resolvable:$true] %s358
          %s360 = sshll.u32 [#allocation8], 4
          %s361 = int_to_ptr.vmem [resolvable:$true] %s360
          %366 = dma.hbm_to_vmem [thread:$0]  %s359, 512, %s361, [#allocation9], 128, 128, 8
        $region24: #{tpu_custom_call.1} parent=11 // pred_fallthru
          _
        // Predicated region
        $region25: #{tpu_custom_call.1} parent=11 // pred_check
          %p367 = pneg %p151
        $region26: #{tpu_custom_call.1} parent=11 // pred_check_branch
          %369 = sbr.rel (%p367) target = $region28
        $region27: #{tpu_custom_call.1} parent=11 // pred_region
          _
        $region28: #{tpu_custom_call.1} parent=11 // pred_fallthru
          _
        // Predicated region
        $region29: #{tpu_custom_call.1} parent=11 // pred_check
          %p370 = pneg %p172
        $region30: #{tpu_custom_call.1} parent=11 // pred_check_branch
          %372 = sbr.rel (%p370) target = $region32
        $region31: #{tpu_custom_call.1} parent=11 // pred_region
          _
        $region32: #{tpu_custom_call.1} parent=11 // pred_fallthru
          _
        // Predicated region
        $region33: #{tpu_custom_call.1} parent=11 // pred_check
          %p373 = pneg %p193
        $region34: #{tpu_custom_call.1} parent=11 // pred_check_branch
          %375 = sbr.rel (%p373) target = $region36
        $region35: #{tpu_custom_call.1} parent=11 // pred_region
          %377 = vsyncadd [#allocation9], 0
          %s378 = sshll.u32 %s6, 4
          %s379 = int_to_ptr.hbm [resolvable:$true] %s378
          %s380 = sshll.u32 [#allocation10], 4
          %s381 = int_to_ptr.vmem [resolvable:$true] %s380
          %386 = dma.hbm_to_vmem [thread:$0]  %s379, 1024, %s381, [#allocation9], 128, 128, 8
        $region36: #{tpu_custom_call.1} parent=11 // pred_fallthru
          _
        // Predicated region
        $region37: #{tpu_custom_call.1} parent=11 // pred_check
          %p387 = pneg %p214
        $region38: #{tpu_custom_call.1} parent=11 // pred_check_branch
          %389 = sbr.rel (%p387) target = $region40
        $region39: #{tpu_custom_call.1} parent=11 // pred_region
          %391 = vsyncadd [#allocation12], 0
          %s392 = sshll.u32 %s7, 4
          %s393 = int_to_ptr.hbm [resolvable:$true] %s392
          %s394 = sshll.u32 [#allocation11], 4
          %s395 = int_to_ptr.vmem [resolvable:$true] %s394
          %400 = dma.hbm_to_vmem [thread:$0]  %s393, 1024, %s395, [#allocation12], 128, 128, 8
        $region40: #{tpu_custom_call.1} parent=11 // pred_fallthru
          _
        // Predicated region
        $region41: #{tpu_custom_call.1} parent=11 // pred_check
          %p401 = pneg %p240
        $region42: #{tpu_custom_call.1} parent=11 // pred_check_branch
          %403 = sbr.rel (%p401) target = $region44
        $region43: #{tpu_custom_call.1} parent=11 // pred_region
          %s404 = smul.u32 4, %s37
          %406 = vsyncadd [#allocation12], 0
          %s407 = smul.addr %s404, 2
          %s408 = smul.addr %s407, 8
          %s409 = scalar_lea.hbm %s8, %s408
          %s410 = sshll.u32 %s409, 4
          %s411 = int_to_ptr.hbm [resolvable:$true] %s410
          %s412 = sshll.u32 [#allocation13], 4
          %s413 = int_to_ptr.vmem [resolvable:$true] %s412
          %418 = dma.hbm_to_vmem [thread:$0]  %s411, 1024, %s413, [#allocation12], 128, 128, 8
        $region44: #{tpu_custom_call.1} parent=11 // pred_fallthru
          _
        // Predicated region
        $region45: #{tpu_custom_call.1} parent=11 // pred_check
          %p419 = pneg %p261
        $region46: #{tpu_custom_call.1} parent=11 // pred_check_branch
          %421 = sbr.rel (%p419) target = $region48
        $region47: #{tpu_custom_call.1} parent=11 // pred_region
          %423 = vsyncadd [#allocation15], 0
          %s424 = sshll.u32 %s9, 4
          %s425 = int_to_ptr.hbm [resolvable:$true] %s424
          %s426 = sshll.u32 [#allocation14], 4
          %s427 = int_to_ptr.vmem [resolvable:$true] %s426
          %432 = dma.hbm_to_vmem [thread:$0]  %s425, 512, %s427, [#allocation15], 128, 128, 8
        $region48: #{tpu_custom_call.1} parent=11 // pred_fallthru
          _
        // Predicated region
        $region49: #{tpu_custom_call.1} parent=11 // pred_check
          %p433 = pneg %p282
        $region50: #{tpu_custom_call.1} parent=11 // pred_check_branch
          %435 = sbr.rel (%p433) target = $region52
        $region51: #{tpu_custom_call.1} parent=11 // pred_region
          _
        $region52: #{tpu_custom_call.1} parent=11 // pred_fallthru
          _
      $region12: #{tpu_custom_call.1} parent=5 // pred_fallthru
        _
      %p436 = scmp.lt.s32.totalorder %s27, 2
      // Predicated region
      $region53: #{tpu_custom_call.1} parent=5 // pred_check
        %p437 = pneg %p436
      $region54: #{tpu_custom_call.1} parent=5 // pred_check_branch
        %439 = sbr.rel (%p437) target = $region56
      $region55: #{tpu_custom_call.1} parent=5 // pred_region
        // Predicated region
        $region57: #{tpu_custom_call.1} parent=55 // pred_check
          %p440 = pneg %p61
        $region58: #{tpu_custom_call.1} parent=55 // pred_check_branch
          %442 = sbr.rel (%p440) target = $region60
        $region59: #{tpu_custom_call.1} parent=55 // pred_region
          %s443 = sand.u32 %s51, 1
          %s444 = scalar_lea.sflag [#allocation3], %s443
          %s445 = sand.u32 %s51, 1
          %s446 = smul.addr %s445, 64
          %s447 = scalar_lea.vmem [#allocation2], %s446
          %s448 = smul.u32 4, %s35
          %450 = vsyncadd %s444, 0
          %s451 = smul.addr %s448, 2
          %s452 = smul.addr %s34, 8
          %s453 = sadd.s32 %s451, %s452
          %s454 = smul.addr %s453, 8
          %s455 = scalar_lea.hbm %s0, %s454
          %s456 = sshll.u32 %s455, 4
          %s457 = int_to_ptr.hbm [resolvable:$true] %s456
          %s458 = sshll.u32 %s447, 4
          %s459 = int_to_ptr.vmem [resolvable:$true] %s458
          %464 = dma.hbm_to_vmem [thread:$0]  %s457, 1024, %s459, %s444, 128, 128, 8
        $region60: #{tpu_custom_call.1} parent=55 // pred_fallthru
          _
      $region56: #{tpu_custom_call.1} parent=5 // pred_fallthru
        _
      %p465 = scmp.le.s32.totalorder 1, %s27
      %p466 = scmp.lt.s32.totalorder %s27, 3
      %p467 = pnand %p465, %p466
      %p468 = pneg %p467
      // Predicated region
      $region61: #{tpu_custom_call.1} parent=5 // pred_check
        _
      $region62: #{tpu_custom_call.1} parent=5 // pred_check_branch
        %470 = sbr.rel (%p467) target = $region64
      $region63: #{tpu_custom_call.1} parent=5 // pred_region
        %s471 = ssub.s32 %s27, 1
        %s472 = sand.u32 %s54, 1
        %s473 = scalar_lea.sflag [#allocation3], %s472
        %s474 = sand.u32 %s54, 1
        %s475 = smul.addr %s474, 64
        %s476 = scalar_lea.vmem [#allocation2], %s475
        // Predicated region
        $region65: #{tpu_custom_call.1} parent=63 // pred_check
          %p477 = pneg %p67
        $region66: #{tpu_custom_call.1} parent=63 // pred_check_branch
          %479 = sbr.rel (%p477) target = $region68
        $region67: #{tpu_custom_call.1} parent=63 // pred_region
          %481 = dma.done %s473, 1024
        $region68: #{tpu_custom_call.1} parent=63 // pred_fallthru
          _
        // Predicated region
        $region69: #{tpu_custom_call.1} parent=63 // pred_check
          %p482 = pneg %p88
        $region70: #{tpu_custom_call.1} parent=63 // pred_check_branch
          %484 = sbr.rel (%p482) target = $region72
        $region71: #{tpu_custom_call.1} parent=63 // pred_region
          %486 = dma.done [#allocation6], 512
        $region72: #{tpu_custom_call.1} parent=63 // pred_fallthru
          _
        // Predicated region
        $region73: #{tpu_custom_call.1} parent=63 // pred_check
          %p487 = pneg %p109
        $region74: #{tpu_custom_call.1} parent=63 // pred_check_branch
          %489 = sbr.rel (%p487) target = $region76
        $region75: #{tpu_custom_call.1} parent=63 // pred_region
          %491 = dma.done [#allocation6], 512
        $region76: #{tpu_custom_call.1} parent=63 // pred_fallthru
          _
        // Predicated region
        $region77: #{tpu_custom_call.1} parent=63 // pred_check
          %p492 = pneg %p130
        $region78: #{tpu_custom_call.1} parent=63 // pred_check_branch
          %494 = sbr.rel (%p492) target = $region80
        $region79: #{tpu_custom_call.1} parent=63 // pred_region
          %496 = dma.done [#allocation9], 512
        $region80: #{tpu_custom_call.1} parent=63 // pred_fallthru
          _
        // Predicated region
        $region81: #{tpu_custom_call.1} parent=63 // pred_check
          %p497 = pneg %p193
        $region82: #{tpu_custom_call.1} parent=63 // pred_check_branch
          %499 = sbr.rel (%p497) target = $region84
        $region83: #{tpu_custom_call.1} parent=63 // pred_region
          %501 = dma.done [#allocation9], 1024
        $region84: #{tpu_custom_call.1} parent=63 // pred_fallthru
          _
        // Predicated region
        $region85: #{tpu_custom_call.1} parent=63 // pred_check
          %p502 = pneg %p214
        $region86: #{tpu_custom_call.1} parent=63 // pred_check_branch
          %504 = sbr.rel (%p502) target = $region88
        $region87: #{tpu_custom_call.1} parent=63 // pred_region
          %506 = dma.done [#allocation12], 1024
        $region88: #{tpu_custom_call.1} parent=63 // pred_fallthru
          _
        // Predicated region
        $region89: #{tpu_custom_call.1} parent=63 // pred_check
          %p507 = pneg %p240
        $region90: #{tpu_custom_call.1} parent=63 // pred_check_branch
          %509 = sbr.rel (%p507) target = $region92
        $region91: #{tpu_custom_call.1} parent=63 // pred_region
          %511 = dma.done [#allocation12], 1024
        $region92: #{tpu_custom_call.1} parent=63 // pred_fallthru
          _
        // Predicated region
        $region93: #{tpu_custom_call.1} parent=63 // pred_check
          %p512 = pneg %p261
        $region94: #{tpu_custom_call.1} parent=63 // pred_check_branch
          %514 = sbr.rel (%p512) target = $region96
        $region95: #{tpu_custom_call.1} parent=63 // pred_region
          %516 = dma.done [#allocation15], 512
        $region96: #{tpu_custom_call.1} parent=63 // pred_fallthru
          _
        %s517 = sand.u32 %s54, 1
        %s518 = scalar_lea.sflag [#allocation3], %s517
        %s519 = sand.u32 %s54, 1
        %s520 = smul.addr %s519, 64
        %s521 = scalar_lea.vmem [#allocation2], %s520
        %p522 = pneg %p67
        %p523 = pneg %p64
        %p524 = pneg %p88
        %p525 = pneg %p85
        %p526 = pneg %p109
        %p527 = pneg %p106
        %p528 = pneg %p130
        %p529 = pneg %p127
        %p530 = pneg %p151
        %p531 = pneg %p148
        %p532 = pneg %p172
        %p533 = pneg %p169
        %p534 = pneg %p193
        %p535 = pneg %p190
        %p536 = pneg %p214
        %p537 = pneg %p211
        %p538 = pneg %p240
        %p539 = pneg %p237
        %p540 = pneg %p261
        %p541 = pneg %p258
        %p542 = pneg %p282
        %p543 = pneg %p279
        %p544 = pneg %p310
        %p545 = pneg %p307
        %s546 = sand.u32 %s297, 1
        %s547 = scalar_lea.sflag [#allocation4], %s546
        %s548 = sand.u32 %s297, 1
        %s549 = smul.addr %s548, 64
        %s550 = scalar_lea.vmem [#allocation16], %s549
        %s551 = smul.u32 4, %s37
        %s552 = smul.u32 4, %s37
        %s553 = smul.u32 4, %s37
        %v554 = vld [vmem:[%s476] sm:$0xff]
        %v555 = vld [vmem:[%s476 + $0x8] sm:$0xff]
        %v556 = vld [vmem:[%s476 + $0x10] sm:$0xff]
        %v557 = vld [vmem:[%s476 + $0x18] sm:$0xff]
        %v558 = vld [vmem:[%s476 + $0x20] sm:$0xff]
        %v559 = vld [vmem:[%s476 + $0x28] sm:$0xff]
        %v560 = vld [vmem:[%s476 + $0x30] sm:$0xff]
        %v561 = vld [vmem:[%s476 + $0x38] sm:$0xff]
        %v562 = vld [vmem:[#allocation5] sm:$0xff]
        %v563 = vld [vmem:[#allocation5 + $0x8] sm:$0xff]
        %v564 = vld [vmem:[#allocation5 + $0x10] sm:$0xff]
        %v565 = vld [vmem:[#allocation5 + $0x18] sm:$0xff]
        %v566 = vld [vmem:[%s4] sm:$0x1]
        %v568 = vperm.slane %v566, 0
        %vm570 = vcmask 261120
        %v572 = vsel %vm570, %v554, 0
        %v575 = vsel %vm570, %v555, 0
        %v578 = vsel %vm570, %v556, 0
        %v581 = vsel %vm570, %v557, 0
        %v584 = vsel %vm570, %v558, 0
        %v587 = vsel %vm570, %v559, 0
        %v590 = vsel %vm570, %v560, 0
        %v593 = vsel %vm570, %v561, 0
        %595 = vmatpush.msra.mxu0 0.0
        %596 = vmatpush.msra.mxu0 0.0
        %597 = vmatpush.msra.mxu0 0.0
        %598 = vmatpush.msra.mxu0 0.0
        %599 = vmatpush.msra.mxu0 0.0
        %600 = vmatpush.msra.mxu0 0.0
        %601 = vmatpush.msra.mxu0 0.0
        %602 = vmatpush.msra.mxu0 0.0
        %603 = vmatpush.msra.mxu0 0.0
        %604 = vmatpush.msra.mxu0 0.0
        %605 = vmatpush.msra.mxu0 0.0
        %606 = vmatpush.msra.mxu0 0.0
        %607 = vmatpush.msra.mxu0 %v565
        %608 = vmatpush.msra.mxu0 %v564
        %609 = vmatpush.msra.mxu0 %v563
        %610 = vmatpush.msra.mxu0 %v562
        %611 = vmatmul.f32.gmra.mxu0 %v572
        %v612 = vpop.f32.mrf.mxu0
        %v613 = vadd.f32 %v568, %v612
        %614 = vmatmul.f32.gmra.mxu0 %v575
        %v615 = vpop.f32.mrf.mxu0
        %v616 = vadd.f32 %v568, %v615
        %617 = vmatmul.f32.gmra.mxu0 %v578
        %v618 = vpop.f32.mrf.mxu0
        %v619 = vadd.f32 %v568, %v618
        %620 = vmatmul.f32.gmra.mxu0 %v581
        %v621 = vpop.f32.mrf.mxu0
        %v622 = vadd.f32 %v568, %v621
        %623 = vmatmul.f32.gmra.mxu0 %v584
        %v624 = vpop.f32.mrf.mxu0
        %v625 = vadd.f32 %v568, %v624
        %626 = vmatmul.f32.gmra.mxu0 %v587
        %v627 = vpop.f32.mrf.mxu0
        %v628 = vadd.f32 %v568, %v627
        %629 = vmatmul.f32.gmra.mxu0 %v590
        %v630 = vpop.f32.mrf.mxu0
        %v631 = vadd.f32 %v568, %v630
        %632 = vmatmul.f32.gmra.mxu0 %v593
        %v633 = vpop.f32.mrf.mxu0
        %v634 = vadd.f32 %v568, %v633
        %635 = vdwg.mxu0
        %v636 = vld [vmem:[#allocation7] sm:$0xff]
        %v637 = vld [vmem:[#allocation7 + $0x8] sm:$0xff]
        %v638 = vld [vmem:[#allocation7 + $0x10] sm:$0xff]
        %v639 = vld [vmem:[#allocation7 + $0x18] sm:$0xff]
        %640 = vmatpush.msra.mxu0 0.0
        %641 = vmatpush.msra.mxu0 0.0
        %642 = vmatpush.msra.mxu0 0.0
        %643 = vmatpush.msra.mxu0 0.0
        %644 = vmatpush.msra.mxu0 0.0
        %645 = vmatpush.msra.mxu0 0.0
        %646 = vmatpush.msra.mxu0 0.0
        %647 = vmatpush.msra.mxu0 0.0
        %648 = vmatpush.msra.mxu0 0.0
        %649 = vmatpush.msra.mxu0 0.0
        %650 = vmatpush.msra.mxu0 0.0
        %651 = vmatpush.msra.mxu0 0.0
        %652 = vmatpush.msra.mxu0 %v639
        %653 = vmatpush.msra.mxu0 %v638
        %654 = vmatpush.msra.mxu0 %v637
        %655 = vmatpush.msra.mxu0 %v636
        %656 = vmatmul.f32.gmra.mxu0 %v572
        %v657 = vpop.f32.mrf.mxu0
        %v658 = vadd.f32 0.0, %v657
        %659 = vmatmul.f32.gmra.mxu0 %v575
        %v660 = vpop.f32.mrf.mxu0
        %v661 = vadd.f32 0.0, %v660
        %662 = vmatmul.f32.gmra.mxu0 %v578
        %v663 = vpop.f32.mrf.mxu0
        %v664 = vadd.f32 0.0, %v663
        %665 = vmatmul.f32.gmra.mxu0 %v581
        %v666 = vpop.f32.mrf.mxu0
        %v667 = vadd.f32 0.0, %v666
        %668 = vmatmul.f32.gmra.mxu0 %v584
        %v669 = vpop.f32.mrf.mxu0
        %v670 = vadd.f32 0.0, %v669
        %671 = vmatmul.f32.gmra.mxu0 %v587
        %v672 = vpop.f32.mrf.mxu0
        %v673 = vadd.f32 0.0, %v672
        %674 = vmatmul.f32.gmra.mxu0 %v590
        %v675 = vpop.f32.mrf.mxu0
        %v676 = vadd.f32 0.0, %v675
        %677 = vmatmul.f32.gmra.mxu0 %v593
        %v678 = vpop.f32.mrf.mxu0
        %v679 = vadd.f32 0.0, %v678
        %680 = vdwg.mxu0
        %v681 = vld [vmem:[#allocation8] sm:$0xff]
        %v682 = vld [vmem:[#allocation8 + $0x8] sm:$0xff]
        %v683 = vld [vmem:[#allocation8 + $0x10] sm:$0xff]
        %v684 = vld [vmem:[#allocation8 + $0x18] sm:$0xff]
        %v685 = vld [vmem:[%s5] sm:$0x1]
        %v687 = vperm.slane %v685, 0
        %689 = vmatpush.msra.mxu0 0.0
        %690 = vmatpush.msra.mxu0 0.0
        %691 = vmatpush.msra.mxu0 0.0
        %692 = vmatpush.msra.mxu0 0.0
        %693 = vmatpush.msra.mxu0 0.0
        %694 = vmatpush.msra.mxu0 0.0
        %695 = vmatpush.msra.mxu0 0.0
        %696 = vmatpush.msra.mxu0 0.0
        %697 = vmatpush.msra.mxu0 0.0
        %698 = vmatpush.msra.mxu0 0.0
        %699 = vmatpush.msra.mxu0 0.0
        %700 = vmatpush.msra.mxu0 0.0
        %701 = vmatpush.msra.mxu0 %v684
        %702 = vmatpush.msra.mxu0 %v683
        %703 = vmatpush.msra.mxu0 %v682
        %704 = vmatpush.msra.mxu0 %v681
        %705 = vmatmul.f32.gmra.mxu0 %v572
        %v706 = vpop.f32.mrf.mxu0
        %v707 = vadd.f32 %v687, %v706
        %708 = vmatmul.f32.gmra.mxu0 %v575
        %v709 = vpop.f32.mrf.mxu0
        %v710 = vadd.f32 %v687, %v709
        %711 = vmatmul.f32.gmra.mxu0 %v578
        %v712 = vpop.f32.mrf.mxu0
        %v713 = vadd.f32 %v687, %v712
        %714 = vmatmul.f32.gmra.mxu0 %v581
        %v715 = vpop.f32.mrf.mxu0
        %v716 = vadd.f32 %v687, %v715
        %717 = vmatmul.f32.gmra.mxu0 %v584
        %v718 = vpop.f32.mrf.mxu0
        %v719 = vadd.f32 %v687, %v718
        %720 = vmatmul.f32.gmra.mxu0 %v587
        %v721 = vpop.f32.mrf.mxu0
        %v722 = vadd.f32 %v687, %v721
        %723 = vmatmul.f32.gmra.mxu0 %v590
        %v724 = vpop.f32.mrf.mxu0
        %v725 = vadd.f32 %v687, %v724
        %726 = vmatmul.f32.gmra.mxu0 %v593
        %v727 = vpop.f32.mrf.mxu0
        %v728 = vadd.f32 %v687, %v727
        %729 = vdwg.mxu0
        %v730 = vld [vmem:[#allocation13] sm:$0xff]
        %v731 = vld [vmem:[#allocation13 + $0x8] sm:$0xff]
        %v732 = vld [vmem:[#allocation13 + $0x10] sm:$0xff]
        %v733 = vld [vmem:[#allocation13 + $0x18] sm:$0xff]
        %v734 = vld [vmem:[#allocation13 + $0x20] sm:$0xff]
        %v735 = vld [vmem:[#allocation13 + $0x28] sm:$0xff]
        %v736 = vld [vmem:[#allocation13 + $0x30] sm:$0xff]
        %v737 = vld [vmem:[#allocation13 + $0x38] sm:$0xff]
        %v738 = vmul.f32 %v613, %v613
        %v739 = vmul.f32 %v616, %v616
        %v740 = vmul.f32 %v619, %v619
        %v741 = vmul.f32 %v622, %v622
        %v742 = vmul.f32 %v625, %v625
        %v743 = vmul.f32 %v628, %v628
        %v744 = vmul.f32 %v631, %v631
        %v745 = vmul.f32 %v634, %v634
        %vm746 = vcmask 64512
        %v747 = vsel %vm746, %v738, 0.0
        %748 = vadd.xlane.f32.xlu0 %v747
        %v749 = vpop.xlane.xlu0 %748
        %v750 = vsel %vm746, %v739, 0.0
        %751 = vadd.xlane.f32.xlu0 %v750
        %v752 = vpop.xlane.xlu0 %751
        %v753 = vsel %vm746, %v740, 0.0
        %754 = vadd.xlane.f32.xlu0 %v753
        %v755 = vpop.xlane.xlu0 %754
        %v756 = vsel %vm746, %v741, 0.0
        %757 = vadd.xlane.f32.xlu0 %v756
        %v758 = vpop.xlane.xlu0 %757
        %v759 = vsel %vm746, %v742, 0.0
        %760 = vadd.xlane.f32.xlu0 %v759
        %v761 = vpop.xlane.xlu0 %760
        %v762 = vsel %vm746, %v743, 0.0
        %763 = vadd.xlane.f32.xlu0 %v762
        %v764 = vpop.xlane.xlu0 %763
        %v765 = vsel %vm746, %v744, 0.0
        %766 = vadd.xlane.f32.xlu0 %v765
        %v767 = vpop.xlane.xlu0 %766
        %v768 = vsel %vm746, %v745, 0.0
        %769 = vadd.xlane.f32.xlu0 %v768
        %v770 = vpop.xlane.xlu0 %769
        %v771 = vadd.f32 %v749, 1e-12
        %v772 = vadd.f32 %v752, 1e-12
        %v773 = vadd.f32 %v755, 1e-12
        %v774 = vadd.f32 %v758, 1e-12
        %v775 = vadd.f32 %v761, 1e-12
        %v776 = vadd.f32 %v764, 1e-12
        %v777 = vadd.f32 %v767, 1e-12
        %v778 = vadd.f32 %v770, 1e-12
        %v779 = vrsqrt.pop %v771
        %v780 = vmul.f32 %v779, %v771
        %v781 = vmul.f32 %v780, %v779
        %v782 = vmul.f32 0.5, %v781
        %v783 = vsub.f32 1.5, %v782
        %v784 = vmul.f32 %v779, %v783
        %vm785 = vweird.f32 %v771
        %vm786 = vweird.f32 %v779
        %vm787 = vmor %vm785, %vm786
        %v788 = vsel %vm787, %v779, %v784
        %v789 = vrsqrt.pop %v772
        %v790 = vmul.f32 %v789, %v772
        %v791 = vmul.f32 %v790, %v789
        %v792 = vmul.f32 0.5, %v791
        %v793 = vsub.f32 1.5, %v792
        %v794 = vmul.f32 %v789, %v793
        %vm795 = vweird.f32 %v772
        %vm796 = vweird.f32 %v789
        %vm797 = vmor %vm795, %vm796
        %v798 = vsel %vm797, %v789, %v794
        %v799 = vrsqrt.pop %v773
        %v800 = vmul.f32 %v799, %v773
        %v801 = vmul.f32 %v800, %v799
        %v802 = vmul.f32 0.5, %v801
        %v803 = vsub.f32 1.5, %v802
        %v804 = vmul.f32 %v799, %v803
        %vm805 = vweird.f32 %v773
        %vm806 = vweird.f32 %v799
        %vm807 = vmor %vm805, %vm806
        %v808 = vsel %vm807, %v799, %v804
        %v809 = vrsqrt.pop %v774
        %v810 = vmul.f32 %v809, %v774
        %v811 = vmul.f32 %v810, %v809
        %v812 = vmul.f32 0.5, %v811
        %v813 = vsub.f32 1.5, %v812
        %v814 = vmul.f32 %v809, %v813
        %vm815 = vweird.f32 %v774
        %vm816 = vweird.f32 %v809
        %vm817 = vmor %vm815, %vm816
        %v818 = vsel %vm817, %v809, %v814
        %v819 = vrsqrt.pop %v775
        %v820 = vmul.f32 %v819, %v775
        %v821 = vmul.f32 %v820, %v819
        %v822 = vmul.f32 0.5, %v821
        %v823 = vsub.f32 1.5, %v822
        %v824 = vmul.f32 %v819, %v823
        %vm825 = vweird.f32 %v775
        %vm826 = vweird.f32 %v819
        %vm827 = vmor %vm825, %vm826
        %v828 = vsel %vm827, %v819, %v824
        %v829 = vrsqrt.pop %v776
        %v830 = vmul.f32 %v829, %v776
        %v831 = vmul.f32 %v830, %v829
        %v832 = vmul.f32 0.5, %v831
        %v833 = vsub.f32 1.5, %v832
        %v834 = vmul.f32 %v829, %v833
        %vm835 = vweird.f32 %v776
        %vm836 = vweird.f32 %v829
        %vm837 = vmor %vm835, %vm836
        %v838 = vsel %vm837, %v829, %v834
        %v839 = vrsqrt.pop %v777
        %v840 = vmul.f32 %v839, %v777
        %v841 = vmul.f32 %v840, %v839
        %v842 = vmul.f32 0.5, %v841
        %v843 = vsub.f32 1.5, %v842
        %v844 = vmul.f32 %v839, %v843
        %vm845 = vweird.f32 %v777
        %vm846 = vweird.f32 %v839
        %vm847 = vmor %vm845, %vm846
        %v848 = vsel %vm847, %v839, %v844
        %v849 = vrsqrt.pop %v778
        %v850 = vmul.f32 %v849, %v778
        %v851 = vmul.f32 %v850, %v849
        %v852 = vmul.f32 0.5, %v851
        %v853 = vsub.f32 1.5, %v852
        %v854 = vmul.f32 %v849, %v853
        %vm855 = vweird.f32 %v778
        %vm856 = vweird.f32 %v849
        %vm857 = vmor %vm855, %vm856
        %v858 = vsel %vm857, %v849, %v854
        %v859 = vmul.f32 %v613, %v788
        %v860 = vmul.f32 %v616, %v798
        %v861 = vmul.f32 %v619, %v808
        %v862 = vmul.f32 %v622, %v818
        %v863 = vmul.f32 %v625, %v828
        %v864 = vmul.f32 %v628, %v838
        %v865 = vmul.f32 %v631, %v848
        %v866 = vmul.f32 %v634, %v858
        %v867 = vmul.f32 %v658, %v658
        %v868 = vmul.f32 %v661, %v661
        %v869 = vmul.f32 %v664, %v664
        %v870 = vmul.f32 %v667, %v667
        %v871 = vmul.f32 %v670, %v670
        %v872 = vmul.f32 %v673, %v673
        %v873 = vmul.f32 %v676, %v676
        %v874 = vmul.f32 %v679, %v679
        %v875 = vsel %vm746, %v867, 0.0
        %876 = vadd.xlane.f32.xlu0 %v875
        %v877 = vpop.xlane.xlu0 %876
        %v878 = vsel %vm746, %v868, 0.0
        %879 = vadd.xlane.f32.xlu0 %v878
        %v880 = vpop.xlane.xlu0 %879
        %v881 = vsel %vm746, %v869, 0.0
        %882 = vadd.xlane.f32.xlu0 %v881
        %v883 = vpop.xlane.xlu0 %882
        %v884 = vsel %vm746, %v870, 0.0
        %885 = vadd.xlane.f32.xlu0 %v884
        %v886 = vpop.xlane.xlu0 %885
        %v887 = vsel %vm746, %v871, 0.0
        %888 = vadd.xlane.f32.xlu0 %v887
        %v889 = vpop.xlane.xlu0 %888
        %v890 = vsel %vm746, %v872, 0.0
        %891 = vadd.xlane.f32.xlu0 %v890
        %v892 = vpop.xlane.xlu0 %891
        %v893 = vsel %vm746, %v873, 0.0
        %894 = vadd.xlane.f32.xlu0 %v893
        %v895 = vpop.xlane.xlu0 %894
        %v896 = vsel %vm746, %v874, 0.0
        %897 = vadd.xlane.f32.xlu0 %v896
        %v898 = vpop.xlane.xlu0 %897
        %v899 = vadd.f32 %v877, 1e-12
        %v900 = vadd.f32 %v880, 1e-12
        %v901 = vadd.f32 %v883, 1e-12
        %v902 = vadd.f32 %v886, 1e-12
        %v903 = vadd.f32 %v889, 1e-12
        %v904 = vadd.f32 %v892, 1e-12
        %v905 = vadd.f32 %v895, 1e-12
        %v906 = vadd.f32 %v898, 1e-12
        %v907 = vrsqrt.pop %v899
        %v908 = vmul.f32 %v907, %v899
        %v909 = vmul.f32 %v908, %v907
        %v910 = vmul.f32 0.5, %v909
        %v911 = vsub.f32 1.5, %v910
        %v912 = vmul.f32 %v907, %v911
        %vm913 = vweird.f32 %v899
        %vm914 = vweird.f32 %v907
        %vm915 = vmor %vm913, %vm914
        %v916 = vsel %vm915, %v907, %v912
        %v917 = vrsqrt.pop %v900
        %v918 = vmul.f32 %v917, %v900
        %v919 = vmul.f32 %v918, %v917
        %v920 = vmul.f32 0.5, %v919
        %v921 = vsub.f32 1.5, %v920
        %v922 = vmul.f32 %v917, %v921
        %vm923 = vweird.f32 %v900
        %vm924 = vweird.f32 %v917
        %vm925 = vmor %vm923, %vm924
        %v926 = vsel %vm925, %v917, %v922
        %v927 = vrsqrt.pop %v901
        %v928 = vmul.f32 %v927, %v901
        %v929 = vmul.f32 %v928, %v927
        %v930 = vmul.f32 0.5, %v929
        %v931 = vsub.f32 1.5, %v930
        %v932 = vmul.f32 %v927, %v931
        %vm933 = vweird.f32 %v901
        %vm934 = vweird.f32 %v927
        %vm935 = vmor %vm933, %vm934
        %v936 = vsel %vm935, %v927, %v932
        %v937 = vrsqrt.pop %v902
        %v938 = vmul.f32 %v937, %v902
        %v939 = vmul.f32 %v938, %v937
        %v940 = vmul.f32 0.5, %v939
        %v941 = vsub.f32 1.5, %v940
        %v942 = vmul.f32 %v937, %v941
        %vm943 = vweird.f32 %v902
        %vm944 = vweird.f32 %v937
        %vm945 = vmor %vm943, %vm944
        %v946 = vsel %vm945, %v937, %v942
        %v947 = vrsqrt.pop %v903
        %v948 = vmul.f32 %v947, %v903
        %v949 = vmul.f32 %v948, %v947
        %v950 = vmul.f32 0.5, %v949
        %v951 = vsub.f32 1.5, %v950
        %v952 = vmul.f32 %v947, %v951
        %vm953 = vweird.f32 %v903
        %vm954 = vweird.f32 %v947
        %vm955 = vmor %vm953, %vm954
        %v956 = vsel %vm955, %v947, %v952
        %v957 = vrsqrt.pop %v904
        %v958 = vmul.f32 %v957, %v904
        %v959 = vmul.f32 %v958, %v957
        %v960 = vmul.f32 0.5, %v959
        %v961 = vsub.f32 1.5, %v960
        %v962 = vmul.f32 %v957, %v961
        %vm963 = vweird.f32 %v904
        %vm964 = vweird.f32 %v957
        %vm965 = vmor %vm963, %vm964
        %v966 = vsel %vm965, %v957, %v962
        %v967 = vrsqrt.pop %v905
        %v968 = vmul.f32 %v967, %v905
        %v969 = vmul.f32 %v968, %v967
        %v970 = vmul.f32 0.5, %v969
        %v971 = vsub.f32 1.5, %v970
        %v972 = vmul.f32 %v967, %v971
        %vm973 = vweird.f32 %v905
        %vm974 = vweird.f32 %v967
        %vm975 = vmor %vm973, %vm974
        %v976 = vsel %vm975, %v967, %v972
        %v977 = vrsqrt.pop %v906
        %v978 = vmul.f32 %v977, %v906
        %v979 = vmul.f32 %v978, %v977
        %v980 = vmul.f32 0.5, %v979
        %v981 = vsub.f32 1.5, %v980
        %v982 = vmul.f32 %v977, %v981
        %vm983 = vweird.f32 %v906
        %vm984 = vweird.f32 %v977
        %vm985 = vmor %vm983, %vm984
        %v986 = vsel %vm985, %v977, %v982
        %v987 = vmul.f32 %v658, %v916
        %v988 = vmul.f32 %v661, %v926
        %v989 = vmul.f32 %v664, %v936
        %v990 = vmul.f32 %v667, %v946
        %v991 = vmul.f32 %v670, %v956
        %v992 = vmul.f32 %v673, %v966
        %v993 = vmul.f32 %v676, %v976
        %v994 = vmul.f32 %v679, %v986
        %v996 = vsel %vm746, %v859, 0
        %v999 = vsel %vm746, %v860, 0
        %v1002 = vsel %vm746, %v987, 0
        %v1005 = vsel %vm746, %v988, 0
        %1007 = vmatpush.xpose.msra.mxu0 0.0
        %1008 = vmatpush.xpose.msra.mxu0 0.0
        %1009 = vmatpush.xpose.msra.mxu0 0.0
        %1010 = vmatpush.xpose.msra.mxu0 0.0
        %1011 = vmatpush.xpose.msra.mxu0 0.0
        %1012 = vmatpush.xpose.msra.mxu0 0.0
        %1013 = vmatpush.xpose.msra.mxu0 0.0
        %1014 = vmatpush.xpose.msra.mxu0 0.0
        %1015 = vmatpush.xpose.msra.mxu0 0.0
        %1016 = vmatpush.xpose.msra.mxu0 0.0
        %1017 = vmatpush.xpose.msra.mxu0 0.0
        %1018 = vmatpush.xpose.msra.mxu0 0.0
        %1019 = vmatpush.xpose.msra.mxu0 0.0
        %1020 = vmatpush.xpose.msra.mxu0 0.0
        %1021 = vmatpush.xpose.msra.mxu0 %v1005
        %1022 = vmatpush.xpose.msra.mxu0 %v1002
        %1023 = vmatmul.f32.gmra.mxu0 %v996
        %v1024 = vpop.f32.mrf.mxu0
        %v1025 = vadd.f32 0.0, %v1024
        %1026 = vmatmul.f32.gmra.mxu0 %v999
        %v1027 = vpop.f32.mrf.mxu0
        %v1028 = vadd.f32 0.0, %v1027
        %1029 = vdwg.mxu0
        %v1031 = vsel %vm746, %v861, 0
        %v1034 = vsel %vm746, %v862, 0
        %v1037 = vsel %vm746, %v989, 0
        %v1040 = vsel %vm746, %v990, 0
        %1042 = vmatpush.xpose.msra.mxu0 0.0
        %1043 = vmatpush.xpose.msra.mxu0 0.0
        %1044 = vmatpush.xpose.msra.mxu0 0.0
        %1045 = vmatpush.xpose.msra.mxu0 0.0
        %1046 = vmatpush.xpose.msra.mxu0 0.0
        %1047 = vmatpush.xpose.msra.mxu0 0.0
        %1048 = vmatpush.xpose.msra.mxu0 0.0
        %1049 = vmatpush.xpose.msra.mxu0 0.0
        %1050 = vmatpush.xpose.msra.mxu0 0.0
        %1051 = vmatpush.xpose.msra.mxu0 0.0
        %1052 = vmatpush.xpose.msra.mxu0 0.0
        %1053 = vmatpush.xpose.msra.mxu0 0.0
        %1054 = vmatpush.xpose.msra.mxu0 0.0
        %1055 = vmatpush.xpose.msra.mxu0 0.0
        %1056 = vmatpush.xpose.msra.mxu0 %v1040
        %1057 = vmatpush.xpose.msra.mxu0 %v1037
        %1058 = vmatmul.f32.gmra.mxu0 %v1031
        %v1059 = vpop.f32.mrf.mxu0
        %v1060 = vadd.f32 0.0, %v1059
        %1061 = vmatmul.f32.gmra.mxu0 %v1034
        %v1062 = vpop.f32.mrf.mxu0
        %v1063 = vadd.f32 0.0, %v1062
        %1064 = vdwg.mxu0
        %v1066 = vsel %vm746, %v863, 0
        %v1069 = vsel %vm746, %v864, 0
        %v1072 = vsel %vm746, %v991, 0
        %v1075 = vsel %vm746, %v992, 0
        %1077 = vmatpush.xpose.msra.mxu0 0.0
        %1078 = vmatpush.xpose.msra.mxu0 0.0
        %1079 = vmatpush.xpose.msra.mxu0 0.0
        %1080 = vmatpush.xpose.msra.mxu0 0.0
        %1081 = vmatpush.xpose.msra.mxu0 0.0
        %1082 = vmatpush.xpose.msra.mxu0 0.0
        %1083 = vmatpush.xpose.msra.mxu0 0.0
        %1084 = vmatpush.xpose.msra.mxu0 0.0
        %1085 = vmatpush.xpose.msra.mxu0 0.0
        %1086 = vmatpush.xpose.msra.mxu0 0.0
        %1087 = vmatpush.xpose.msra.mxu0 0.0
        %1088 = vmatpush.xpose.msra.mxu0 0.0
        %1089 = vmatpush.xpose.msra.mxu0 0.0
        %1090 = vmatpush.xpose.msra.mxu0 0.0
        %1091 = vmatpush.xpose.msra.mxu0 %v1075
        %1092 = vmatpush.xpose.msra.mxu0 %v1072
        %1093 = vmatmul.f32.gmra.mxu0 %v1066
        %v1094 = vpop.f32.mrf.mxu0
        %v1095 = vadd.f32 0.0, %v1094
        %1096 = vmatmul.f32.gmra.mxu0 %v1069
        %v1097 = vpop.f32.mrf.mxu0
        %v1098 = vadd.f32 0.0, %v1097
        %1099 = vdwg.mxu0
        %v1101 = vsel %vm746, %v865, 0
        %v1104 = vsel %vm746, %v866, 0
        %v1107 = vsel %vm746, %v993, 0
        %v1110 = vsel %vm746, %v994, 0
        %1112 = vmatpush.xpose.msra.mxu0 0.0
        %1113 = vmatpush.xpose.msra.mxu0 0.0
        %1114 = vmatpush.xpose.msra.mxu0 0.0
        %1115 = vmatpush.xpose.msra.mxu0 0.0
        %1116 = vmatpush.xpose.msra.mxu0 0.0
        %1117 = vmatpush.xpose.msra.mxu0 0.0
        %1118 = vmatpush.xpose.msra.mxu0 0.0
        %1119 = vmatpush.xpose.msra.mxu0 0.0
        %1120 = vmatpush.xpose.msra.mxu0 0.0
        %1121 = vmatpush.xpose.msra.mxu0 0.0
        %1122 = vmatpush.xpose.msra.mxu0 0.0
        %1123 = vmatpush.xpose.msra.mxu0 0.0
        %1124 = vmatpush.xpose.msra.mxu0 0.0
        %1125 = vmatpush.xpose.msra.mxu0 0.0
        %1126 = vmatpush.xpose.msra.mxu0 %v1110
        %1127 = vmatpush.xpose.msra.mxu0 %v1107
        %1128 = vmatmul.f32.gmra.mxu0 %v1101
        %v1129 = vpop.f32.mrf.mxu0
        %v1130 = vadd.f32 0.0, %v1129
        %1131 = vmatmul.f32.gmra.mxu0 %v1104
        %v1132 = vpop.f32.mrf.mxu0
        %v1133 = vadd.f32 0.0, %v1132
        %1134 = vdwg.mxu0
        %v1135 = vld [vmem:[#allocation10] sm:$0xff]
        %v1136 = vld [vmem:[#allocation10 + $0x8] sm:$0xff]
        %v1137 = vmul.f32 %v1025, %v1135
        %v1138 = vmul.f32 %v1028, %v1136
        %v1139 = vmul.f32 %v1060, %v1135
        %v1140 = vmul.f32 %v1063, %v1136
        %v1141 = vmul.f32 %v1095, %v1135
        %v1142 = vmul.f32 %v1098, %v1136
        %v1143 = vmul.f32 %v1130, %v1135
        %v1144 = vmul.f32 %v1133, %v1136
        %v1145 = vld [vmem:[#allocation11] sm:$0xff]
        %v1146 = vld [vmem:[#allocation11 + $0x8] sm:$0xff]
        %v1147 = vadd.f32 %v1137, %v1145
        %v1148 = vadd.f32 %v1138, %v1146
        %v1149 = vadd.f32 %v1139, %v1145
        %v1150 = vadd.f32 %v1140, %v1146
        %v1151 = vadd.f32 %v1141, %v1145
        %v1152 = vadd.f32 %v1142, %v1146
        %v1153 = vadd.f32 %v1143, %v1145
        %v1154 = vadd.f32 %v1144, %v1146
        %v1155 = vadd.f32 %v1147, %v730
        %v1156 = vadd.f32 %v1148, %v731
        %v1157 = vadd.f32 %v1149, %v732
        %v1158 = vadd.f32 %v1150, %v733
        %v1159 = vadd.f32 %v1151, %v734
        %v1160 = vadd.f32 %v1152, %v735
        %v1161 = vadd.f32 %v1153, %v736
        %v1162 = vadd.f32 %v1154, %v737
        %vm1163 = vcmask 130048
        %v1164 = vsel %vm1163, %v1155, -inf
        %1165 = vmax.xlane.f32.xlu0 %v1164
        %v1166 = vpop.xlane.xlu0 %1165
        %v1167 = vsel %vm1163, %v1156, -inf
        %1168 = vmax.xlane.f32.xlu0 %v1167
        %v1169 = vpop.xlane.xlu0 %1168
        %v1170 = vsel %vm1163, %v1157, -inf
        %1171 = vmax.xlane.f32.xlu0 %v1170
        %v1172 = vpop.xlane.xlu0 %1171
        %v1173 = vsel %vm1163, %v1158, -inf
        %1174 = vmax.xlane.f32.xlu0 %v1173
        %v1175 = vpop.xlane.xlu0 %1174
        %v1176 = vsel %vm1163, %v1159, -inf
        %1177 = vmax.xlane.f32.xlu0 %v1176
        %v1178 = vpop.xlane.xlu0 %1177
        %v1179 = vsel %vm1163, %v1160, -inf
        %1180 = vmax.xlane.f32.xlu0 %v1179
        %v1181 = vpop.xlane.xlu0 %1180
        %v1182 = vsel %vm1163, %v1161, -inf
        %1183 = vmax.xlane.f32.xlu0 %v1182
        %v1184 = vpop.xlane.xlu0 %1183
        %v1185 = vsel %vm1163, %v1162, -inf
        %1186 = vmax.xlane.f32.xlu0 %v1185
        %v1187 = vpop.xlane.xlu0 %1186
        %v1188 = vsub.f32 %v1155, %v1166
        %v1189 = vsub.f32 %v1156, %v1169
        %v1190 = vsub.f32 %v1157, %v1172
        %v1191 = vsub.f32 %v1158, %v1175
        %v1192 = vsub.f32 %v1159, %v1178
        %v1193 = vsub.f32 %v1160, %v1181
        %v1194 = vsub.f32 %v1161, %v1184
        %v1195 = vsub.f32 %v1162, %v1187
        %v1196 = vmul.f32 %v1188, 1.442695
        %v1197 = vpow.pop %v1196
        %v1198 = vmul.f32 %v1189, 1.442695
        %v1199 = vpow.pop %v1198
        %v1200 = vmul.f32 %v1190, 1.442695
        %v1201 = vpow.pop %v1200
        %v1202 = vmul.f32 %v1191, 1.442695
        %v1203 = vpow.pop %v1202
        %v1204 = vmul.f32 %v1192, 1.442695
        %v1205 = vpow.pop %v1204
        %v1206 = vmul.f32 %v1193, 1.442695
        %v1207 = vpow.pop %v1206
        %v1208 = vmul.f32 %v1194, 1.442695
        %v1209 = vpow.pop %v1208
        %v1210 = vmul.f32 %v1195, 1.442695
        %v1211 = vpow.pop %v1210
        %v1212 = vsel %vm1163, %v1197, 0.0
        %1213 = vadd.xlane.f32.xlu0 %v1212
        %v1214 = vpop.xlane.xlu0 %1213
        %v1215 = vsel %vm1163, %v1199, 0.0
        %1216 = vadd.xlane.f32.xlu0 %v1215
        %v1217 = vpop.xlane.xlu0 %1216
        %v1218 = vsel %vm1163, %v1201, 0.0
        %1219 = vadd.xlane.f32.xlu0 %v1218
        %v1220 = vpop.xlane.xlu0 %1219
        %v1221 = vsel %vm1163, %v1203, 0.0
        %1222 = vadd.xlane.f32.xlu0 %v1221
        %v1223 = vpop.xlane.xlu0 %1222
        %v1224 = vsel %vm1163, %v1205, 0.0
        %1225 = vadd.xlane.f32.xlu0 %v1224
        %v1226 = vpop.xlane.xlu0 %1225
        %v1227 = vsel %vm1163, %v1207, 0.0
        %1228 = vadd.xlane.f32.xlu0 %v1227
        %v1229 = vpop.xlane.xlu0 %1228
        %v1230 = vsel %vm1163, %v1209, 0.0
        %1231 = vadd.xlane.f32.xlu0 %v1230
        %v1232 = vpop.xlane.xlu0 %1231
        %v1233 = vsel %vm1163, %v1211, 0.0
        %1234 = vadd.xlane.f32.xlu0 %v1233
        %v1235 = vpop.xlane.xlu0 %1234
        %v1236 = vrcp.pop %v1214
        %v1237 = vmul.f32 %v1214, %v1236
        %v1238 = vsub.f32 1.0, %v1237
        %v1239 = vmul.f32 %v1236, %v1238
        %v1240 = vadd.f32 %v1236, %v1239
        %vm1241 = vweird.f32 %v1214
        %vm1242 = vweird.f32 %v1236
        %vm1243 = vmor %vm1241, %vm1242
        %v1244 = vsel %vm1243, %v1236, %v1240
        %v1245 = vand.u32 2147483647, %v1214
        %vm1246 = vcmp.eq.f32.partialorder %v1245, 8.507059e+37
        %v1247 = vand.u32 %v1214, 2147483648
        %v1248 = vor.u32 1.1754944e-38, %v1247
        %v1249 = vsel %vm1246, %v1248, %v1244
        %v1250 = vmul.f32 %v1197, %v1249
        %v1251 = vrcp.pop %v1217
        %v1252 = vmul.f32 %v1217, %v1251
        %v1253 = vsub.f32 1.0, %v1252
        %v1254 = vmul.f32 %v1251, %v1253
        %v1255 = vadd.f32 %v1251, %v1254
        %vm1256 = vweird.f32 %v1217
        %vm1257 = vweird.f32 %v1251
        %vm1258 = vmor %vm1256, %vm1257
        %v1259 = vsel %vm1258, %v1251, %v1255
        %v1260 = vand.u32 2147483647, %v1217
        %vm1261 = vcmp.eq.f32.partialorder %v1260, 8.507059e+37
        %v1262 = vand.u32 %v1217, 2147483648
        %v1263 = vor.u32 1.1754944e-38, %v1262
        %v1264 = vsel %vm1261, %v1263, %v1259
        %v1265 = vmul.f32 %v1199, %v1264
        %v1266 = vrcp.pop %v1220
        %v1267 = vmul.f32 %v1220, %v1266
        %v1268 = vsub.f32 1.0, %v1267
        %v1269 = vmul.f32 %v1266, %v1268
        %v1270 = vadd.f32 %v1266, %v1269
        %vm1271 = vweird.f32 %v1220
        %vm1272 = vweird.f32 %v1266
        %vm1273 = vmor %vm1271, %vm1272
        %v1274 = vsel %vm1273, %v1266, %v1270
        %v1275 = vand.u32 2147483647, %v1220
        %vm1276 = vcmp.eq.f32.partialorder %v1275, 8.507059e+37
        %v1277 = vand.u32 %v1220, 2147483648
        %v1278 = vor.u32 1.1754944e-38, %v1277
        %v1279 = vsel %vm1276, %v1278, %v1274
        %v1280 = vmul.f32 %v1201, %v1279
        %v1281 = vrcp.pop %v1223
        %v1282 = vmul.f32 %v1223, %v1281
        %v1283 = vsub.f32 1.0, %v1282
        %v1284 = vmul.f32 %v1281, %v1283
        %v1285 = vadd.f32 %v1281, %v1284
        %vm1286 = vweird.f32 %v1223
        %vm1287 = vweird.f32 %v1281
        %vm1288 = vmor %vm1286, %vm1287
        %v1289 = vsel %vm1288, %v1281, %v1285
        %v1290 = vand.u32 2147483647, %v1223
        %vm1291 = vcmp.eq.f32.partialorder %v1290, 8.507059e+37
        %v1292 = vand.u32 %v1223, 2147483648
        %v1293 = vor.u32 1.1754944e-38, %v1292
        %v1294 = vsel %vm1291, %v1293, %v1289
        %v1295 = vmul.f32 %v1203, %v1294
        %v1296 = vrcp.pop %v1226
        %v1297 = vmul.f32 %v1226, %v1296
        %v1298 = vsub.f32 1.0, %v1297
        %v1299 = vmul.f32 %v1296, %v1298
        %v1300 = vadd.f32 %v1296, %v1299
        %vm1301 = vweird.f32 %v1226
        %vm1302 = vweird.f32 %v1296
        %vm1303 = vmor %vm1301, %vm1302
        %v1304 = vsel %vm1303, %v1296, %v1300
        %v1305 = vand.u32 2147483647, %v1226
        %vm1306 = vcmp.eq.f32.partialorder %v1305, 8.507059e+37
        %v1307 = vand.u32 %v1226, 2147483648
        %v1308 = vor.u32 1.1754944e-38, %v1307
        %v1309 = vsel %vm1306, %v1308, %v1304
        %v1310 = vmul.f32 %v1205, %v1309
        %v1311 = vrcp.pop %v1229
        %v1312 = vmul.f32 %v1229, %v1311
        %v1313 = vsub.f32 1.0, %v1312
        %v1314 = vmul.f32 %v1311, %v1313
        %v1315 = vadd.f32 %v1311, %v1314
        %vm1316 = vweird.f32 %v1229
        %vm1317 = vweird.f32 %v1311
        %vm1318 = vmor %vm1316, %vm1317
        %v1319 = vsel %vm1318, %v1311, %v1315
        %v1320 = vand.u32 2147483647, %v1229
        %vm1321 = vcmp.eq.f32.partialorder %v1320, 8.507059e+37
        %v1322 = vand.u32 %v1229, 2147483648
        %v1323 = vor.u32 1.1754944e-38, %v1322
        %v1324 = vsel %vm1321, %v1323, %v1319
        %v1325 = vmul.f32 %v1207, %v1324
        %v1326 = vrcp.pop %v1232
        %v1327 = vmul.f32 %v1232, %v1326
        %v1328 = vsub.f32 1.0, %v1327
        %v1329 = vmul.f32 %v1326, %v1328
        %v1330 = vadd.f32 %v1326, %v1329
        %vm1331 = vweird.f32 %v1232
        %vm1332 = vweird.f32 %v1326
        %vm1333 = vmor %vm1331, %vm1332
        %v1334 = vsel %vm1333, %v1326, %v1330
        %v1335 = vand.u32 2147483647, %v1232
        %vm1336 = vcmp.eq.f32.partialorder %v1335, 8.507059e+37
        %v1337 = vand.u32 %v1232, 2147483648
        %v1338 = vor.u32 1.1754944e-38, %v1337
        %v1339 = vsel %vm1336, %v1338, %v1334
        %v1340 = vmul.f32 %v1209, %v1339
        %v1341 = vrcp.pop %v1235
        %v1342 = vmul.f32 %v1235, %v1341
        %v1343 = vsub.f32 1.0, %v1342
        %v1344 = vmul.f32 %v1341, %v1343
        %v1345 = vadd.f32 %v1341, %v1344
        %vm1346 = vweird.f32 %v1235
        %vm1347 = vweird.f32 %v1341
        %vm1348 = vmor %vm1346, %vm1347
        %v1349 = vsel %vm1348, %v1341, %v1345
        %v1350 = vand.u32 2147483647, %v1235
        %vm1351 = vcmp.eq.f32.partialorder %v1350, 8.507059e+37
        %v1352 = vand.u32 %v1235, 2147483648
        %v1353 = vor.u32 1.1754944e-38, %v1352
        %v1354 = vsel %vm1351, %v1353, %v1349
        %v1355 = vmul.f32 %v1211, %v1354
        %v1357 = vsel %vm1163, %v1250, 0
        %v1360 = vsel %vm1163, %v1265, 0
        %1362 = vmatpush.msra.mxu0 0.0
        %1363 = vmatpush.msra.mxu0 0.0
        %1364 = vmatpush.msra.mxu0 0.0
        %1365 = vmatpush.msra.mxu0 0.0
        %1366 = vmatpush.msra.mxu0 0.0
        %1367 = vmatpush.msra.mxu0 0.0
        %1368 = vmatpush.msra.mxu0 0.0
        %1369 = vmatpush.msra.mxu0 0.0
        %1370 = vmatpush.msra.mxu0 0.0
        %1371 = vmatpush.msra.mxu0 0.0
        %1372 = vmatpush.msra.mxu0 0.0
        %1373 = vmatpush.msra.mxu0 0.0
        %1374 = vmatpush.msra.mxu0 0.0
        %1375 = vmatpush.msra.mxu0 0.0
        %1376 = vmatpush.msra.mxu0 %v710
        %1377 = vmatpush.msra.mxu0 %v707
        %1378 = vmatmul.f32.gmra.mxu0 %v1357
        %v1379 = vpop.f32.mrf.mxu0
        %v1380 = vadd.f32 0.0, %v1379
        %1381 = vmatmul.f32.gmra.mxu0 %v1360
        %v1382 = vpop.f32.mrf.mxu0
        %v1383 = vadd.f32 0.0, %v1382
        %1384 = vdwg.mxu0
        %v1386 = vsel %vm1163, %v1280, 0
        %v1389 = vsel %vm1163, %v1295, 0
        %1391 = vmatpush.msra.mxu0 0.0
        %1392 = vmatpush.msra.mxu0 0.0
        %1393 = vmatpush.msra.mxu0 0.0
        %1394 = vmatpush.msra.mxu0 0.0
        %1395 = vmatpush.msra.mxu0 0.0
        %1396 = vmatpush.msra.mxu0 0.0
        %1397 = vmatpush.msra.mxu0 0.0
        %1398 = vmatpush.msra.mxu0 0.0
        %1399 = vmatpush.msra.mxu0 0.0
        %1400 = vmatpush.msra.mxu0 0.0
        %1401 = vmatpush.msra.mxu0 0.0
        %1402 = vmatpush.msra.mxu0 0.0
        %1403 = vmatpush.msra.mxu0 0.0
        %1404 = vmatpush.msra.mxu0 0.0
        %1405 = vmatpush.msra.mxu0 %v716
        %1406 = vmatpush.msra.mxu0 %v713
        %1407 = vmatmul.f32.gmra.mxu0 %v1386
        %v1408 = vpop.f32.mrf.mxu0
        %v1409 = vadd.f32 0.0, %v1408
        %1410 = vmatmul.f32.gmra.mxu0 %v1389
        %v1411 = vpop.f32.mrf.mxu0
        %v1412 = vadd.f32 0.0, %v1411
        %1413 = vdwg.mxu0
        %v1415 = vsel %vm1163, %v1310, 0
        %v1418 = vsel %vm1163, %v1325, 0
        %1420 = vmatpush.msra.mxu0 0.0
        %1421 = vmatpush.msra.mxu0 0.0
        %1422 = vmatpush.msra.mxu0 0.0
        %1423 = vmatpush.msra.mxu0 0.0
        %1424 = vmatpush.msra.mxu0 0.0
        %1425 = vmatpush.msra.mxu0 0.0
        %1426 = vmatpush.msra.mxu0 0.0
        %1427 = vmatpush.msra.mxu0 0.0
        %1428 = vmatpush.msra.mxu0 0.0
        %1429 = vmatpush.msra.mxu0 0.0
        %1430 = vmatpush.msra.mxu0 0.0
        %1431 = vmatpush.msra.mxu0 0.0
        %1432 = vmatpush.msra.mxu0 0.0
        %1433 = vmatpush.msra.mxu0 0.0
        %1434 = vmatpush.msra.mxu0 %v722
        %1435 = vmatpush.msra.mxu0 %v719
        %1436 = vmatmul.f32.gmra.mxu0 %v1415
        %v1437 = vpop.f32.mrf.mxu0
        %v1438 = vadd.f32 0.0, %v1437
        %1439 = vmatmul.f32.gmra.mxu0 %v1418
        %v1440 = vpop.f32.mrf.mxu0
        %v1441 = vadd.f32 0.0, %v1440
        %1442 = vdwg.mxu0
        %v1444 = vsel %vm1163, %v1340, 0
        %v1447 = vsel %vm1163, %v1355, 0
        %1449 = vmatpush.msra.mxu0 0.0
        %1450 = vmatpush.msra.mxu0 0.0
        %1451 = vmatpush.msra.mxu0 0.0
        %1452 = vmatpush.msra.mxu0 0.0
        %1453 = vmatpush.msra.mxu0 0.0
        %1454 = vmatpush.msra.mxu0 0.0
        %1455 = vmatpush.msra.mxu0 0.0
        %1456 = vmatpush.msra.mxu0 0.0
        %1457 = vmatpush.msra.mxu0 0.0
        %1458 = vmatpush.msra.mxu0 0.0
        %1459 = vmatpush.msra.mxu0 0.0
        %1460 = vmatpush.msra.mxu0 0.0
        %1461 = vmatpush.msra.mxu0 0.0
        %1462 = vmatpush.msra.mxu0 0.0
        %1463 = vmatpush.msra.mxu0 %v728
        %1464 = vmatpush.msra.mxu0 %v725
        %1465 = vmatmul.f32.gmra.mxu0 %v1444
        %v1466 = vpop.f32.mrf.mxu0
        %v1467 = vadd.f32 0.0, %v1466
        %1468 = vmatmul.f32.gmra.mxu0 %v1447
        %v1469 = vpop.f32.mrf.mxu0
        %v1470 = vadd.f32 0.0, %v1469
        %1471 = vdwg.mxu0
        %1480 = vrot.lane.b32.xlu0 %v738, 120
        %v1481 = vpop.permute.xlu0 %1480
        %1482 = vrot.lane.b32.xlu0 %v739, 120
        %v1483 = vpop.permute.xlu0 %1482
        %1484 = vrot.lane.b32.xlu0 %v740, 120
        %v1485 = vpop.permute.xlu0 %1484
        %1486 = vrot.lane.b32.xlu0 %v741, 120
        %v1487 = vpop.permute.xlu0 %1486
        %1488 = vrot.lane.b32.xlu0 %v742, 120
        %v1489 = vpop.permute.xlu0 %1488
        %1490 = vrot.lane.b32.xlu0 %v743, 120
        %v1491 = vpop.permute.xlu0 %1490
        %1492 = vrot.lane.b32.xlu0 %v744, 120
        %v1493 = vpop.permute.xlu0 %1492
        %1494 = vrot.lane.b32.xlu0 %v745, 120
        %v1495 = vpop.permute.xlu0 %1494
        %v1504 = vsel %vm746, %v1481, 0.0
        %1505 = vadd.xlane.f32.xlu0 %v1504
        %v1506 = vpop.xlane.xlu0 %1505
        %v1507 = vsel %vm746, %v1483, 0.0
        %1508 = vadd.xlane.f32.xlu0 %v1507
        %v1509 = vpop.xlane.xlu0 %1508
        %v1510 = vsel %vm746, %v1485, 0.0
        %1511 = vadd.xlane.f32.xlu0 %v1510
        %v1512 = vpop.xlane.xlu0 %1511
        %v1513 = vsel %vm746, %v1487, 0.0
        %1514 = vadd.xlane.f32.xlu0 %v1513
        %v1515 = vpop.xlane.xlu0 %1514
        %v1516 = vsel %vm746, %v1489, 0.0
        %1517 = vadd.xlane.f32.xlu0 %v1516
        %v1518 = vpop.xlane.xlu0 %1517
        %v1519 = vsel %vm746, %v1491, 0.0
        %1520 = vadd.xlane.f32.xlu0 %v1519
        %v1521 = vpop.xlane.xlu0 %1520
        %v1522 = vsel %vm746, %v1493, 0.0
        %1523 = vadd.xlane.f32.xlu0 %v1522
        %v1524 = vpop.xlane.xlu0 %1523
        %v1525 = vsel %vm746, %v1495, 0.0
        %1526 = vadd.xlane.f32.xlu0 %v1525
        %v1527 = vpop.xlane.xlu0 %1526
        %v1528 = vadd.f32 %v1506, 1e-12
        %v1529 = vadd.f32 %v1509, 1e-12
        %v1530 = vadd.f32 %v1512, 1e-12
        %v1531 = vadd.f32 %v1515, 1e-12
        %v1532 = vadd.f32 %v1518, 1e-12
        %v1533 = vadd.f32 %v1521, 1e-12
        %v1534 = vadd.f32 %v1524, 1e-12
        %v1535 = vadd.f32 %v1527, 1e-12
        %v1536 = vrsqrt.pop %v1528
        %v1537 = vmul.f32 %v1536, %v1528
        %v1538 = vmul.f32 %v1537, %v1536
        %v1539 = vmul.f32 0.5, %v1538
        %v1540 = vsub.f32 1.5, %v1539
        %v1541 = vmul.f32 %v1536, %v1540
        %vm1542 = vweird.f32 %v1528
        %vm1543 = vweird.f32 %v1536
        %vm1544 = vmor %vm1542, %vm1543
        %v1545 = vsel %vm1544, %v1536, %v1541
        %v1546 = vrsqrt.pop %v1529
        %v1547 = vmul.f32 %v1546, %v1529
        %v1548 = vmul.f32 %v1547, %v1546
        %v1549 = vmul.f32 0.5, %v1548
        %v1550 = vsub.f32 1.5, %v1549
        %v1551 = vmul.f32 %v1546, %v1550
        %vm1552 = vweird.f32 %v1529
        %vm1553 = vweird.f32 %v1546
        %vm1554 = vmor %vm1552, %vm1553
        %v1555 = vsel %vm1554, %v1546, %v1551
        %v1556 = vrsqrt.pop %v1530
        %v1557 = vmul.f32 %v1556, %v1530
        %v1558 = vmul.f32 %v1557, %v1556
        %v1559 = vmul.f32 0.5, %v1558
        %v1560 = vsub.f32 1.5, %v1559
        %v1561 = vmul.f32 %v1556, %v1560
        %vm1562 = vweird.f32 %v1530
        %vm1563 = vweird.f32 %v1556
        %vm1564 = vmor %vm1562, %vm1563
        %v1565 = vsel %vm1564, %v1556, %v1561
        %v1566 = vrsqrt.pop %v1531
        %v1567 = vmul.f32 %v1566, %v1531
        %v1568 = vmul.f32 %v1567, %v1566
        %v1569 = vmul.f32 0.5, %v1568
        %v1570 = vsub.f32 1.5, %v1569
        %v1571 = vmul.f32 %v1566, %v1570
        %vm1572 = vweird.f32 %v1531
        %vm1573 = vweird.f32 %v1566
        %vm1574 = vmor %vm1572, %vm1573
        %v1575 = vsel %vm1574, %v1566, %v1571
        %v1576 = vrsqrt.pop %v1532
        %v1577 = vmul.f32 %v1576, %v1532
        %v1578 = vmul.f32 %v1577, %v1576
        %v1579 = vmul.f32 0.5, %v1578
        %v1580 = vsub.f32 1.5, %v1579
        %v1581 = vmul.f32 %v1576, %v1580
        %vm1582 = vweird.f32 %v1532
        %vm1583 = vweird.f32 %v1576
        %vm1584 = vmor %vm1582, %vm1583
        %v1585 = vsel %vm1584, %v1576, %v1581
        %v1586 = vrsqrt.pop %v1533
        %v1587 = vmul.f32 %v1586, %v1533
        %v1588 = vmul.f32 %v1587, %v1586
        %v1589 = vmul.f32 0.5, %v1588
        %v1590 = vsub.f32 1.5, %v1589
        %v1591 = vmul.f32 %v1586, %v1590
        %vm1592 = vweird.f32 %v1533
        %vm1593 = vweird.f32 %v1586
        %vm1594 = vmor %vm1592, %vm1593
        %v1595 = vsel %vm1594, %v1586, %v1591
        %v1596 = vrsqrt.pop %v1534
        %v1597 = vmul.f32 %v1596, %v1534
        %v1598 = vmul.f32 %v1597, %v1596
        %v1599 = vmul.f32 0.5, %v1598
        %v1600 = vsub.f32 1.5, %v1599
        %v1601 = vmul.f32 %v1596, %v1600
        %vm1602 = vweird.f32 %v1534
        %vm1603 = vweird.f32 %v1596
        %vm1604 = vmor %vm1602, %vm1603
        %v1605 = vsel %vm1604, %v1596, %v1601
        %v1606 = vrsqrt.pop %v1535
        %v1607 = vmul.f32 %v1606, %v1535
        %v1608 = vmul.f32 %v1607, %v1606
        %v1609 = vmul.f32 0.5, %v1608
        %v1610 = vsub.f32 1.5, %v1609
        %v1611 = vmul.f32 %v1606, %v1610
        %vm1612 = vweird.f32 %v1535
        %vm1613 = vweird.f32 %v1606
        %vm1614 = vmor %vm1612, %vm1613
        %v1615 = vsel %vm1614, %v1606, %v1611
        %v1616 = vmul.f32 %v613, %v1545
        %v1617 = vmul.f32 %v616, %v1555
        %v1618 = vmul.f32 %v619, %v1565
        %v1619 = vmul.f32 %v622, %v1575
        %v1620 = vmul.f32 %v625, %v1585
        %v1621 = vmul.f32 %v628, %v1595
        %v1622 = vmul.f32 %v631, %v1605
        %v1623 = vmul.f32 %v634, %v1615
        %1632 = vrot.lane.b32.xlu0 %v867, 120
        %v1633 = vpop.permute.xlu0 %1632
        %1634 = vrot.lane.b32.xlu0 %v868, 120
        %v1635 = vpop.permute.xlu0 %1634
        %1636 = vrot.lane.b32.xlu0 %v869, 120
        %v1637 = vpop.permute.xlu0 %1636
        %1638 = vrot.lane.b32.xlu0 %v870, 120
        %v1639 = vpop.permute.xlu0 %1638
        %1640 = vrot.lane.b32.xlu0 %v871, 120
        %v1641 = vpop.permute.xlu0 %1640
        %1642 = vrot.lane.b32.xlu0 %v872, 120
        %v1643 = vpop.permute.xlu0 %1642
        %1644 = vrot.lane.b32.xlu0 %v873, 120
        %v1645 = vpop.permute.xlu0 %1644
        %1646 = vrot.lane.b32.xlu0 %v874, 120
        %v1647 = vpop.permute.xlu0 %1646
        %v1656 = vsel %vm746, %v1633, 0.0
        %1657 = vadd.xlane.f32.xlu0 %v1656
        %v1658 = vpop.xlane.xlu0 %1657
        %v1659 = vsel %vm746, %v1635, 0.0
        %1660 = vadd.xlane.f32.xlu0 %v1659
        %v1661 = vpop.xlane.xlu0 %1660
        %v1662 = vsel %vm746, %v1637, 0.0
        %1663 = vadd.xlane.f32.xlu0 %v1662
        %v1664 = vpop.xlane.xlu0 %1663
        %v1665 = vsel %vm746, %v1639, 0.0
        %1666 = vadd.xlane.f32.xlu0 %v1665
        %v1667 = vpop.xlane.xlu0 %1666
        %v1668 = vsel %vm746, %v1641, 0.0
        %1669 = vadd.xlane.f32.xlu0 %v1668
        %v1670 = vpop.xlane.xlu0 %1669
        %v1671 = vsel %vm746, %v1643, 0.0
        %1672 = vadd.xlane.f32.xlu0 %v1671
        %v1673 = vpop.xlane.xlu0 %1672
        %v1674 = vsel %vm746, %v1645, 0.0
        %1675 = vadd.xlane.f32.xlu0 %v1674
        %v1676 = vpop.xlane.xlu0 %1675
        %v1677 = vsel %vm746, %v1647, 0.0
        %1678 = vadd.xlane.f32.xlu0 %v1677
        %v1679 = vpop.xlane.xlu0 %1678
        %v1680 = vadd.f32 %v1658, 1e-12
        %v1681 = vadd.f32 %v1661, 1e-12
        %v1682 = vadd.f32 %v1664, 1e-12
        %v1683 = vadd.f32 %v1667, 1e-12
        %v1684 = vadd.f32 %v1670, 1e-12
        %v1685 = vadd.f32 %v1673, 1e-12
        %v1686 = vadd.f32 %v1676, 1e-12
        %v1687 = vadd.f32 %v1679, 1e-12
        %v1688 = vrsqrt.pop %v1680
        %v1689 = vmul.f32 %v1688, %v1680
        %v1690 = vmul.f32 %v1689, %v1688
        %v1691 = vmul.f32 0.5, %v1690
        %v1692 = vsub.f32 1.5, %v1691
        %v1693 = vmul.f32 %v1688, %v1692
        %vm1694 = vweird.f32 %v1680
        %vm1695 = vweird.f32 %v1688
        %vm1696 = vmor %vm1694, %vm1695
        %v1697 = vsel %vm1696, %v1688, %v1693
        %v1698 = vrsqrt.pop %v1681
        %v1699 = vmul.f32 %v1698, %v1681
        %v1700 = vmul.f32 %v1699, %v1698
        %v1701 = vmul.f32 0.5, %v1700
        %v1702 = vsub.f32 1.5, %v1701
        %v1703 = vmul.f32 %v1698, %v1702
        %vm1704 = vweird.f32 %v1681
        %vm1705 = vweird.f32 %v1698
        %vm1706 = vmor %vm1704, %vm1705
        %v1707 = vsel %vm1706, %v1698, %v1703
        %v1708 = vrsqrt.pop %v1682
        %v1709 = vmul.f32 %v1708, %v1682
        %v1710 = vmul.f32 %v1709, %v1708
        %v1711 = vmul.f32 0.5, %v1710
        %v1712 = vsub.f32 1.5, %v1711
        %v1713 = vmul.f32 %v1708, %v1712
        %vm1714 = vweird.f32 %v1682
        %vm1715 = vweird.f32 %v1708
        %vm1716 = vmor %vm1714, %vm1715
        %v1717 = vsel %vm1716, %v1708, %v1713
        %v1718 = vrsqrt.pop %v1683
        %v1719 = vmul.f32 %v1718, %v1683
        %v1720 = vmul.f32 %v1719, %v1718
        %v1721 = vmul.f32 0.5, %v1720
        %v1722 = vsub.f32 1.5, %v1721
        %v1723 = vmul.f32 %v1718, %v1722
        %vm1724 = vweird.f32 %v1683
        %vm1725 = vweird.f32 %v1718
        %vm1726 = vmor %vm1724, %vm1725
        %v1727 = vsel %vm1726, %v1718, %v1723
        %v1728 = vrsqrt.pop %v1684
        %v1729 = vmul.f32 %v1728, %v1684
        %v1730 = vmul.f32 %v1729, %v1728
        %v1731 = vmul.f32 0.5, %v1730
        %v1732 = vsub.f32 1.5, %v1731
        %v1733 = vmul.f32 %v1728, %v1732
        %vm1734 = vweird.f32 %v1684
        %vm1735 = vweird.f32 %v1728
        %vm1736 = vmor %vm1734, %vm1735
        %v1737 = vsel %vm1736, %v1728, %v1733
        %v1738 = vrsqrt.pop %v1685
        %v1739 = vmul.f32 %v1738, %v1685
        %v1740 = vmul.f32 %v1739, %v1738
        %v1741 = vmul.f32 0.5, %v1740
        %v1742 = vsub.f32 1.5, %v1741
        %v1743 = vmul.f32 %v1738, %v1742
        %vm1744 = vweird.f32 %v1685
        %vm1745 = vweird.f32 %v1738
        %vm1746 = vmor %vm1744, %vm1745
        %v1747 = vsel %vm1746, %v1738, %v1743
        %v1748 = vrsqrt.pop %v1686
        %v1749 = vmul.f32 %v1748, %v1686
        %v1750 = vmul.f32 %v1749, %v1748
        %v1751 = vmul.f32 0.5, %v1750
        %v1752 = vsub.f32 1.5, %v1751
        %v1753 = vmul.f32 %v1748, %v1752
        %vm1754 = vweird.f32 %v1686
        %vm1755 = vweird.f32 %v1748
        %vm1756 = vmor %vm1754, %vm1755
        %v1757 = vsel %vm1756, %v1748, %v1753
        %v1758 = vrsqrt.pop %v1687
        %v1759 = vmul.f32 %v1758, %v1687
        %v1760 = vmul.f32 %v1759, %v1758
        %v1761 = vmul.f32 0.5, %v1760
        %v1762 = vsub.f32 1.5, %v1761
        %v1763 = vmul.f32 %v1758, %v1762
        %vm1764 = vweird.f32 %v1687
        %vm1765 = vweird.f32 %v1758
        %vm1766 = vmor %vm1764, %vm1765
        %v1767 = vsel %vm1766, %v1758, %v1763
        %v1768 = vmul.f32 %v658, %v1697
        %v1769 = vmul.f32 %v661, %v1707
        %v1770 = vmul.f32 %v664, %v1717
        %v1771 = vmul.f32 %v667, %v1727
        %v1772 = vmul.f32 %v670, %v1737
        %v1773 = vmul.f32 %v673, %v1747
        %v1774 = vmul.f32 %v676, %v1757
        %v1775 = vmul.f32 %v679, %v1767
        %1778 = vrot.lane.b32.xlu0 %v1616, 120
        %v1779 = vpop.permute.xlu0 %1778
        %1780 = vrot.lane.b32.xlu0 %v1617, 120
        %v1781 = vpop.permute.xlu0 %1780
        %1784 = vrot.lane.b32.xlu0 %v1768, 120
        %v1785 = vpop.permute.xlu0 %1784
        %1786 = vrot.lane.b32.xlu0 %v1769, 120
        %v1787 = vpop.permute.xlu0 %1786
        %v1788 = vsel %vm746, %v1779, 0
        %v1790 = vsel %vm746, %v1781, 0
        %v1792 = vsel %vm746, %v1785, 0
        %v1794 = vsel %vm746, %v1787, 0
        %1796 = vmatpush.xpose.msra.mxu0 0.0
        %1797 = vmatpush.xpose.msra.mxu0 0.0
        %1798 = vmatpush.xpose.msra.mxu0 0.0
        %1799 = vmatpush.xpose.msra.mxu0 0.0
        %1800 = vmatpush.xpose.msra.mxu0 0.0
        %1801 = vmatpush.xpose.msra.mxu0 0.0
        %1802 = vmatpush.xpose.msra.mxu0 0.0
        %1803 = vmatpush.xpose.msra.mxu0 0.0
        %1804 = vmatpush.xpose.msra.mxu0 0.0
        %1805 = vmatpush.xpose.msra.mxu0 0.0
        %1806 = vmatpush.xpose.msra.mxu0 0.0
        %1807 = vmatpush.xpose.msra.mxu0 0.0
        %1808 = vmatpush.xpose.msra.mxu0 0.0
        %1809 = vmatpush.xpose.msra.mxu0 0.0
        %1810 = vmatpush.xpose.msra.mxu0 %v1794
        %1811 = vmatpush.xpose.msra.mxu0 %v1792
        %1812 = vmatmul.f32.gmra.mxu0 %v1788
        %v1813 = vpop.f32.mrf.mxu0
        %v1814 = vadd.f32 0.0, %v1813
        %1815 = vmatmul.f32.gmra.mxu0 %v1790
        %v1816 = vpop.f32.mrf.mxu0
        %v1817 = vadd.f32 0.0, %v1816
        %1818 = vdwg.mxu0
        %1821 = vrot.lane.b32.xlu0 %v1618, 120
        %v1822 = vpop.permute.xlu0 %1821
        %1823 = vrot.lane.b32.xlu0 %v1619, 120
        %v1824 = vpop.permute.xlu0 %1823
        %1827 = vrot.lane.b32.xlu0 %v1770, 120
        %v1828 = vpop.permute.xlu0 %1827
        %1829 = vrot.lane.b32.xlu0 %v1771, 120
        %v1830 = vpop.permute.xlu0 %1829
        %v1831 = vsel %vm746, %v1822, 0
        %v1833 = vsel %vm746, %v1824, 0
        %v1835 = vsel %vm746, %v1828, 0
        %v1837 = vsel %vm746, %v1830, 0
        %1839 = vmatpush.xpose.msra.mxu0 0.0
        %1840 = vmatpush.xpose.msra.mxu0 0.0
        %1841 = vmatpush.xpose.msra.mxu0 0.0
        %1842 = vmatpush.xpose.msra.mxu0 0.0
        %1843 = vmatpush.xpose.msra.mxu0 0.0
        %1844 = vmatpush.xpose.msra.mxu0 0.0
        %1845 = vmatpush.xpose.msra.mxu0 0.0
        %1846 = vmatpush.xpose.msra.mxu0 0.0
        %1847 = vmatpush.xpose.msra.mxu0 0.0
        %1848 = vmatpush.xpose.msra.mxu0 0.0
        %1849 = vmatpush.xpose.msra.mxu0 0.0
        %1850 = vmatpush.xpose.msra.mxu0 0.0
        %1851 = vmatpush.xpose.msra.mxu0 0.0
        %1852 = vmatpush.xpose.msra.mxu0 0.0
        %1853 = vmatpush.xpose.msra.mxu0 %v1837
        %1854 = vmatpush.xpose.msra.mxu0 %v1835
        %1855 = vmatmul.f32.gmra.mxu0 %v1831
        %v1856 = vpop.f32.mrf.mxu0
        %v1857 = vadd.f32 0.0, %v1856
        %1858 = vmatmul.f32.gmra.mxu0 %v1833
        %v1859 = vpop.f32.mrf.mxu0
        %v1860 = vadd.f32 0.0, %v1859
        %1861 = vdwg.mxu0
        %1864 = vrot.lane.b32.xlu0 %v1620, 120
        %v1865 = vpop.permute.xlu0 %1864
        %1866 = vrot.lane.b32.xlu0 %v1621, 120
        %v1867 = vpop.permute.xlu0 %1866
        %1870 = vrot.lane.b32.xlu0 %v1772, 120
        %v1871 = vpop.permute.xlu0 %1870
        %1872 = vrot.lane.b32.xlu0 %v1773, 120
        %v1873 = vpop.permute.xlu0 %1872
        %v1874 = vsel %vm746, %v1865, 0
        %v1876 = vsel %vm746, %v1867, 0
        %v1878 = vsel %vm746, %v1871, 0
        %v1880 = vsel %vm746, %v1873, 0
        %1882 = vmatpush.xpose.msra.mxu0 0.0
        %1883 = vmatpush.xpose.msra.mxu0 0.0
        %1884 = vmatpush.xpose.msra.mxu0 0.0
        %1885 = vmatpush.xpose.msra.mxu0 0.0
        %1886 = vmatpush.xpose.msra.mxu0 0.0
        %1887 = vmatpush.xpose.msra.mxu0 0.0
        %1888 = vmatpush.xpose.msra.mxu0 0.0
        %1889 = vmatpush.xpose.msra.mxu0 0.0
        %1890 = vmatpush.xpose.msra.mxu0 0.0
        %1891 = vmatpush.xpose.msra.mxu0 0.0
        %1892 = vmatpush.xpose.msra.mxu0 0.0
        %1893 = vmatpush.xpose.msra.mxu0 0.0
        %1894 = vmatpush.xpose.msra.mxu0 0.0
        %1895 = vmatpush.xpose.msra.mxu0 0.0
        %1896 = vmatpush.xpose.msra.mxu0 %v1880
        %1897 = vmatpush.xpose.msra.mxu0 %v1878
        %1898 = vmatmul.f32.gmra.mxu0 %v1874
        %v1899 = vpop.f32.mrf.mxu0
        %v1900 = vadd.f32 0.0, %v1899
        %1901 = vmatmul.f32.gmra.mxu0 %v1876
        %v1902 = vpop.f32.mrf.mxu0
        %v1903 = vadd.f32 0.0, %v1902
        %1904 = vdwg.mxu0
        %1907 = vrot.lane.b32.xlu0 %v1622, 120
        %v1908 = vpop.permute.xlu0 %1907
        %1909 = vrot.lane.b32.xlu0 %v1623, 120
        %v1910 = vpop.permute.xlu0 %1909
        %1913 = vrot.lane.b32.xlu0 %v1774, 120
        %v1914 = vpop.permute.xlu0 %1913
        %1915 = vrot.lane.b32.xlu0 %v1775, 120
        %v1916 = vpop.permute.xlu0 %1915
        %v1917 = vsel %vm746, %v1908, 0
        %v1919 = vsel %vm746, %v1910, 0
        %v1921 = vsel %vm746, %v1914, 0
        %v1923 = vsel %vm746, %v1916, 0
        %1925 = vmatpush.xpose.msra.mxu0 0.0
        %1926 = vmatpush.xpose.msra.mxu0 0.0
        %1927 = vmatpush.xpose.msra.mxu0 0.0
        %1928 = vmatpush.xpose.msra.mxu0 0.0
        %1929 = vmatpush.xpose.msra.mxu0 0.0
        %1930 = vmatpush.xpose.msra.mxu0 0.0
        %1931 = vmatpush.xpose.msra.mxu0 0.0
        %1932 = vmatpush.xpose.msra.mxu0 0.0
        %1933 = vmatpush.xpose.msra.mxu0 0.0
        %1934 = vmatpush.xpose.msra.mxu0 0.0
        %1935 = vmatpush.xpose.msra.mxu0 0.0
        %1936 = vmatpush.xpose.msra.mxu0 0.0
        %1937 = vmatpush.xpose.msra.mxu0 0.0
        %1938 = vmatpush.xpose.msra.mxu0 0.0
        %1939 = vmatpush.xpose.msra.mxu0 %v1923
        %1940 = vmatpush.xpose.msra.mxu0 %v1921
        %1941 = vmatmul.f32.gmra.mxu0 %v1917
        %v1942 = vpop.f32.mrf.mxu0
        %v1943 = vadd.f32 0.0, %v1942
        %1944 = vmatmul.f32.gmra.mxu0 %v1919
        %v1945 = vpop.f32.mrf.mxu0
        %v1946 = vadd.f32 0.0, %v1945
        %1947 = vdwg.mxu0
        %s1948 = scalar_lea.vmem [#allocation10], 16
        %v1949 = vld [vmem:[%s1948] sm:$0xff]
        %v1950 = vld [vmem:[%s1948 + $0x8] sm:$0xff]
        %v1951 = vmul.f32 %v1814, %v1949
        %v1952 = vmul.f32 %v1817, %v1950
        %v1953 = vmul.f32 %v1857, %v1949
        %v1954 = vmul.f32 %v1860, %v1950
        %v1955 = vmul.f32 %v1900, %v1949
        %v1956 = vmul.f32 %v1903, %v1950
        %v1957 = vmul.f32 %v1943, %v1949
        %v1958 = vmul.f32 %v1946, %v1950
        %s1959 = scalar_lea.vmem [#allocation11], 16
        %v1960 = vld [vmem:[%s1959] sm:$0xff]
        %v1961 = vld [vmem:[%s1959 + $0x8] sm:$0xff]
        %v1962 = vadd.f32 %v1951, %v1960
        %v1963 = vadd.f32 %v1952, %v1961
        %v1964 = vadd.f32 %v1953, %v1960
        %v1965 = vadd.f32 %v1954, %v1961
        %v1966 = vadd.f32 %v1955, %v1960
        %v1967 = vadd.f32 %v1956, %v1961
        %v1968 = vadd.f32 %v1957, %v1960
        %v1969 = vadd.f32 %v1958, %v1961
        %v1970 = vadd.f32 %v1962, %v730
        %v1971 = vadd.f32 %v1963, %v731
        %v1972 = vadd.f32 %v1964, %v732
        %v1973 = vadd.f32 %v1965, %v733
        %v1974 = vadd.f32 %v1966, %v734
        %v1975 = vadd.f32 %v1967, %v735
        %v1976 = vadd.f32 %v1968, %v736
        %v1977 = vadd.f32 %v1969, %v737
        %v1978 = vsel %vm1163, %v1970, -inf
        %1979 = vmax.xlane.f32.xlu0 %v1978
        %v1980 = vpop.xlane.xlu0 %1979
        %v1981 = vsel %vm1163, %v1971, -inf
        %1982 = vmax.xlane.f32.xlu0 %v1981
        %v1983 = vpop.xlane.xlu0 %1982
        %v1984 = vsel %vm1163, %v1972, -inf
        %1985 = vmax.xlane.f32.xlu0 %v1984
        %v1986 = vpop.xlane.xlu0 %1985
        %v1987 = vsel %vm1163, %v1973, -inf
        %1988 = vmax.xlane.f32.xlu0 %v1987
        %v1989 = vpop.xlane.xlu0 %1988
        %v1990 = vsel %vm1163, %v1974, -inf
        %1991 = vmax.xlane.f32.xlu0 %v1990
        %v1992 = vpop.xlane.xlu0 %1991
        %v1993 = vsel %vm1163, %v1975, -inf
        %1994 = vmax.xlane.f32.xlu0 %v1993
        %v1995 = vpop.xlane.xlu0 %1994
        %v1996 = vsel %vm1163, %v1976, -inf
        %1997 = vmax.xlane.f32.xlu0 %v1996
        %v1998 = vpop.xlane.xlu0 %1997
        %v1999 = vsel %vm1163, %v1977, -inf
        %2000 = vmax.xlane.f32.xlu0 %v1999
        %v2001 = vpop.xlane.xlu0 %2000
        %v2002 = vsub.f32 %v1970, %v1980
        %v2003 = vsub.f32 %v1971, %v1983
        %v2004 = vsub.f32 %v1972, %v1986
        %v2005 = vsub.f32 %v1973, %v1989
        %v2006 = vsub.f32 %v1974, %v1992
        %v2007 = vsub.f32 %v1975, %v1995
        %v2008 = vsub.f32 %v1976, %v1998
        %v2009 = vsub.f32 %v1977, %v2001
        %v2010 = vmul.f32 %v2002, 1.442695
        %v2011 = vpow.pop %v2010
        %v2012 = vmul.f32 %v2003, 1.442695
        %v2013 = vpow.pop %v2012
        %v2014 = vmul.f32 %v2004, 1.442695
        %v2015 = vpow.pop %v2014
        %v2016 = vmul.f32 %v2005, 1.442695
        %v2017 = vpow.pop %v2016
        %v2018 = vmul.f32 %v2006, 1.442695
        %v2019 = vpow.pop %v2018
        %v2020 = vmul.f32 %v2007, 1.442695
        %v2021 = vpow.pop %v2020
        %v2022 = vmul.f32 %v2008, 1.442695
        %v2023 = vpow.pop %v2022
        %v2024 = vmul.f32 %v2009, 1.442695
        %v2025 = vpow.pop %v2024
        %v2026 = vsel %vm1163, %v2011, 0.0
        %2027 = vadd.xlane.f32.xlu0 %v2026
        %v2028 = vpop.xlane.xlu0 %2027
        %v2029 = vsel %vm1163, %v2013, 0.0
        %2030 = vadd.xlane.f32.xlu0 %v2029
        %v2031 = vpop.xlane.xlu0 %2030
        %v2032 = vsel %vm1163, %v2015, 0.0
        %2033 = vadd.xlane.f32.xlu0 %v2032
        %v2034 = vpop.xlane.xlu0 %2033
        %v2035 = vsel %vm1163, %v2017, 0.0
        %2036 = vadd.xlane.f32.xlu0 %v2035
        %v2037 = vpop.xlane.xlu0 %2036
        %v2038 = vsel %vm1163, %v2019, 0.0
        %2039 = vadd.xlane.f32.xlu0 %v2038
        %v2040 = vpop.xlane.xlu0 %2039
        %v2041 = vsel %vm1163, %v2021, 0.0
        %2042 = vadd.xlane.f32.xlu0 %v2041
        %v2043 = vpop.xlane.xlu0 %2042
        %v2044 = vsel %vm1163, %v2023, 0.0
        %2045 = vadd.xlane.f32.xlu0 %v2044
        %v2046 = vpop.xlane.xlu0 %2045
        %v2047 = vsel %vm1163, %v2025, 0.0
        %2048 = vadd.xlane.f32.xlu0 %v2047
        %v2049 = vpop.xlane.xlu0 %2048
        %v2050 = vrcp.pop %v2028
        %v2051 = vmul.f32 %v2028, %v2050
        %v2052 = vsub.f32 1.0, %v2051
        %v2053 = vmul.f32 %v2050, %v2052
        %v2054 = vadd.f32 %v2050, %v2053
        %vm2055 = vweird.f32 %v2028
        %vm2056 = vweird.f32 %v2050
        %vm2057 = vmor %vm2055, %vm2056
        %v2058 = vsel %vm2057, %v2050, %v2054
        %v2059 = vand.u32 2147483647, %v2028
        %vm2060 = vcmp.eq.f32.partialorder %v2059, 8.507059e+37
        %v2061 = vand.u32 %v2028, 2147483648
        %v2062 = vor.u32 1.1754944e-38, %v2061
        %v2063 = vsel %vm2060, %v2062, %v2058
        %v2064 = vmul.f32 %v2011, %v2063
        %v2065 = vrcp.pop %v2031
        %v2066 = vmul.f32 %v2031, %v2065
        %v2067 = vsub.f32 1.0, %v2066
        %v2068 = vmul.f32 %v2065, %v2067
        %v2069 = vadd.f32 %v2065, %v2068
        %vm2070 = vweird.f32 %v2031
        %vm2071 = vweird.f32 %v2065
        %vm2072 = vmor %vm2070, %vm2071
        %v2073 = vsel %vm2072, %v2065, %v2069
        %v2074 = vand.u32 2147483647, %v2031
        %vm2075 = vcmp.eq.f32.partialorder %v2074, 8.507059e+37
        %v2076 = vand.u32 %v2031, 2147483648
        %v2077 = vor.u32 1.1754944e-38, %v2076
        %v2078 = vsel %vm2075, %v2077, %v2073
        %v2079 = vmul.f32 %v2013, %v2078
        %v2080 = vrcp.pop %v2034
        %v2081 = vmul.f32 %v2034, %v2080
        %v2082 = vsub.f32 1.0, %v2081
        %v2083 = vmul.f32 %v2080, %v2082
        %v2084 = vadd.f32 %v2080, %v2083
        %vm2085 = vweird.f32 %v2034
        %vm2086 = vweird.f32 %v2080
        %vm2087 = vmor %vm2085, %vm2086
        %v2088 = vsel %vm2087, %v2080, %v2084
        %v2089 = vand.u32 2147483647, %v2034
        %vm2090 = vcmp.eq.f32.partialorder %v2089, 8.507059e+37
        %v2091 = vand.u32 %v2034, 2147483648
        %v2092 = vor.u32 1.1754944e-38, %v2091
        %v2093 = vsel %vm2090, %v2092, %v2088
        %v2094 = vmul.f32 %v2015, %v2093
        %v2095 = vrcp.pop %v2037
        %v2096 = vmul.f32 %v2037, %v2095
        %v2097 = vsub.f32 1.0, %v2096
        %v2098 = vmul.f32 %v2095, %v2097
        %v2099 = vadd.f32 %v2095, %v2098
        %vm2100 = vweird.f32 %v2037
        %vm2101 = vweird.f32 %v2095
        %vm2102 = vmor %vm2100, %vm2101
        %v2103 = vsel %vm2102, %v2095, %v2099
        %v2104 = vand.u32 2147483647, %v2037
        %vm2105 = vcmp.eq.f32.partialorder %v2104, 8.507059e+37
        %v2106 = vand.u32 %v2037, 2147483648
        %v2107 = vor.u32 1.1754944e-38, %v2106
        %v2108 = vsel %vm2105, %v2107, %v2103
        %v2109 = vmul.f32 %v2017, %v2108
        %v2110 = vrcp.pop %v2040
        %v2111 = vmul.f32 %v2040, %v2110
        %v2112 = vsub.f32 1.0, %v2111
        %v2113 = vmul.f32 %v2110, %v2112
        %v2114 = vadd.f32 %v2110, %v2113
        %vm2115 = vweird.f32 %v2040
        %vm2116 = vweird.f32 %v2110
        %vm2117 = vmor %vm2115, %vm2116
        %v2118 = vsel %vm2117, %v2110, %v2114
        %v2119 = vand.u32 2147483647, %v2040
        %vm2120 = vcmp.eq.f32.partialorder %v2119, 8.507059e+37
        %v2121 = vand.u32 %v2040, 2147483648
        %v2122 = vor.u32 1.1754944e-38, %v2121
        %v2123 = vsel %vm2120, %v2122, %v2118
        %v2124 = vmul.f32 %v2019, %v2123
        %v2125 = vrcp.pop %v2043
        %v2126 = vmul.f32 %v2043, %v2125
        %v2127 = vsub.f32 1.0, %v2126
        %v2128 = vmul.f32 %v2125, %v2127
        %v2129 = vadd.f32 %v2125, %v2128
        %vm2130 = vweird.f32 %v2043
        %vm2131 = vweird.f32 %v2125
        %vm2132 = vmor %vm2130, %vm2131
        %v2133 = vsel %vm2132, %v2125, %v2129
        %v2134 = vand.u32 2147483647, %v2043
        %vm2135 = vcmp.eq.f32.partialorder %v2134, 8.507059e+37
        %v2136 = vand.u32 %v2043, 2147483648
        %v2137 = vor.u32 1.1754944e-38, %v2136
        %v2138 = vsel %vm2135, %v2137, %v2133
        %v2139 = vmul.f32 %v2021, %v2138
        %v2140 = vrcp.pop %v2046
        %v2141 = vmul.f32 %v2046, %v2140
        %v2142 = vsub.f32 1.0, %v2141
        %v2143 = vmul.f32 %v2140, %v2142
        %v2144 = vadd.f32 %v2140, %v2143
        %vm2145 = vweird.f32 %v2046
        %vm2146 = vweird.f32 %v2140
        %vm2147 = vmor %vm2145, %vm2146
        %v2148 = vsel %vm2147, %v2140, %v2144
        %v2149 = vand.u32 2147483647, %v2046
        %vm2150 = vcmp.eq.f32.partialorder %v2149, 8.507059e+37
        %v2151 = vand.u32 %v2046, 2147483648
        %v2152 = vor.u32 1.1754944e-38, %v2151
        %v2153 = vsel %vm2150, %v2152, %v2148
        %v2154 = vmul.f32 %v2023, %v2153
        %v2155 = vrcp.pop %v2049
        %v2156 = vmul.f32 %v2049, %v2155
        %v2157 = vsub.f32 1.0, %v2156
        %v2158 = vmul.f32 %v2155, %v2157
        %v2159 = vadd.f32 %v2155, %v2158
        %vm2160 = vweird.f32 %v2049
        %vm2161 = vweird.f32 %v2155
        %vm2162 = vmor %vm2160, %vm2161
        %v2163 = vsel %vm2162, %v2155, %v2159
        %v2164 = vand.u32 2147483647, %v2049
        %vm2165 = vcmp.eq.f32.partialorder %v2164, 8.507059e+37
        %v2166 = vand.u32 %v2049, 2147483648
        %v2167 = vor.u32 1.1754944e-38, %v2166
        %v2168 = vsel %vm2165, %v2167, %v2163
        %v2169 = vmul.f32 %v2025, %v2168
        %2172 = vrot.lane.b32.xlu0 %v707, 120
        %v2173 = vpop.permute.xlu0 %2172
        %2174 = vrot.lane.b32.xlu0 %v710, 120
        %v2175 = vpop.permute.xlu0 %2174
        %v2179 = vsel %vm1163, %v2064, 0
        %v2182 = vsel %vm1163, %v2079, 0
        %2184 = vmatpush.msra.mxu0 0.0
        %2185 = vmatpush.msra.mxu0 0.0
        %2186 = vmatpush.msra.mxu0 0.0
        %2187 = vmatpush.msra.mxu0 0.0
        %2188 = vmatpush.msra.mxu0 0.0
        %2189 = vmatpush.msra.mxu0 0.0
        %2190 = vmatpush.msra.mxu0 0.0
        %2191 = vmatpush.msra.mxu0 0.0
        %2192 = vmatpush.msra.mxu0 0.0
        %2193 = vmatpush.msra.mxu0 0.0
        %2194 = vmatpush.msra.mxu0 0.0
        %2195 = vmatpush.msra.mxu0 0.0
        %2196 = vmatpush.msra.mxu0 0.0
        %2197 = vmatpush.msra.mxu0 0.0
        %2198 = vmatpush.msra.mxu0 %v2175
        %2199 = vmatpush.msra.mxu0 %v2173
        %2200 = vmatmul.f32.gmra.mxu0 %v2179
        %v2201 = vpop.f32.mrf.mxu0
        %v2202 = vadd.f32 0.0, %v2201
        %2203 = vmatmul.f32.gmra.mxu0 %v2182
        %v2204 = vpop.f32.mrf.mxu0
        %v2205 = vadd.f32 0.0, %v2204
        %2206 = vdwg.mxu0
        %2209 = vrot.lane.b32.xlu0 %v713, 120
        %v2210 = vpop.permute.xlu0 %2209
        %2211 = vrot.lane.b32.xlu0 %v716, 120
        %v2212 = vpop.permute.xlu0 %2211
        %v2216 = vsel %vm1163, %v2094, 0
        %v2219 = vsel %vm1163, %v2109, 0
        %2221 = vmatpush.msra.mxu0 0.0
        %2222 = vmatpush.msra.mxu0 0.0
        %2223 = vmatpush.msra.mxu0 0.0
        %2224 = vmatpush.msra.mxu0 0.0
        %2225 = vmatpush.msra.mxu0 0.0
        %2226 = vmatpush.msra.mxu0 0.0
        %2227 = vmatpush.msra.mxu0 0.0
        %2228 = vmatpush.msra.mxu0 0.0
        %2229 = vmatpush.msra.mxu0 0.0
        %2230 = vmatpush.msra.mxu0 0.0
        %2231 = vmatpush.msra.mxu0 0.0
        %2232 = vmatpush.msra.mxu0 0.0
        %2233 = vmatpush.msra.mxu0 0.0
        %2234 = vmatpush.msra.mxu0 0.0
        %2235 = vmatpush.msra.mxu0 %v2212
        %2236 = vmatpush.msra.mxu0 %v2210
        %2237 = vmatmul.f32.gmra.mxu0 %v2216
        %v2238 = vpop.f32.mrf.mxu0
        %v2239 = vadd.f32 0.0, %v2238
        %2240 = vmatmul.f32.gmra.mxu0 %v2219
        %v2241 = vpop.f32.mrf.mxu0
        %v2242 = vadd.f32 0.0, %v2241
        %2243 = vdwg.mxu0
        %2246 = vrot.lane.b32.xlu0 %v719, 120
        %v2247 = vpop.permute.xlu0 %2246
        %2248 = vrot.lane.b32.xlu0 %v722, 120
        %v2249 = vpop.permute.xlu0 %2248
        %v2253 = vsel %vm1163, %v2124, 0
        %v2256 = vsel %vm1163, %v2139, 0
        %2258 = vmatpush.msra.mxu0 0.0
        %2259 = vmatpush.msra.mxu0 0.0
        %2260 = vmatpush.msra.mxu0 0.0
        %2261 = vmatpush.msra.mxu0 0.0
        %2262 = vmatpush.msra.mxu0 0.0
        %2263 = vmatpush.msra.mxu0 0.0
        %2264 = vmatpush.msra.mxu0 0.0
        %2265 = vmatpush.msra.mxu0 0.0
        %2266 = vmatpush.msra.mxu0 0.0
        %2267 = vmatpush.msra.mxu0 0.0
        %2268 = vmatpush.msra.mxu0 0.0
        %2269 = vmatpush.msra.mxu0 0.0
        %2270 = vmatpush.msra.mxu0 0.0
        %2271 = vmatpush.msra.mxu0 0.0
        %2272 = vmatpush.msra.mxu0 %v2249
        %2273 = vmatpush.msra.mxu0 %v2247
        %2274 = vmatmul.f32.gmra.mxu0 %v2253
        %v2275 = vpop.f32.mrf.mxu0
        %v2276 = vadd.f32 0.0, %v2275
        %2277 = vmatmul.f32.gmra.mxu0 %v2256
        %v2278 = vpop.f32.mrf.mxu0
        %v2279 = vadd.f32 0.0, %v2278
        %2280 = vdwg.mxu0
        %2283 = vrot.lane.b32.xlu0 %v725, 120
        %v2284 = vpop.permute.xlu0 %2283
        %2285 = vrot.lane.b32.xlu0 %v728, 120
        %v2286 = vpop.permute.xlu0 %2285
        %v2290 = vsel %vm1163, %v2154, 0
        %v2293 = vsel %vm1163, %v2169, 0
        %2295 = vmatpush.msra.mxu0 0.0
        %2296 = vmatpush.msra.mxu0 0.0
        %2297 = vmatpush.msra.mxu0 0.0
        %2298 = vmatpush.msra.mxu0 0.0
        %2299 = vmatpush.msra.mxu0 0.0
        %2300 = vmatpush.msra.mxu0 0.0
        %2301 = vmatpush.msra.mxu0 0.0
        %2302 = vmatpush.msra.mxu0 0.0
        %2303 = vmatpush.msra.mxu0 0.0
        %2304 = vmatpush.msra.mxu0 0.0
        %2305 = vmatpush.msra.mxu0 0.0
        %2306 = vmatpush.msra.mxu0 0.0
        %2307 = vmatpush.msra.mxu0 0.0
        %2308 = vmatpush.msra.mxu0 0.0
        %2309 = vmatpush.msra.mxu0 %v2286
        %2310 = vmatpush.msra.mxu0 %v2284
        %2311 = vmatmul.f32.gmra.mxu0 %v2290
        %v2312 = vpop.f32.mrf.mxu0
        %v2313 = vadd.f32 0.0, %v2312
        %2314 = vmatmul.f32.gmra.mxu0 %v2293
        %v2315 = vpop.f32.mrf.mxu0
        %v2316 = vadd.f32 0.0, %v2315
        %2317 = vdwg.mxu0
        %2318 = vrot.lane.b32.xlu0 %v738, 112
        %v2319 = vpop.permute.xlu0 %2318
        %2320 = vrot.lane.b32.xlu0 %v739, 112
        %v2321 = vpop.permute.xlu0 %2320
        %2322 = vrot.lane.b32.xlu0 %v740, 112
        %v2323 = vpop.permute.xlu0 %2322
        %2324 = vrot.lane.b32.xlu0 %v741, 112
        %v2325 = vpop.permute.xlu0 %2324
        %2326 = vrot.lane.b32.xlu0 %v742, 112
        %v2327 = vpop.permute.xlu0 %2326
        %2328 = vrot.lane.b32.xlu0 %v743, 112
        %v2329 = vpop.permute.xlu0 %2328
        %2330 = vrot.lane.b32.xlu0 %v744, 112
        %v2331 = vpop.permute.xlu0 %2330
        %2332 = vrot.lane.b32.xlu0 %v745, 112
        %v2333 = vpop.permute.xlu0 %2332
        %v2342 = vsel %vm746, %v2319, 0.0
        %2343 = vadd.xlane.f32.xlu0 %v2342
        %v2344 = vpop.xlane.xlu0 %2343
        %v2345 = vsel %vm746, %v2321, 0.0
        %2346 = vadd.xlane.f32.xlu0 %v2345
        %v2347 = vpop.xlane.xlu0 %2346
        %v2348 = vsel %vm746, %v2323, 0.0
        %2349 = vadd.xlane.f32.xlu0 %v2348
        %v2350 = vpop.xlane.xlu0 %2349
        %v2351 = vsel %vm746, %v2325, 0.0
        %2352 = vadd.xlane.f32.xlu0 %v2351
        %v2353 = vpop.xlane.xlu0 %2352
        %v2354 = vsel %vm746, %v2327, 0.0
        %2355 = vadd.xlane.f32.xlu0 %v2354
        %v2356 = vpop.xlane.xlu0 %2355
        %v2357 = vsel %vm746, %v2329, 0.0
        %2358 = vadd.xlane.f32.xlu0 %v2357
        %v2359 = vpop.xlane.xlu0 %2358
        %v2360 = vsel %vm746, %v2331, 0.0
        %2361 = vadd.xlane.f32.xlu0 %v2360
        %v2362 = vpop.xlane.xlu0 %2361
        %v2363 = vsel %vm746, %v2333, 0.0
        %2364 = vadd.xlane.f32.xlu0 %v2363
        %v2365 = vpop.xlane.xlu0 %2364
        %v2366 = vadd.f32 %v2344, 1e-12
        %v2367 = vadd.f32 %v2347, 1e-12
        %v2368 = vadd.f32 %v2350, 1e-12
        %v2369 = vadd.f32 %v2353, 1e-12
        %v2370 = vadd.f32 %v2356, 1e-12
        %v2371 = vadd.f32 %v2359, 1e-12
        %v2372 = vadd.f32 %v2362, 1e-12
        %v2373 = vadd.f32 %v2365, 1e-12
        %v2374 = vrsqrt.pop %v2366
        %v2375 = vmul.f32 %v2374, %v2366
        %v2376 = vmul.f32 %v2375, %v2374
        %v2377 = vmul.f32 0.5, %v2376
        %v2378 = vsub.f32 1.5, %v2377
        %v2379 = vmul.f32 %v2374, %v2378
        %vm2380 = vweird.f32 %v2366
        %vm2381 = vweird.f32 %v2374
        %vm2382 = vmor %vm2380, %vm2381
        %v2383 = vsel %vm2382, %v2374, %v2379
        %v2384 = vrsqrt.pop %v2367
        %v2385 = vmul.f32 %v2384, %v2367
        %v2386 = vmul.f32 %v2385, %v2384
        %v2387 = vmul.f32 0.5, %v2386
        %v2388 = vsub.f32 1.5, %v2387
        %v2389 = vmul.f32 %v2384, %v2388
        %vm2390 = vweird.f32 %v2367
        %vm2391 = vweird.f32 %v2384
        %vm2392 = vmor %vm2390, %vm2391
        %v2393 = vsel %vm2392, %v2384, %v2389
        %v2394 = vrsqrt.pop %v2368
        %v2395 = vmul.f32 %v2394, %v2368
        %v2396 = vmul.f32 %v2395, %v2394
        %v2397 = vmul.f32 0.5, %v2396
        %v2398 = vsub.f32 1.5, %v2397
        %v2399 = vmul.f32 %v2394, %v2398
        %vm2400 = vweird.f32 %v2368
        %vm2401 = vweird.f32 %v2394
        %vm2402 = vmor %vm2400, %vm2401
        %v2403 = vsel %vm2402, %v2394, %v2399
        %v2404 = vrsqrt.pop %v2369
        %v2405 = vmul.f32 %v2404, %v2369
        %v2406 = vmul.f32 %v2405, %v2404
        %v2407 = vmul.f32 0.5, %v2406
        %v2408 = vsub.f32 1.5, %v2407
        %v2409 = vmul.f32 %v2404, %v2408
        %vm2410 = vweird.f32 %v2369
        %vm2411 = vweird.f32 %v2404
        %vm2412 = vmor %vm2410, %vm2411
        %v2413 = vsel %vm2412, %v2404, %v2409
        %v2414 = vrsqrt.pop %v2370
        %v2415 = vmul.f32 %v2414, %v2370
        %v2416 = vmul.f32 %v2415, %v2414
        %v2417 = vmul.f32 0.5, %v2416
        %v2418 = vsub.f32 1.5, %v2417
        %v2419 = vmul.f32 %v2414, %v2418
        %vm2420 = vweird.f32 %v2370
        %vm2421 = vweird.f32 %v2414
        %vm2422 = vmor %vm2420, %vm2421
        %v2423 = vsel %vm2422, %v2414, %v2419
        %v2424 = vrsqrt.pop %v2371
        %v2425 = vmul.f32 %v2424, %v2371
        %v2426 = vmul.f32 %v2425, %v2424
        %v2427 = vmul.f32 0.5, %v2426
        %v2428 = vsub.f32 1.5, %v2427
        %v2429 = vmul.f32 %v2424, %v2428
        %vm2430 = vweird.f32 %v2371
        %vm2431 = vweird.f32 %v2424
        %vm2432 = vmor %vm2430, %vm2431
        %v2433 = vsel %vm2432, %v2424, %v2429
        %v2434 = vrsqrt.pop %v2372
        %v2435 = vmul.f32 %v2434, %v2372
        %v2436 = vmul.f32 %v2435, %v2434
        %v2437 = vmul.f32 0.5, %v2436
        %v2438 = vsub.f32 1.5, %v2437
        %v2439 = vmul.f32 %v2434, %v2438
        %vm2440 = vweird.f32 %v2372
        %vm2441 = vweird.f32 %v2434
        %vm2442 = vmor %vm2440, %vm2441
        %v2443 = vsel %vm2442, %v2434, %v2439
        %v2444 = vrsqrt.pop %v2373
        %v2445 = vmul.f32 %v2444, %v2373
        %v2446 = vmul.f32 %v2445, %v2444
        %v2447 = vmul.f32 0.5, %v2446
        %v2448 = vsub.f32 1.5, %v2447
        %v2449 = vmul.f32 %v2444, %v2448
        %vm2450 = vweird.f32 %v2373
        %vm2451 = vweird.f32 %v2444
        %vm2452 = vmor %vm2450, %vm2451
        %v2453 = vsel %vm2452, %v2444, %v2449
        %v2454 = vmul.f32 %v613, %v2383
        %v2455 = vmul.f32 %v616, %v2393
        %v2456 = vmul.f32 %v619, %v2403
        %v2457 = vmul.f32 %v622, %v2413
        %v2458 = vmul.f32 %v625, %v2423
        %v2459 = vmul.f32 %v628, %v2433
        %v2460 = vmul.f32 %v631, %v2443
        %v2461 = vmul.f32 %v634, %v2453
        %2462 = vrot.lane.b32.xlu0 %v867, 112
        %v2463 = vpop.permute.xlu0 %2462
        %2464 = vrot.lane.b32.xlu0 %v868, 112
        %v2465 = vpop.permute.xlu0 %2464
        %2466 = vrot.lane.b32.xlu0 %v869, 112
        %v2467 = vpop.permute.xlu0 %2466
        %2468 = vrot.lane.b32.xlu0 %v870, 112
        %v2469 = vpop.permute.xlu0 %2468
        %2470 = vrot.lane.b32.xlu0 %v871, 112
        %v2471 = vpop.permute.xlu0 %2470
        %2472 = vrot.lane.b32.xlu0 %v872, 112
        %v2473 = vpop.permute.xlu0 %2472
        %2474 = vrot.lane.b32.xlu0 %v873, 112
        %v2475 = vpop.permute.xlu0 %2474
        %2476 = vrot.lane.b32.xlu0 %v874, 112
        %v2477 = vpop.permute.xlu0 %2476
        %v2486 = vsel %vm746, %v2463, 0.0
        %2487 = vadd.xlane.f32.xlu0 %v2486
        %v2488 = vpop.xlane.xlu0 %2487
        %v2489 = vsel %vm746, %v2465, 0.0
        %2490 = vadd.xlane.f32.xlu0 %v2489
        %v2491 = vpop.xlane.xlu0 %2490
        %v2492 = vsel %vm746, %v2467, 0.0
        %2493 = vadd.xlane.f32.xlu0 %v2492
        %v2494 = vpop.xlane.xlu0 %2493
        %v2495 = vsel %vm746, %v2469, 0.0
        %2496 = vadd.xlane.f32.xlu0 %v2495
        %v2497 = vpop.xlane.xlu0 %2496
        %v2498 = vsel %vm746, %v2471, 0.0
        %2499 = vadd.xlane.f32.xlu0 %v2498
        %v2500 = vpop.xlane.xlu0 %2499
        %v2501 = vsel %vm746, %v2473, 0.0
        %2502 = vadd.xlane.f32.xlu0 %v2501
        %v2503 = vpop.xlane.xlu0 %2502
        %v2504 = vsel %vm746, %v2475, 0.0
        %2505 = vadd.xlane.f32.xlu0 %v2504
        %v2506 = vpop.xlane.xlu0 %2505
        %v2507 = vsel %vm746, %v2477, 0.0
        %2508 = vadd.xlane.f32.xlu0 %v2507
        %v2509 = vpop.xlane.xlu0 %2508
        %v2510 = vadd.f32 %v2488, 1e-12
        %v2511 = vadd.f32 %v2491, 1e-12
        %v2512 = vadd.f32 %v2494, 1e-12
        %v2513 = vadd.f32 %v2497, 1e-12
        %v2514 = vadd.f32 %v2500, 1e-12
        %v2515 = vadd.f32 %v2503, 1e-12
        %v2516 = vadd.f32 %v2506, 1e-12
        %v2517 = vadd.f32 %v2509, 1e-12
        %v2518 = vrsqrt.pop %v2510
        %v2519 = vmul.f32 %v2518, %v2510
        %v2520 = vmul.f32 %v2519, %v2518
        %v2521 = vmul.f32 0.5, %v2520
        %v2522 = vsub.f32 1.5, %v2521
        %v2523 = vmul.f32 %v2518, %v2522
        %vm2524 = vweird.f32 %v2510
        %vm2525 = vweird.f32 %v2518
        %vm2526 = vmor %vm2524, %vm2525
        %v2527 = vsel %vm2526, %v2518, %v2523
        %v2528 = vrsqrt.pop %v2511
        %v2529 = vmul.f32 %v2528, %v2511
        %v2530 = vmul.f32 %v2529, %v2528
        %v2531 = vmul.f32 0.5, %v2530
        %v2532 = vsub.f32 1.5, %v2531
        %v2533 = vmul.f32 %v2528, %v2532
        %vm2534 = vweird.f32 %v2511
        %vm2535 = vweird.f32 %v2528
        %vm2536 = vmor %vm2534, %vm2535
        %v2537 = vsel %vm2536, %v2528, %v2533
        %v2538 = vrsqrt.pop %v2512
        %v2539 = vmul.f32 %v2538, %v2512
        %v2540 = vmul.f32 %v2539, %v2538
        %v2541 = vmul.f32 0.5, %v2540
        %v2542 = vsub.f32 1.5, %v2541
        %v2543 = vmul.f32 %v2538, %v2542
        %vm2544 = vweird.f32 %v2512
        %vm2545 = vweird.f32 %v2538
        %vm2546 = vmor %vm2544, %vm2545
        %v2547 = vsel %vm2546, %v2538, %v2543
        %v2548 = vrsqrt.pop %v2513
        %v2549 = vmul.f32 %v2548, %v2513
        %v2550 = vmul.f32 %v2549, %v2548
        %v2551 = vmul.f32 0.5, %v2550
        %v2552 = vsub.f32 1.5, %v2551
        %v2553 = vmul.f32 %v2548, %v2552
        %vm2554 = vweird.f32 %v2513
        %vm2555 = vweird.f32 %v2548
        %vm2556 = vmor %vm2554, %vm2555
        %v2557 = vsel %vm2556, %v2548, %v2553
        %v2558 = vrsqrt.pop %v2514
        %v2559 = vmul.f32 %v2558, %v2514
        %v2560 = vmul.f32 %v2559, %v2558
        %v2561 = vmul.f32 0.5, %v2560
        %v2562 = vsub.f32 1.5, %v2561
        %v2563 = vmul.f32 %v2558, %v2562
        %vm2564 = vweird.f32 %v2514
        %vm2565 = vweird.f32 %v2558
        %vm2566 = vmor %vm2564, %vm2565
        %v2567 = vsel %vm2566, %v2558, %v2563
        %v2568 = vrsqrt.pop %v2515
        %v2569 = vmul.f32 %v2568, %v2515
        %v2570 = vmul.f32 %v2569, %v2568
        %v2571 = vmul.f32 0.5, %v2570
        %v2572 = vsub.f32 1.5, %v2571
        %v2573 = vmul.f32 %v2568, %v2572
        %vm2574 = vweird.f32 %v2515
        %vm2575 = vweird.f32 %v2568
        %vm2576 = vmor %vm2574, %vm2575
        %v2577 = vsel %vm2576, %v2568, %v2573
        %v2578 = vrsqrt.pop %v2516
        %v2579 = vmul.f32 %v2578, %v2516
        %v2580 = vmul.f32 %v2579, %v2578
        %v2581 = vmul.f32 0.5, %v2580
        %v2582 = vsub.f32 1.5, %v2581
        %v2583 = vmul.f32 %v2578, %v2582
        %vm2584 = vweird.f32 %v2516
        %vm2585 = vweird.f32 %v2578
        %vm2586 = vmor %vm2584, %vm2585
        %v2587 = vsel %vm2586, %v2578, %v2583
        %v2588 = vrsqrt.pop %v2517
        %v2589 = vmul.f32 %v2588, %v2517
        %v2590 = vmul.f32 %v2589, %v2588
        %v2591 = vmul.f32 0.5, %v2590
        %v2592 = vsub.f32 1.5, %v2591
        %v2593 = vmul.f32 %v2588, %v2592
        %vm2594 = vweird.f32 %v2517
        %vm2595 = vweird.f32 %v2588
        %vm2596 = vmor %vm2594, %vm2595
        %v2597 = vsel %vm2596, %v2588, %v2593
        %v2598 = vmul.f32 %v658, %v2527
        %v2599 = vmul.f32 %v661, %v2537
        %v2600 = vmul.f32 %v664, %v2547
        %v2601 = vmul.f32 %v667, %v2557
        %v2602 = vmul.f32 %v670, %v2567
        %v2603 = vmul.f32 %v673, %v2577
        %v2604 = vmul.f32 %v676, %v2587
        %v2605 = vmul.f32 %v679, %v2597
        %2608 = vrot.lane.b32.xlu0 %v2454, 112
        %v2609 = vpop.permute.xlu0 %2608
        %2610 = vrot.lane.b32.xlu0 %v2455, 112
        %v2611 = vpop.permute.xlu0 %2610
        %2614 = vrot.lane.b32.xlu0 %v2598, 112
        %v2615 = vpop.permute.xlu0 %2614
        %2616 = vrot.lane.b32.xlu0 %v2599, 112
        %v2617 = vpop.permute.xlu0 %2616
        %v2618 = vsel %vm746, %v2609, 0
        %v2620 = vsel %vm746, %v2611, 0
        %v2622 = vsel %vm746, %v2615, 0
        %v2624 = vsel %vm746, %v2617, 0
        %2626 = vmatpush.xpose.msra.mxu0 0.0
        %2627 = vmatpush.xpose.msra.mxu0 0.0
        %2628 = vmatpush.xpose.msra.mxu0 0.0
        %2629 = vmatpush.xpose.msra.mxu0 0.0
        %2630 = vmatpush.xpose.msra.mxu0 0.0
        %2631 = vmatpush.xpose.msra.mxu0 0.0
        %2632 = vmatpush.xpose.msra.mxu0 0.0
        %2633 = vmatpush.xpose.msra.mxu0 0.0
        %2634 = vmatpush.xpose.msra.mxu0 0.0
        %2635 = vmatpush.xpose.msra.mxu0 0.0
        %2636 = vmatpush.xpose.msra.mxu0 0.0
        %2637 = vmatpush.xpose.msra.mxu0 0.0
        %2638 = vmatpush.xpose.msra.mxu0 0.0
        %2639 = vmatpush.xpose.msra.mxu0 0.0
        %2640 = vmatpush.xpose.msra.mxu0 %v2624
        %2641 = vmatpush.xpose.msra.mxu0 %v2622
        %2642 = vmatmul.f32.gmra.mxu0 %v2618
        %v2643 = vpop.f32.mrf.mxu0
        %v2644 = vadd.f32 0.0, %v2643
        %2645 = vmatmul.f32.gmra.mxu0 %v2620
        %v2646 = vpop.f32.mrf.mxu0
        %v2647 = vadd.f32 0.0, %v2646
        %2648 = vdwg.mxu0
        %2651 = vrot.lane.b32.xlu0 %v2456, 112
        %v2652 = vpop.permute.xlu0 %2651
        %2653 = vrot.lane.b32.xlu0 %v2457, 112
        %v2654 = vpop.permute.xlu0 %2653
        %2657 = vrot.lane.b32.xlu0 %v2600, 112
        %v2658 = vpop.permute.xlu0 %2657
        %2659 = vrot.lane.b32.xlu0 %v2601, 112
        %v2660 = vpop.permute.xlu0 %2659
        %v2661 = vsel %vm746, %v2652, 0
        %v2663 = vsel %vm746, %v2654, 0
        %v2665 = vsel %vm746, %v2658, 0
        %v2667 = vsel %vm746, %v2660, 0
        %2669 = vmatpush.xpose.msra.mxu0 0.0
        %2670 = vmatpush.xpose.msra.mxu0 0.0
        %2671 = vmatpush.xpose.msra.mxu0 0.0
        %2672 = vmatpush.xpose.msra.mxu0 0.0
        %2673 = vmatpush.xpose.msra.mxu0 0.0
        %2674 = vmatpush.xpose.msra.mxu0 0.0
        %2675 = vmatpush.xpose.msra.mxu0 0.0
        %2676 = vmatpush.xpose.msra.mxu0 0.0
        %2677 = vmatpush.xpose.msra.mxu0 0.0
        %2678 = vmatpush.xpose.msra.mxu0 0.0
        %2679 = vmatpush.xpose.msra.mxu0 0.0
        %2680 = vmatpush.xpose.msra.mxu0 0.0
        %2681 = vmatpush.xpose.msra.mxu0 0.0
        %2682 = vmatpush.xpose.msra.mxu0 0.0
        %2683 = vmatpush.xpose.msra.mxu0 %v2667
        %2684 = vmatpush.xpose.msra.mxu0 %v2665
        %2685 = vmatmul.f32.gmra.mxu0 %v2661
        %v2686 = vpop.f32.mrf.mxu0
        %v2687 = vadd.f32 0.0, %v2686
        %2688 = vmatmul.f32.gmra.mxu0 %v2663
        %v2689 = vpop.f32.mrf.mxu0
        %v2690 = vadd.f32 0.0, %v2689
        %2691 = vdwg.mxu0
        %2694 = vrot.lane.b32.xlu0 %v2458, 112
        %v2695 = vpop.permute.xlu0 %2694
        %2696 = vrot.lane.b32.xlu0 %v2459, 112
        %v2697 = vpop.permute.xlu0 %2696
        %2700 = vrot.lane.b32.xlu0 %v2602, 112
        %v2701 = vpop.permute.xlu0 %2700
        %2702 = vrot.lane.b32.xlu0 %v2603, 112
        %v2703 = vpop.permute.xlu0 %2702
        %v2704 = vsel %vm746, %v2695, 0
        %v2706 = vsel %vm746, %v2697, 0
        %v2708 = vsel %vm746, %v2701, 0
        %v2710 = vsel %vm746, %v2703, 0
        %2712 = vmatpush.xpose.msra.mxu0 0.0
        %2713 = vmatpush.xpose.msra.mxu0 0.0
        %2714 = vmatpush.xpose.msra.mxu0 0.0
        %2715 = vmatpush.xpose.msra.mxu0 0.0
        %2716 = vmatpush.xpose.msra.mxu0 0.0
        %2717 = vmatpush.xpose.msra.mxu0 0.0
        %2718 = vmatpush.xpose.msra.mxu0 0.0
        %2719 = vmatpush.xpose.msra.mxu0 0.0
        %2720 = vmatpush.xpose.msra.mxu0 0.0
        %2721 = vmatpush.xpose.msra.mxu0 0.0
        %2722 = vmatpush.xpose.msra.mxu0 0.0
        %2723 = vmatpush.xpose.msra.mxu0 0.0
        %2724 = vmatpush.xpose.msra.mxu0 0.0
        %2725 = vmatpush.xpose.msra.mxu0 0.0
        %2726 = vmatpush.xpose.msra.mxu0 %v2710
        %2727 = vmatpush.xpose.msra.mxu0 %v2708
        %2728 = vmatmul.f32.gmra.mxu0 %v2704
        %v2729 = vpop.f32.mrf.mxu0
        %v2730 = vadd.f32 0.0, %v2729
        %2731 = vmatmul.f32.gmra.mxu0 %v2706
        %v2732 = vpop.f32.mrf.mxu0
        %v2733 = vadd.f32 0.0, %v2732
        %2734 = vdwg.mxu0
        %2737 = vrot.lane.b32.xlu0 %v2460, 112
        %v2738 = vpop.permute.xlu0 %2737
        %2739 = vrot.lane.b32.xlu0 %v2461, 112
        %v2740 = vpop.permute.xlu0 %2739
        %2743 = vrot.lane.b32.xlu0 %v2604, 112
        %v2744 = vpop.permute.xlu0 %2743
        %2745 = vrot.lane.b32.xlu0 %v2605, 112
        %v2746 = vpop.permute.xlu0 %2745
        %v2747 = vsel %vm746, %v2738, 0
        %v2749 = vsel %vm746, %v2740, 0
        %v2751 = vsel %vm746, %v2744, 0
        %v2753 = vsel %vm746, %v2746, 0
        %2755 = vmatpush.xpose.msra.mxu0 0.0
        %2756 = vmatpush.xpose.msra.mxu0 0.0
        %2757 = vmatpush.xpose.msra.mxu0 0.0
        %2758 = vmatpush.xpose.msra.mxu0 0.0
        %2759 = vmatpush.xpose.msra.mxu0 0.0
        %2760 = vmatpush.xpose.msra.mxu0 0.0
        %2761 = vmatpush.xpose.msra.mxu0 0.0
        %2762 = vmatpush.xpose.msra.mxu0 0.0
        %2763 = vmatpush.xpose.msra.mxu0 0.0
        %2764 = vmatpush.xpose.msra.mxu0 0.0
        %2765 = vmatpush.xpose.msra.mxu0 0.0
        %2766 = vmatpush.xpose.msra.mxu0 0.0
        %2767 = vmatpush.xpose.msra.mxu0 0.0
        %2768 = vmatpush.xpose.msra.mxu0 0.0
        %2769 = vmatpush.xpose.msra.mxu0 %v2753
        %2770 = vmatpush.xpose.msra.mxu0 %v2751
        %2771 = vmatmul.f32.gmra.mxu0 %v2747
        %v2772 = vpop.f32.mrf.mxu0
        %v2773 = vadd.f32 0.0, %v2772
        %2774 = vmatmul.f32.gmra.mxu0 %v2749
        %v2775 = vpop.f32.mrf.mxu0
        %v2776 = vadd.f32 0.0, %v2775
        %2777 = vdwg.mxu0
        %s2778 = scalar_lea.vmem [#allocation10], 32
        %v2779 = vld [vmem:[%s2778] sm:$0xff]
        %v2780 = vld [vmem:[%s2778 + $0x8] sm:$0xff]
        %v2781 = vmul.f32 %v2644, %v2779
        %v2782 = vmul.f32 %v2647, %v2780
        %v2783 = vmul.f32 %v2687, %v2779
        %v2784 = vmul.f32 %v2690, %v2780
        %v2785 = vmul.f32 %v2730, %v2779
        %v2786 = vmul.f32 %v2733, %v2780
        %v2787 = vmul.f32 %v2773, %v2779
        %v2788 = vmul.f32 %v2776, %v2780
        %s2789 = scalar_lea.vmem [#allocation11], 32
        %v2790 = vld [vmem:[%s2789] sm:$0xff]
        %v2791 = vld [vmem:[%s2789 + $0x8] sm:$0xff]
        %v2792 = vadd.f32 %v2781, %v2790
        %v2793 = vadd.f32 %v2782, %v2791
        %v2794 = vadd.f32 %v2783, %v2790
        %v2795 = vadd.f32 %v2784, %v2791
        %v2796 = vadd.f32 %v2785, %v2790
        %v2797 = vadd.f32 %v2786, %v2791
        %v2798 = vadd.f32 %v2787, %v2790
        %v2799 = vadd.f32 %v2788, %v2791
        %v2800 = vadd.f32 %v2792, %v730
        %v2801 = vadd.f32 %v2793, %v731
        %v2802 = vadd.f32 %v2794, %v732
        %v2803 = vadd.f32 %v2795, %v733
        %v2804 = vadd.f32 %v2796, %v734
        %v2805 = vadd.f32 %v2797, %v735
        %v2806 = vadd.f32 %v2798, %v736
        %v2807 = vadd.f32 %v2799, %v737
        %v2808 = vsel %vm1163, %v2800, -inf
        %2809 = vmax.xlane.f32.xlu0 %v2808
        %v2810 = vpop.xlane.xlu0 %2809
        %v2811 = vsel %vm1163, %v2801, -inf
        %2812 = vmax.xlane.f32.xlu0 %v2811
        %v2813 = vpop.xlane.xlu0 %2812
        %v2814 = vsel %vm1163, %v2802, -inf
        %2815 = vmax.xlane.f32.xlu0 %v2814
        %v2816 = vpop.xlane.xlu0 %2815
        %v2817 = vsel %vm1163, %v2803, -inf
        %2818 = vmax.xlane.f32.xlu0 %v2817
        %v2819 = vpop.xlane.xlu0 %2818
        %v2820 = vsel %vm1163, %v2804, -inf
        %2821 = vmax.xlane.f32.xlu0 %v2820
        %v2822 = vpop.xlane.xlu0 %2821
        %v2823 = vsel %vm1163, %v2805, -inf
        %2824 = vmax.xlane.f32.xlu0 %v2823
        %v2825 = vpop.xlane.xlu0 %2824
        %v2826 = vsel %vm1163, %v2806, -inf
        %2827 = vmax.xlane.f32.xlu0 %v2826
        %v2828 = vpop.xlane.xlu0 %2827
        %v2829 = vsel %vm1163, %v2807, -inf
        %2830 = vmax.xlane.f32.xlu0 %v2829
        %v2831 = vpop.xlane.xlu0 %2830
        %v2832 = vsub.f32 %v2800, %v2810
        %v2833 = vsub.f32 %v2801, %v2813
        %v2834 = vsub.f32 %v2802, %v2816
        %v2835 = vsub.f32 %v2803, %v2819
        %v2836 = vsub.f32 %v2804, %v2822
        %v2837 = vsub.f32 %v2805, %v2825
        %v2838 = vsub.f32 %v2806, %v2828
        %v2839 = vsub.f32 %v2807, %v2831
        %v2840 = vmul.f32 %v2832, 1.442695
        %v2841 = vpow.pop %v2840
        %v2842 = vmul.f32 %v2833, 1.442695
        %v2843 = vpow.pop %v2842
        %v2844 = vmul.f32 %v2834, 1.442695
        %v2845 = vpow.pop %v2844
        %v2846 = vmul.f32 %v2835, 1.442695
        %v2847 = vpow.pop %v2846
        %v2848 = vmul.f32 %v2836, 1.442695
        %v2849 = vpow.pop %v2848
        %v2850 = vmul.f32 %v2837, 1.442695
        %v2851 = vpow.pop %v2850
        %v2852 = vmul.f32 %v2838, 1.442695
        %v2853 = vpow.pop %v2852
        %v2854 = vmul.f32 %v2839, 1.442695
        %v2855 = vpow.pop %v2854
        %v2856 = vsel %vm1163, %v2841, 0.0
        %2857 = vadd.xlane.f32.xlu0 %v2856
        %v2858 = vpop.xlane.xlu0 %2857
        %v2859 = vsel %vm1163, %v2843, 0.0
        %2860 = vadd.xlane.f32.xlu0 %v2859
        %v2861 = vpop.xlane.xlu0 %2860
        %v2862 = vsel %vm1163, %v2845, 0.0
        %2863 = vadd.xlane.f32.xlu0 %v2862
        %v2864 = vpop.xlane.xlu0 %2863
        %v2865 = vsel %vm1163, %v2847, 0.0
        %2866 = vadd.xlane.f32.xlu0 %v2865
        %v2867 = vpop.xlane.xlu0 %2866
        %v2868 = vsel %vm1163, %v2849, 0.0
        %2869 = vadd.xlane.f32.xlu0 %v2868
        %v2870 = vpop.xlane.xlu0 %2869
        %v2871 = vsel %vm1163, %v2851, 0.0
        %2872 = vadd.xlane.f32.xlu0 %v2871
        %v2873 = vpop.xlane.xlu0 %2872
        %v2874 = vsel %vm1163, %v2853, 0.0
        %2875 = vadd.xlane.f32.xlu0 %v2874
        %v2876 = vpop.xlane.xlu0 %2875
        %v2877 = vsel %vm1163, %v2855, 0.0
        %2878 = vadd.xlane.f32.xlu0 %v2877
        %v2879 = vpop.xlane.xlu0 %2878
        %v2880 = vrcp.pop %v2858
        %v2881 = vmul.f32 %v2858, %v2880
        %v2882 = vsub.f32 1.0, %v2881
        %v2883 = vmul.f32 %v2880, %v2882
        %v2884 = vadd.f32 %v2880, %v2883
        %vm2885 = vweird.f32 %v2858
        %vm2886 = vweird.f32 %v2880
        %vm2887 = vmor %vm2885, %vm2886
        %v2888 = vsel %vm2887, %v2880, %v2884
        %v2889 = vand.u32 2147483647, %v2858
        %vm2890 = vcmp.eq.f32.partialorder %v2889, 8.507059e+37
        %v2891 = vand.u32 %v2858, 2147483648
        %v2892 = vor.u32 1.1754944e-38, %v2891
        %v2893 = vsel %vm2890, %v2892, %v2888
        %v2894 = vmul.f32 %v2841, %v2893
        %v2895 = vrcp.pop %v2861
        %v2896 = vmul.f32 %v2861, %v2895
        %v2897 = vsub.f32 1.0, %v2896
        %v2898 = vmul.f32 %v2895, %v2897
        %v2899 = vadd.f32 %v2895, %v2898
        %vm2900 = vweird.f32 %v2861
        %vm2901 = vweird.f32 %v2895
        %vm2902 = vmor %vm2900, %vm2901
        %v2903 = vsel %vm2902, %v2895, %v2899
        %v2904 = vand.u32 2147483647, %v2861
        %vm2905 = vcmp.eq.f32.partialorder %v2904, 8.507059e+37
        %v2906 = vand.u32 %v2861, 2147483648
        %v2907 = vor.u32 1.1754944e-38, %v2906
        %v2908 = vsel %vm2905, %v2907, %v2903
        %v2909 = vmul.f32 %v2843, %v2908
        %v2910 = vrcp.pop %v2864
        %v2911 = vmul.f32 %v2864, %v2910
        %v2912 = vsub.f32 1.0, %v2911
        %v2913 = vmul.f32 %v2910, %v2912
        %v2914 = vadd.f32 %v2910, %v2913
        %vm2915 = vweird.f32 %v2864
        %vm2916 = vweird.f32 %v2910
        %vm2917 = vmor %vm2915, %vm2916
        %v2918 = vsel %vm2917, %v2910, %v2914
        %v2919 = vand.u32 2147483647, %v2864
        %vm2920 = vcmp.eq.f32.partialorder %v2919, 8.507059e+37
        %v2921 = vand.u32 %v2864, 2147483648
        %v2922 = vor.u32 1.1754944e-38, %v2921
        %v2923 = vsel %vm2920, %v2922, %v2918
        %v2924 = vmul.f32 %v2845, %v2923
        %v2925 = vrcp.pop %v2867
        %v2926 = vmul.f32 %v2867, %v2925
        %v2927 = vsub.f32 1.0, %v2926
        %v2928 = vmul.f32 %v2925, %v2927
        %v2929 = vadd.f32 %v2925, %v2928
        %vm2930 = vweird.f32 %v2867
        %vm2931 = vweird.f32 %v2925
        %vm2932 = vmor %vm2930, %vm2931
        %v2933 = vsel %vm2932, %v2925, %v2929
        %v2934 = vand.u32 2147483647, %v2867
        %vm2935 = vcmp.eq.f32.partialorder %v2934, 8.507059e+37
        %v2936 = vand.u32 %v2867, 2147483648
        %v2937 = vor.u32 1.1754944e-38, %v2936
        %v2938 = vsel %vm2935, %v2937, %v2933
        %v2939 = vmul.f32 %v2847, %v2938
        %v2940 = vrcp.pop %v2870
        %v2941 = vmul.f32 %v2870, %v2940
        %v2942 = vsub.f32 1.0, %v2941
        %v2943 = vmul.f32 %v2940, %v2942
        %v2944 = vadd.f32 %v2940, %v2943
        %vm2945 = vweird.f32 %v2870
        %vm2946 = vweird.f32 %v2940
        %vm2947 = vmor %vm2945, %vm2946
        %v2948 = vsel %vm2947, %v2940, %v2944
        %v2949 = vand.u32 2147483647, %v2870
        %vm2950 = vcmp.eq.f32.partialorder %v2949, 8.507059e+37
        %v2951 = vand.u32 %v2870, 2147483648
        %v2952 = vor.u32 1.1754944e-38, %v2951
        %v2953 = vsel %vm2950, %v2952, %v2948
        %v2954 = vmul.f32 %v2849, %v2953
        %v2955 = vrcp.pop %v2873
        %v2956 = vmul.f32 %v2873, %v2955
        %v2957 = vsub.f32 1.0, %v2956
        %v2958 = vmul.f32 %v2955, %v2957
        %v2959 = vadd.f32 %v2955, %v2958
        %vm2960 = vweird.f32 %v2873
        %vm2961 = vweird.f32 %v2955
        %vm2962 = vmor %vm2960, %vm2961
        %v2963 = vsel %vm2962, %v2955, %v2959
        %v2964 = vand.u32 2147483647, %v2873
        %vm2965 = vcmp.eq.f32.partialorder %v2964, 8.507059e+37
        %v2966 = vand.u32 %v2873, 2147483648
        %v2967 = vor.u32 1.1754944e-38, %v2966
        %v2968 = vsel %vm2965, %v2967, %v2963
        %v2969 = vmul.f32 %v2851, %v2968
        %v2970 = vrcp.pop %v2876
        %v2971 = vmul.f32 %v2876, %v2970
        %v2972 = vsub.f32 1.0, %v2971
        %v2973 = vmul.f32 %v2970, %v2972
        %v2974 = vadd.f32 %v2970, %v2973
        %vm2975 = vweird.f32 %v2876
        %vm2976 = vweird.f32 %v2970
        %vm2977 = vmor %vm2975, %vm2976
        %v2978 = vsel %vm2977, %v2970, %v2974
        %v2979 = vand.u32 2147483647, %v2876
        %vm2980 = vcmp.eq.f32.partialorder %v2979, 8.507059e+37
        %v2981 = vand.u32 %v2876, 2147483648
        %v2982 = vor.u32 1.1754944e-38, %v2981
        %v2983 = vsel %vm2980, %v2982, %v2978
        %v2984 = vmul.f32 %v2853, %v2983
        %v2985 = vrcp.pop %v2879
        %v2986 = vmul.f32 %v2879, %v2985
        %v2987 = vsub.f32 1.0, %v2986
        %v2988 = vmul.f32 %v2985, %v2987
        %v2989 = vadd.f32 %v2985, %v2988
        %vm2990 = vweird.f32 %v2879
        %vm2991 = vweird.f32 %v2985
        %vm2992 = vmor %vm2990, %vm2991
        %v2993 = vsel %vm2992, %v2985, %v2989
        %v2994 = vand.u32 2147483647, %v2879
        %vm2995 = vcmp.eq.f32.partialorder %v2994, 8.507059e+37
        %v2996 = vand.u32 %v2879, 2147483648
        %v2997 = vor.u32 1.1754944e-38, %v2996
        %v2998 = vsel %vm2995, %v2997, %v2993
        %v2999 = vmul.f32 %v2855, %v2998
        %3000 = vrot.lane.b32.xlu0 %v707, 112
        %v3001 = vpop.permute.xlu0 %3000
        %3002 = vrot.lane.b32.xlu0 %v710, 112
        %v3003 = vpop.permute.xlu0 %3002
        %v3007 = vsel %vm1163, %v2894, 0
        %v3010 = vsel %vm1163, %v2909, 0
        %3012 = vmatpush.msra.mxu0 0.0
        %3013 = vmatpush.msra.mxu0 0.0
        %3014 = vmatpush.msra.mxu0 0.0
        %3015 = vmatpush.msra.mxu0 0.0
        %3016 = vmatpush.msra.mxu0 0.0
        %3017 = vmatpush.msra.mxu0 0.0
        %3018 = vmatpush.msra.mxu0 0.0
        %3019 = vmatpush.msra.mxu0 0.0
        %3020 = vmatpush.msra.mxu0 0.0
        %3021 = vmatpush.msra.mxu0 0.0
        %3022 = vmatpush.msra.mxu0 0.0
        %3023 = vmatpush.msra.mxu0 0.0
        %3024 = vmatpush.msra.mxu0 0.0
        %3025 = vmatpush.msra.mxu0 0.0
        %3026 = vmatpush.msra.mxu0 %v3003
        %3027 = vmatpush.msra.mxu0 %v3001
        %3028 = vmatmul.f32.gmra.mxu0 %v3007
        %v3029 = vpop.f32.mrf.mxu0
        %v3030 = vadd.f32 0.0, %v3029
        %3031 = vmatmul.f32.gmra.mxu0 %v3010
        %v3032 = vpop.f32.mrf.mxu0
        %v3033 = vadd.f32 0.0, %v3032
        %3034 = vdwg.mxu0
        %3035 = vrot.lane.b32.xlu0 %v713, 112
        %v3036 = vpop.permute.xlu0 %3035
        %3037 = vrot.lane.b32.xlu0 %v716, 112
        %v3038 = vpop.permute.xlu0 %3037
        %v3042 = vsel %vm1163, %v2924, 0
        %v3045 = vsel %vm1163, %v2939, 0
        %3047 = vmatpush.msra.mxu0 0.0
        %3048 = vmatpush.msra.mxu0 0.0
        %3049 = vmatpush.msra.mxu0 0.0
        %3050 = vmatpush.msra.mxu0 0.0
        %3051 = vmatpush.msra.mxu0 0.0
        %3052 = vmatpush.msra.mxu0 0.0
        %3053 = vmatpush.msra.mxu0 0.0
        %3054 = vmatpush.msra.mxu0 0.0
        %3055 = vmatpush.msra.mxu0 0.0
        %3056 = vmatpush.msra.mxu0 0.0
        %3057 = vmatpush.msra.mxu0 0.0
        %3058 = vmatpush.msra.mxu0 0.0
        %3059 = vmatpush.msra.mxu0 0.0
        %3060 = vmatpush.msra.mxu0 0.0
        %3061 = vmatpush.msra.mxu0 %v3038
        %3062 = vmatpush.msra.mxu0 %v3036
        %3063 = vmatmul.f32.gmra.mxu0 %v3042
        %v3064 = vpop.f32.mrf.mxu0
        %v3065 = vadd.f32 0.0, %v3064
        %3066 = vmatmul.f32.gmra.mxu0 %v3045
        %v3067 = vpop.f32.mrf.mxu0
        %v3068 = vadd.f32 0.0, %v3067
        %3069 = vdwg.mxu0
        %3070 = vrot.lane.b32.xlu0 %v719, 112
        %v3071 = vpop.permute.xlu0 %3070
        %3072 = vrot.lane.b32.xlu0 %v722, 112
        %v3073 = vpop.permute.xlu0 %3072
        %v3077 = vsel %vm1163, %v2954, 0
        %v3080 = vsel %vm1163, %v2969, 0
        %3082 = vmatpush.msra.mxu0 0.0
        %3083 = vmatpush.msra.mxu0 0.0
        %3084 = vmatpush.msra.mxu0 0.0
        %3085 = vmatpush.msra.mxu0 0.0
        %3086 = vmatpush.msra.mxu0 0.0
        %3087 = vmatpush.msra.mxu0 0.0
        %3088 = vmatpush.msra.mxu0 0.0
        %3089 = vmatpush.msra.mxu0 0.0
        %3090 = vmatpush.msra.mxu0 0.0
        %3091 = vmatpush.msra.mxu0 0.0
        %3092 = vmatpush.msra.mxu0 0.0
        %3093 = vmatpush.msra.mxu0 0.0
        %3094 = vmatpush.msra.mxu0 0.0
        %3095 = vmatpush.msra.mxu0 0.0
        %3096 = vmatpush.msra.mxu0 %v3073
        %3097 = vmatpush.msra.mxu0 %v3071
        %3098 = vmatmul.f32.gmra.mxu0 %v3077
        %v3099 = vpop.f32.mrf.mxu0
        %v3100 = vadd.f32 0.0, %v3099
        %3101 = vmatmul.f32.gmra.mxu0 %v3080
        %v3102 = vpop.f32.mrf.mxu0
        %v3103 = vadd.f32 0.0, %v3102
        %3104 = vdwg.mxu0
        %3105 = vrot.lane.b32.xlu0 %v725, 112
        %v3106 = vpop.permute.xlu0 %3105
        %3107 = vrot.lane.b32.xlu0 %v728, 112
        %v3108 = vpop.permute.xlu0 %3107
        %v3112 = vsel %vm1163, %v2984, 0
        %v3115 = vsel %vm1163, %v2999, 0
        %3117 = vmatpush.msra.mxu0 0.0
        %3118 = vmatpush.msra.mxu0 0.0
        %3119 = vmatpush.msra.mxu0 0.0
        %3120 = vmatpush.msra.mxu0 0.0
        %3121 = vmatpush.msra.mxu0 0.0
        %3122 = vmatpush.msra.mxu0 0.0
        %3123 = vmatpush.msra.mxu0 0.0
        %3124 = vmatpush.msra.mxu0 0.0
        %3125 = vmatpush.msra.mxu0 0.0
        %3126 = vmatpush.msra.mxu0 0.0
        %3127 = vmatpush.msra.mxu0 0.0
        %3128 = vmatpush.msra.mxu0 0.0
        %3129 = vmatpush.msra.mxu0 0.0
        %3130 = vmatpush.msra.mxu0 0.0
        %3131 = vmatpush.msra.mxu0 %v3108
        %3132 = vmatpush.msra.mxu0 %v3106
        %3133 = vmatmul.f32.gmra.mxu0 %v3112
        %v3134 = vpop.f32.mrf.mxu0
        %v3135 = vadd.f32 0.0, %v3134
        %3136 = vmatmul.f32.gmra.mxu0 %v3115
        %v3137 = vpop.f32.mrf.mxu0
        %v3138 = vadd.f32 0.0, %v3137
        %3139 = vdwg.mxu0
        %3140 = vrot.lane.b32.xlu0 %v738, 104
        %v3141 = vpop.permute.xlu0 %3140
        %3142 = vrot.lane.b32.xlu0 %v739, 104
        %v3143 = vpop.permute.xlu0 %3142
        %3144 = vrot.lane.b32.xlu0 %v740, 104
        %v3145 = vpop.permute.xlu0 %3144
        %3146 = vrot.lane.b32.xlu0 %v741, 104
        %v3147 = vpop.permute.xlu0 %3146
        %3148 = vrot.lane.b32.xlu0 %v742, 104
        %v3149 = vpop.permute.xlu0 %3148
        %3150 = vrot.lane.b32.xlu0 %v743, 104
        %v3151 = vpop.permute.xlu0 %3150
        %3152 = vrot.lane.b32.xlu0 %v744, 104
        %v3153 = vpop.permute.xlu0 %3152
        %3154 = vrot.lane.b32.xlu0 %v745, 104
        %v3155 = vpop.permute.xlu0 %3154
        %v3164 = vsel %vm746, %v3141, 0.0
        %3165 = vadd.xlane.f32.xlu0 %v3164
        %v3166 = vpop.xlane.xlu0 %3165
        %v3167 = vsel %vm746, %v3143, 0.0
        %3168 = vadd.xlane.f32.xlu0 %v3167
        %v3169 = vpop.xlane.xlu0 %3168
        %v3170 = vsel %vm746, %v3145, 0.0
        %3171 = vadd.xlane.f32.xlu0 %v3170
        %v3172 = vpop.xlane.xlu0 %3171
        %v3173 = vsel %vm746, %v3147, 0.0
        %3174 = vadd.xlane.f32.xlu0 %v3173
        %v3175 = vpop.xlane.xlu0 %3174
        %v3176 = vsel %vm746, %v3149, 0.0
        %3177 = vadd.xlane.f32.xlu0 %v3176
        %v3178 = vpop.xlane.xlu0 %3177
        %v3179 = vsel %vm746, %v3151, 0.0
        %3180 = vadd.xlane.f32.xlu0 %v3179
        %v3181 = vpop.xlane.xlu0 %3180
        %v3182 = vsel %vm746, %v3153, 0.0
        %3183 = vadd.xlane.f32.xlu0 %v3182
        %v3184 = vpop.xlane.xlu0 %3183
        %v3185 = vsel %vm746, %v3155, 0.0
        %3186 = vadd.xlane.f32.xlu0 %v3185
        %v3187 = vpop.xlane.xlu0 %3186
        %v3188 = vadd.f32 %v3166, 1e-12
        %v3189 = vadd.f32 %v3169, 1e-12
        %v3190 = vadd.f32 %v3172, 1e-12
        %v3191 = vadd.f32 %v3175, 1e-12
        %v3192 = vadd.f32 %v3178, 1e-12
        %v3193 = vadd.f32 %v3181, 1e-12
        %v3194 = vadd.f32 %v3184, 1e-12
        %v3195 = vadd.f32 %v3187, 1e-12
        %v3196 = vrsqrt.pop %v3188
        %v3197 = vmul.f32 %v3196, %v3188
        %v3198 = vmul.f32 %v3197, %v3196
        %v3199 = vmul.f32 0.5, %v3198
        %v3200 = vsub.f32 1.5, %v3199
        %v3201 = vmul.f32 %v3196, %v3200
        %vm3202 = vweird.f32 %v3188
        %vm3203 = vweird.f32 %v3196
        %vm3204 = vmor %vm3202, %vm3203
        %v3205 = vsel %vm3204, %v3196, %v3201
        %v3206 = vrsqrt.pop %v3189
        %v3207 = vmul.f32 %v3206, %v3189
        %v3208 = vmul.f32 %v3207, %v3206
        %v3209 = vmul.f32 0.5, %v3208
        %v3210 = vsub.f32 1.5, %v3209
        %v3211 = vmul.f32 %v3206, %v3210
        %vm3212 = vweird.f32 %v3189
        %vm3213 = vweird.f32 %v3206
        %vm3214 = vmor %vm3212, %vm3213
        %v3215 = vsel %vm3214, %v3206, %v3211
        %v3216 = vrsqrt.pop %v3190
        %v3217 = vmul.f32 %v3216, %v3190
        %v3218 = vmul.f32 %v3217, %v3216
        %v3219 = vmul.f32 0.5, %v3218
        %v3220 = vsub.f32 1.5, %v3219
        %v3221 = vmul.f32 %v3216, %v3220
        %vm3222 = vweird.f32 %v3190
        %vm3223 = vweird.f32 %v3216
        %vm3224 = vmor %vm3222, %vm3223
        %v3225 = vsel %vm3224, %v3216, %v3221
        %v3226 = vrsqrt.pop %v3191
        %v3227 = vmul.f32 %v3226, %v3191
        %v3228 = vmul.f32 %v3227, %v3226
        %v3229 = vmul.f32 0.5, %v3228
        %v3230 = vsub.f32 1.5, %v3229
        %v3231 = vmul.f32 %v3226, %v3230
        %vm3232 = vweird.f32 %v3191
        %vm3233 = vweird.f32 %v3226
        %vm3234 = vmor %vm3232, %vm3233
        %v3235 = vsel %vm3234, %v3226, %v3231
        %v3236 = vrsqrt.pop %v3192
        %v3237 = vmul.f32 %v3236, %v3192
        %v3238 = vmul.f32 %v3237, %v3236
        %v3239 = vmul.f32 0.5, %v3238
        %v3240 = vsub.f32 1.5, %v3239
        %v3241 = vmul.f32 %v3236, %v3240
        %vm3242 = vweird.f32 %v3192
        %vm3243 = vweird.f32 %v3236
        %vm3244 = vmor %vm3242, %vm3243
        %v3245 = vsel %vm3244, %v3236, %v3241
        %v3246 = vrsqrt.pop %v3193
        %v3247 = vmul.f32 %v3246, %v3193
        %v3248 = vmul.f32 %v3247, %v3246
        %v3249 = vmul.f32 0.5, %v3248
        %v3250 = vsub.f32 1.5, %v3249
        %v3251 = vmul.f32 %v3246, %v3250
        %vm3252 = vweird.f32 %v3193
        %vm3253 = vweird.f32 %v3246
        %vm3254 = vmor %vm3252, %vm3253
        %v3255 = vsel %vm3254, %v3246, %v3251
        %v3256 = vrsqrt.pop %v3194
        %v3257 = vmul.f32 %v3256, %v3194
        %v3258 = vmul.f32 %v3257, %v3256
        %v3259 = vmul.f32 0.5, %v3258
        %v3260 = vsub.f32 1.5, %v3259
        %v3261 = vmul.f32 %v3256, %v3260
        %vm3262 = vweird.f32 %v3194
        %vm3263 = vweird.f32 %v3256
        %vm3264 = vmor %vm3262, %vm3263
        %v3265 = vsel %vm3264, %v3256, %v3261
        %v3266 = vrsqrt.pop %v3195
        %v3267 = vmul.f32 %v3266, %v3195
        %v3268 = vmul.f32 %v3267, %v3266
        %v3269 = vmul.f32 0.5, %v3268
        %v3270 = vsub.f32 1.5, %v3269
        %v3271 = vmul.f32 %v3266, %v3270
        %vm3272 = vweird.f32 %v3195
        %vm3273 = vweird.f32 %v3266
        %vm3274 = vmor %vm3272, %vm3273
        %v3275 = vsel %vm3274, %v3266, %v3271
        %v3276 = vmul.f32 %v613, %v3205
        %v3277 = vmul.f32 %v616, %v3215
        %v3278 = vmul.f32 %v619, %v3225
        %v3279 = vmul.f32 %v622, %v3235
        %v3280 = vmul.f32 %v625, %v3245
        %v3281 = vmul.f32 %v628, %v3255
        %v3282 = vmul.f32 %v631, %v3265
        %v3283 = vmul.f32 %v634, %v3275
        %3284 = vrot.lane.b32.xlu0 %v867, 104
        %v3285 = vpop.permute.xlu0 %3284
        %3286 = vrot.lane.b32.xlu0 %v868, 104
        %v3287 = vpop.permute.xlu0 %3286
        %3288 = vrot.lane.b32.xlu0 %v869, 104
        %v3289 = vpop.permute.xlu0 %3288
        %3290 = vrot.lane.b32.xlu0 %v870, 104
        %v3291 = vpop.permute.xlu0 %3290
        %3292 = vrot.lane.b32.xlu0 %v871, 104
        %v3293 = vpop.permute.xlu0 %3292
        %3294 = vrot.lane.b32.xlu0 %v872, 104
        %v3295 = vpop.permute.xlu0 %3294
        %3296 = vrot.lane.b32.xlu0 %v873, 104
        %v3297 = vpop.permute.xlu0 %3296
        %3298 = vrot.lane.b32.xlu0 %v874, 104
        %v3299 = vpop.permute.xlu0 %3298
        %v3308 = vsel %vm746, %v3285, 0.0
        %3309 = vadd.xlane.f32.xlu0 %v3308
        %v3310 = vpop.xlane.xlu0 %3309
        %v3311 = vsel %vm746, %v3287, 0.0
        %3312 = vadd.xlane.f32.xlu0 %v3311
        %v3313 = vpop.xlane.xlu0 %3312
        %v3314 = vsel %vm746, %v3289, 0.0
        %3315 = vadd.xlane.f32.xlu0 %v3314
        %v3316 = vpop.xlane.xlu0 %3315
        %v3317 = vsel %vm746, %v3291, 0.0
        %3318 = vadd.xlane.f32.xlu0 %v3317
        %v3319 = vpop.xlane.xlu0 %3318
        %v3320 = vsel %vm746, %v3293, 0.0
        %3321 = vadd.xlane.f32.xlu0 %v3320
        %v3322 = vpop.xlane.xlu0 %3321
        %v3323 = vsel %vm746, %v3295, 0.0
        %3324 = vadd.xlane.f32.xlu0 %v3323
        %v3325 = vpop.xlane.xlu0 %3324
        %v3326 = vsel %vm746, %v3297, 0.0
        %3327 = vadd.xlane.f32.xlu0 %v3326
        %v3328 = vpop.xlane.xlu0 %3327
        %v3329 = vsel %vm746, %v3299, 0.0
        %3330 = vadd.xlane.f32.xlu0 %v3329
        %v3331 = vpop.xlane.xlu0 %3330
        %v3332 = vadd.f32 %v3310, 1e-12
        %v3333 = vadd.f32 %v3313, 1e-12
        %v3334 = vadd.f32 %v3316, 1e-12
        %v3335 = vadd.f32 %v3319, 1e-12
        %v3336 = vadd.f32 %v3322, 1e-12
        %v3337 = vadd.f32 %v3325, 1e-12
        %v3338 = vadd.f32 %v3328, 1e-12
        %v3339 = vadd.f32 %v3331, 1e-12
        %v3340 = vrsqrt.pop %v3332
        %v3341 = vmul.f32 %v3340, %v3332
        %v3342 = vmul.f32 %v3341, %v3340
        %v3343 = vmul.f32 0.5, %v3342
        %v3344 = vsub.f32 1.5, %v3343
        %v3345 = vmul.f32 %v3340, %v3344
        %vm3346 = vweird.f32 %v3332
        %vm3347 = vweird.f32 %v3340
        %vm3348 = vmor %vm3346, %vm3347
        %v3349 = vsel %vm3348, %v3340, %v3345
        %v3350 = vrsqrt.pop %v3333
        %v3351 = vmul.f32 %v3350, %v3333
        %v3352 = vmul.f32 %v3351, %v3350
        %v3353 = vmul.f32 0.5, %v3352
        %v3354 = vsub.f32 1.5, %v3353
        %v3355 = vmul.f32 %v3350, %v3354
        %vm3356 = vweird.f32 %v3333
        %vm3357 = vweird.f32 %v3350
        %vm3358 = vmor %vm3356, %vm3357
        %v3359 = vsel %vm3358, %v3350, %v3355
        %v3360 = vrsqrt.pop %v3334
        %v3361 = vmul.f32 %v3360, %v3334
        %v3362 = vmul.f32 %v3361, %v3360
        %v3363 = vmul.f32 0.5, %v3362
        %v3364 = vsub.f32 1.5, %v3363
        %v3365 = vmul.f32 %v3360, %v3364
        %vm3366 = vweird.f32 %v3334
        %vm3367 = vweird.f32 %v3360
        %vm3368 = vmor %vm3366, %vm3367
        %v3369 = vsel %vm3368, %v3360, %v3365
        %v3370 = vrsqrt.pop %v3335
        %v3371 = vmul.f32 %v3370, %v3335
        %v3372 = vmul.f32 %v3371, %v3370
        %v3373 = vmul.f32 0.5, %v3372
        %v3374 = vsub.f32 1.5, %v3373
        %v3375 = vmul.f32 %v3370, %v3374
        %vm3376 = vweird.f32 %v3335
        %vm3377 = vweird.f32 %v3370
        %vm3378 = vmor %vm3376, %vm3377
        %v3379 = vsel %vm3378, %v3370, %v3375
        %v3380 = vrsqrt.pop %v3336
        %v3381 = vmul.f32 %v3380, %v3336
        %v3382 = vmul.f32 %v3381, %v3380
        %v3383 = vmul.f32 0.5, %v3382
        %v3384 = vsub.f32 1.5, %v3383
        %v3385 = vmul.f32 %v3380, %v3384
        %vm3386 = vweird.f32 %v3336
        %vm3387 = vweird.f32 %v3380
        %vm3388 = vmor %vm3386, %vm3387
        %v3389 = vsel %vm3388, %v3380, %v3385
        %v3390 = vrsqrt.pop %v3337
        %v3391 = vmul.f32 %v3390, %v3337
        %v3392 = vmul.f32 %v3391, %v3390
        %v3393 = vmul.f32 0.5, %v3392
        %v3394 = vsub.f32 1.5, %v3393
        %v3395 = vmul.f32 %v3390, %v3394
        %vm3396 = vweird.f32 %v3337
        %vm3397 = vweird.f32 %v3390
        %vm3398 = vmor %vm3396, %vm3397
        %v3399 = vsel %vm3398, %v3390, %v3395
        %v3400 = vrsqrt.pop %v3338
        %v3401 = vmul.f32 %v3400, %v3338
        %v3402 = vmul.f32 %v3401, %v3400
        %v3403 = vmul.f32 0.5, %v3402
        %v3404 = vsub.f32 1.5, %v3403
        %v3405 = vmul.f32 %v3400, %v3404
        %vm3406 = vweird.f32 %v3338
        %vm3407 = vweird.f32 %v3400
        %vm3408 = vmor %vm3406, %vm3407
        %v3409 = vsel %vm3408, %v3400, %v3405
        %v3410 = vrsqrt.pop %v3339
        %v3411 = vmul.f32 %v3410, %v3339
        %v3412 = vmul.f32 %v3411, %v3410
        %v3413 = vmul.f32 0.5, %v3412
        %v3414 = vsub.f32 1.5, %v3413
        %v3415 = vmul.f32 %v3410, %v3414
        %vm3416 = vweird.f32 %v3339
        %vm3417 = vweird.f32 %v3410
        %vm3418 = vmor %vm3416, %vm3417
        %v3419 = vsel %vm3418, %v3410, %v3415
        %v3420 = vmul.f32 %v658, %v3349
        %v3421 = vmul.f32 %v661, %v3359
        %v3422 = vmul.f32 %v664, %v3369
        %v3423 = vmul.f32 %v667, %v3379
        %v3424 = vmul.f32 %v670, %v3389
        %v3425 = vmul.f32 %v673, %v3399
        %v3426 = vmul.f32 %v676, %v3409
        %v3427 = vmul.f32 %v679, %v3419
        %3430 = vrot.lane.b32.xlu0 %v3276, 104
        %v3431 = vpop.permute.xlu0 %3430
        %3432 = vrot.lane.b32.xlu0 %v3277, 104
        %v3433 = vpop.permute.xlu0 %3432
        %3436 = vrot.lane.b32.xlu0 %v3420, 104
        %v3437 = vpop.permute.xlu0 %3436
        %3438 = vrot.lane.b32.xlu0 %v3421, 104
        %v3439 = vpop.permute.xlu0 %3438
        %v3440 = vsel %vm746, %v3431, 0
        %v3442 = vsel %vm746, %v3433, 0
        %v3444 = vsel %vm746, %v3437, 0
        %v3446 = vsel %vm746, %v3439, 0
        %3448 = vmatpush.xpose.msra.mxu0 0.0
        %3449 = vmatpush.xpose.msra.mxu0 0.0
        %3450 = vmatpush.xpose.msra.mxu0 0.0
        %3451 = vmatpush.xpose.msra.mxu0 0.0
        %3452 = vmatpush.xpose.msra.mxu0 0.0
        %3453 = vmatpush.xpose.msra.mxu0 0.0
        %3454 = vmatpush.xpose.msra.mxu0 0.0
        %3455 = vmatpush.xpose.msra.mxu0 0.0
        %3456 = vmatpush.xpose.msra.mxu0 0.0
        %3457 = vmatpush.xpose.msra.mxu0 0.0
        %3458 = vmatpush.xpose.msra.mxu0 0.0
        %3459 = vmatpush.xpose.msra.mxu0 0.0
        %3460 = vmatpush.xpose.msra.mxu0 0.0
        %3461 = vmatpush.xpose.msra.mxu0 0.0
        %3462 = vmatpush.xpose.msra.mxu0 %v3446
        %3463 = vmatpush.xpose.msra.mxu0 %v3444
        %3464 = vmatmul.f32.gmra.mxu0 %v3440
        %v3465 = vpop.f32.mrf.mxu0
        %v3466 = vadd.f32 0.0, %v3465
        %3467 = vmatmul.f32.gmra.mxu0 %v3442
        %v3468 = vpop.f32.mrf.mxu0
        %v3469 = vadd.f32 0.0, %v3468
        %3470 = vdwg.mxu0
        %3473 = vrot.lane.b32.xlu0 %v3278, 104
        %v3474 = vpop.permute.xlu0 %3473
        %3475 = vrot.lane.b32.xlu0 %v3279, 104
        %v3476 = vpop.permute.xlu0 %3475
        %3479 = vrot.lane.b32.xlu0 %v3422, 104
        %v3480 = vpop.permute.xlu0 %3479
        %3481 = vrot.lane.b32.xlu0 %v3423, 104
        %v3482 = vpop.permute.xlu0 %3481
        %v3483 = vsel %vm746, %v3474, 0
        %v3485 = vsel %vm746, %v3476, 0
        %v3487 = vsel %vm746, %v3480, 0
        %v3489 = vsel %vm746, %v3482, 0
        %3491 = vmatpush.xpose.msra.mxu0 0.0
        %3492 = vmatpush.xpose.msra.mxu0 0.0
        %3493 = vmatpush.xpose.msra.mxu0 0.0
        %3494 = vmatpush.xpose.msra.mxu0 0.0
        %3495 = vmatpush.xpose.msra.mxu0 0.0
        %3496 = vmatpush.xpose.msra.mxu0 0.0
        %3497 = vmatpush.xpose.msra.mxu0 0.0
        %3498 = vmatpush.xpose.msra.mxu0 0.0
        %3499 = vmatpush.xpose.msra.mxu0 0.0
        %3500 = vmatpush.xpose.msra.mxu0 0.0
        %3501 = vmatpush.xpose.msra.mxu0 0.0
        %3502 = vmatpush.xpose.msra.mxu0 0.0
        %3503 = vmatpush.xpose.msra.mxu0 0.0
        %3504 = vmatpush.xpose.msra.mxu0 0.0
        %3505 = vmatpush.xpose.msra.mxu0 %v3489
        %3506 = vmatpush.xpose.msra.mxu0 %v3487
        %3507 = vmatmul.f32.gmra.mxu0 %v3483
        %v3508 = vpop.f32.mrf.mxu0
        %v3509 = vadd.f32 0.0, %v3508
        %3510 = vmatmul.f32.gmra.mxu0 %v3485
        %v3511 = vpop.f32.mrf.mxu0
        %v3512 = vadd.f32 0.0, %v3511
        %3513 = vdwg.mxu0
        %3516 = vrot.lane.b32.xlu0 %v3280, 104
        %v3517 = vpop.permute.xlu0 %3516
        %3518 = vrot.lane.b32.xlu0 %v3281, 104
        %v3519 = vpop.permute.xlu0 %3518
        %3522 = vrot.lane.b32.xlu0 %v3424, 104
        %v3523 = vpop.permute.xlu0 %3522
        %3524 = vrot.lane.b32.xlu0 %v3425, 104
        %v3525 = vpop.permute.xlu0 %3524
        %v3526 = vsel %vm746, %v3517, 0
        %v3528 = vsel %vm746, %v3519, 0
        %v3530 = vsel %vm746, %v3523, 0
        %v3532 = vsel %vm746, %v3525, 0
        %3534 = vmatpush.xpose.msra.mxu0 0.0
        %3535 = vmatpush.xpose.msra.mxu0 0.0
        %3536 = vmatpush.xpose.msra.mxu0 0.0
        %3537 = vmatpush.xpose.msra.mxu0 0.0
        %3538 = vmatpush.xpose.msra.mxu0 0.0
        %3539 = vmatpush.xpose.msra.mxu0 0.0
        %3540 = vmatpush.xpose.msra.mxu0 0.0
        %3541 = vmatpush.xpose.msra.mxu0 0.0
        %3542 = vmatpush.xpose.msra.mxu0 0.0
        %3543 = vmatpush.xpose.msra.mxu0 0.0
        %3544 = vmatpush.xpose.msra.mxu0 0.0
        %3545 = vmatpush.xpose.msra.mxu0 0.0
        %3546 = vmatpush.xpose.msra.mxu0 0.0
        %3547 = vmatpush.xpose.msra.mxu0 0.0
        %3548 = vmatpush.xpose.msra.mxu0 %v3532
        %3549 = vmatpush.xpose.msra.mxu0 %v3530
        %3550 = vmatmul.f32.gmra.mxu0 %v3526
        %v3551 = vpop.f32.mrf.mxu0
        %v3552 = vadd.f32 0.0, %v3551
        %3553 = vmatmul.f32.gmra.mxu0 %v3528
        %v3554 = vpop.f32.mrf.mxu0
        %v3555 = vadd.f32 0.0, %v3554
        %3556 = vdwg.mxu0
        %3559 = vrot.lane.b32.xlu0 %v3282, 104
        %v3560 = vpop.permute.xlu0 %3559
        %3561 = vrot.lane.b32.xlu0 %v3283, 104
        %v3562 = vpop.permute.xlu0 %3561
        %3565 = vrot.lane.b32.xlu0 %v3426, 104
        %v3566 = vpop.permute.xlu0 %3565
        %3567 = vrot.lane.b32.xlu0 %v3427, 104
        %v3568 = vpop.permute.xlu0 %3567
        %v3569 = vsel %vm746, %v3560, 0
        %v3571 = vsel %vm746, %v3562, 0
        %v3573 = vsel %vm746, %v3566, 0
        %v3575 = vsel %vm746, %v3568, 0
        %3577 = vmatpush.xpose.msra.mxu0 0.0
        %3578 = vmatpush.xpose.msra.mxu0 0.0
        %3579 = vmatpush.xpose.msra.mxu0 0.0
        %3580 = vmatpush.xpose.msra.mxu0 0.0
        %3581 = vmatpush.xpose.msra.mxu0 0.0
        %3582 = vmatpush.xpose.msra.mxu0 0.0
        %3583 = vmatpush.xpose.msra.mxu0 0.0
        %3584 = vmatpush.xpose.msra.mxu0 0.0
        %3585 = vmatpush.xpose.msra.mxu0 0.0
        %3586 = vmatpush.xpose.msra.mxu0 0.0
        %3587 = vmatpush.xpose.msra.mxu0 0.0
        %3588 = vmatpush.xpose.msra.mxu0 0.0
        %3589 = vmatpush.xpose.msra.mxu0 0.0
        %3590 = vmatpush.xpose.msra.mxu0 0.0
        %3591 = vmatpush.xpose.msra.mxu0 %v3575
        %3592 = vmatpush.xpose.msra.mxu0 %v3573
        %3593 = vmatmul.f32.gmra.mxu0 %v3569
        %v3594 = vpop.f32.mrf.mxu0
        %v3595 = vadd.f32 0.0, %v3594
        %3596 = vmatmul.f32.gmra.mxu0 %v3571
        %v3597 = vpop.f32.mrf.mxu0
        %v3598 = vadd.f32 0.0, %v3597
        %3599 = vdwg.mxu0
        %s3600 = scalar_lea.vmem [#allocation10], 48
        %v3601 = vld [vmem:[%s3600] sm:$0xff]
        %v3602 = vld [vmem:[%s3600 + $0x8] sm:$0xff]
        %v3603 = vmul.f32 %v3466, %v3601
        %v3604 = vmul.f32 %v3469, %v3602
        %v3605 = vmul.f32 %v3509, %v3601
        %v3606 = vmul.f32 %v3512, %v3602
        %v3607 = vmul.f32 %v3552, %v3601
        %v3608 = vmul.f32 %v3555, %v3602
        %v3609 = vmul.f32 %v3595, %v3601
        %v3610 = vmul.f32 %v3598, %v3602
        %s3611 = scalar_lea.vmem [#allocation11], 48
        %v3612 = vld [vmem:[%s3611] sm:$0xff]
        %v3613 = vld [vmem:[%s3611 + $0x8] sm:$0xff]
        %v3614 = vadd.f32 %v3603, %v3612
        %v3615 = vadd.f32 %v3604, %v3613
        %v3616 = vadd.f32 %v3605, %v3612
        %v3617 = vadd.f32 %v3606, %v3613
        %v3618 = vadd.f32 %v3607, %v3612
        %v3619 = vadd.f32 %v3608, %v3613
        %v3620 = vadd.f32 %v3609, %v3612
        %v3621 = vadd.f32 %v3610, %v3613
        %v3622 = vadd.f32 %v3614, %v730
        %v3623 = vadd.f32 %v3615, %v731
        %v3624 = vadd.f32 %v3616, %v732
        %v3625 = vadd.f32 %v3617, %v733
        %v3626 = vadd.f32 %v3618, %v734
        %v3627 = vadd.f32 %v3619, %v735
        %v3628 = vadd.f32 %v3620, %v736
        %v3629 = vadd.f32 %v3621, %v737
        %v3630 = vsel %vm1163, %v3622, -inf
        %3631 = vmax.xlane.f32.xlu0 %v3630
        %v3632 = vpop.xlane.xlu0 %3631
        %v3633 = vsel %vm1163, %v3623, -inf
        %3634 = vmax.xlane.f32.xlu0 %v3633
        %v3635 = vpop.xlane.xlu0 %3634
        %v3636 = vsel %vm1163, %v3624, -inf
        %3637 = vmax.xlane.f32.xlu0 %v3636
        %v3638 = vpop.xlane.xlu0 %3637
        %v3639 = vsel %vm1163, %v3625, -inf
        %3640 = vmax.xlane.f32.xlu0 %v3639
        %v3641 = vpop.xlane.xlu0 %3640
        %v3642 = vsel %vm1163, %v3626, -inf
        %3643 = vmax.xlane.f32.xlu0 %v3642
        %v3644 = vpop.xlane.xlu0 %3643
        %v3645 = vsel %vm1163, %v3627, -inf
        %3646 = vmax.xlane.f32.xlu0 %v3645
        %v3647 = vpop.xlane.xlu0 %3646
        %v3648 = vsel %vm1163, %v3628, -inf
        %3649 = vmax.xlane.f32.xlu0 %v3648
        %v3650 = vpop.xlane.xlu0 %3649
        %v3651 = vsel %vm1163, %v3629, -inf
        %3652 = vmax.xlane.f32.xlu0 %v3651
        %v3653 = vpop.xlane.xlu0 %3652
        %v3654 = vsub.f32 %v3622, %v3632
        %v3655 = vsub.f32 %v3623, %v3635
        %v3656 = vsub.f32 %v3624, %v3638
        %v3657 = vsub.f32 %v3625, %v3641
        %v3658 = vsub.f32 %v3626, %v3644
        %v3659 = vsub.f32 %v3627, %v3647
        %v3660 = vsub.f32 %v3628, %v3650
        %v3661 = vsub.f32 %v3629, %v3653
        %v3662 = vmul.f32 %v3654, 1.442695
        %v3663 = vpow.pop %v3662
        %v3664 = vmul.f32 %v3655, 1.442695
        %v3665 = vpow.pop %v3664
        %v3666 = vmul.f32 %v3656, 1.442695
        %v3667 = vpow.pop %v3666
        %v3668 = vmul.f32 %v3657, 1.442695
        %v3669 = vpow.pop %v3668
        %v3670 = vmul.f32 %v3658, 1.442695
        %v3671 = vpow.pop %v3670
        %v3672 = vmul.f32 %v3659, 1.442695
        %v3673 = vpow.pop %v3672
        %v3674 = vmul.f32 %v3660, 1.442695
        %v3675 = vpow.pop %v3674
        %v3676 = vmul.f32 %v3661, 1.442695
        %v3677 = vpow.pop %v3676
        %v3678 = vsel %vm1163, %v3663, 0.0
        %3679 = vadd.xlane.f32.xlu0 %v3678
        %v3680 = vpop.xlane.xlu0 %3679
        %v3681 = vsel %vm1163, %v3665, 0.0
        %3682 = vadd.xlane.f32.xlu0 %v3681
        %v3683 = vpop.xlane.xlu0 %3682
        %v3684 = vsel %vm1163, %v3667, 0.0
        %3685 = vadd.xlane.f32.xlu0 %v3684
        %v3686 = vpop.xlane.xlu0 %3685
        %v3687 = vsel %vm1163, %v3669, 0.0
        %3688 = vadd.xlane.f32.xlu0 %v3687
        %v3689 = vpop.xlane.xlu0 %3688
        %v3690 = vsel %vm1163, %v3671, 0.0
        %3691 = vadd.xlane.f32.xlu0 %v3690
        %v3692 = vpop.xlane.xlu0 %3691
        %v3693 = vsel %vm1163, %v3673, 0.0
        %3694 = vadd.xlane.f32.xlu0 %v3693
        %v3695 = vpop.xlane.xlu0 %3694
        %v3696 = vsel %vm1163, %v3675, 0.0
        %3697 = vadd.xlane.f32.xlu0 %v3696
        %v3698 = vpop.xlane.xlu0 %3697
        %v3699 = vsel %vm1163, %v3677, 0.0
        %3700 = vadd.xlane.f32.xlu0 %v3699
        %v3701 = vpop.xlane.xlu0 %3700
        %v3702 = vrcp.pop %v3680
        %v3703 = vmul.f32 %v3680, %v3702
        %v3704 = vsub.f32 1.0, %v3703
        %v3705 = vmul.f32 %v3702, %v3704
        %v3706 = vadd.f32 %v3702, %v3705
        %vm3707 = vweird.f32 %v3680
        %vm3708 = vweird.f32 %v3702
        %vm3709 = vmor %vm3707, %vm3708
        %v3710 = vsel %vm3709, %v3702, %v3706
        %v3711 = vand.u32 2147483647, %v3680
        %vm3712 = vcmp.eq.f32.partialorder %v3711, 8.507059e+37
        %v3713 = vand.u32 %v3680, 2147483648
        %v3714 = vor.u32 1.1754944e-38, %v3713
        %v3715 = vsel %vm3712, %v3714, %v3710
        %v3716 = vmul.f32 %v3663, %v3715
        %v3717 = vrcp.pop %v3683
        %v3718 = vmul.f32 %v3683, %v3717
        %v3719 = vsub.f32 1.0, %v3718
        %v3720 = vmul.f32 %v3717, %v3719
        %v3721 = vadd.f32 %v3717, %v3720
        %vm3722 = vweird.f32 %v3683
        %vm3723 = vweird.f32 %v3717
        %vm3724 = vmor %vm3722, %vm3723
        %v3725 = vsel %vm3724, %v3717, %v3721
        %v3726 = vand.u32 2147483647, %v3683
        %vm3727 = vcmp.eq.f32.partialorder %v3726, 8.507059e+37
        %v3728 = vand.u32 %v3683, 2147483648
        %v3729 = vor.u32 1.1754944e-38, %v3728
        %v3730 = vsel %vm3727, %v3729, %v3725
        %v3731 = vmul.f32 %v3665, %v3730
        %v3732 = vrcp.pop %v3686
        %v3733 = vmul.f32 %v3686, %v3732
        %v3734 = vsub.f32 1.0, %v3733
        %v3735 = vmul.f32 %v3732, %v3734
        %v3736 = vadd.f32 %v3732, %v3735
        %vm3737 = vweird.f32 %v3686
        %vm3738 = vweird.f32 %v3732
        %vm3739 = vmor %vm3737, %vm3738
        %v3740 = vsel %vm3739, %v3732, %v3736
        %v3741 = vand.u32 2147483647, %v3686
        %vm3742 = vcmp.eq.f32.partialorder %v3741, 8.507059e+37
        %v3743 = vand.u32 %v3686, 2147483648
        %v3744 = vor.u32 1.1754944e-38, %v3743
        %v3745 = vsel %vm3742, %v3744, %v3740
        %v3746 = vmul.f32 %v3667, %v3745
        %v3747 = vrcp.pop %v3689
        %v3748 = vmul.f32 %v3689, %v3747
        %v3749 = vsub.f32 1.0, %v3748
        %v3750 = vmul.f32 %v3747, %v3749
        %v3751 = vadd.f32 %v3747, %v3750
        %vm3752 = vweird.f32 %v3689
        %vm3753 = vweird.f32 %v3747
        %vm3754 = vmor %vm3752, %vm3753
        %v3755 = vsel %vm3754, %v3747, %v3751
        %v3756 = vand.u32 2147483647, %v3689
        %vm3757 = vcmp.eq.f32.partialorder %v3756, 8.507059e+37
        %v3758 = vand.u32 %v3689, 2147483648
        %v3759 = vor.u32 1.1754944e-38, %v3758
        %v3760 = vsel %vm3757, %v3759, %v3755
        %v3761 = vmul.f32 %v3669, %v3760
        %v3762 = vrcp.pop %v3692
        %v3763 = vmul.f32 %v3692, %v3762
        %v3764 = vsub.f32 1.0, %v3763
        %v3765 = vmul.f32 %v3762, %v3764
        %v3766 = vadd.f32 %v3762, %v3765
        %vm3767 = vweird.f32 %v3692
        %vm3768 = vweird.f32 %v3762
        %vm3769 = vmor %vm3767, %vm3768
        %v3770 = vsel %vm3769, %v3762, %v3766
        %v3771 = vand.u32 2147483647, %v3692
        %vm3772 = vcmp.eq.f32.partialorder %v3771, 8.507059e+37
        %v3773 = vand.u32 %v3692, 2147483648
        %v3774 = vor.u32 1.1754944e-38, %v3773
        %v3775 = vsel %vm3772, %v3774, %v3770
        %v3776 = vmul.f32 %v3671, %v3775
        %v3777 = vrcp.pop %v3695
        %v3778 = vmul.f32 %v3695, %v3777
        %v3779 = vsub.f32 1.0, %v3778
        %v3780 = vmul.f32 %v3777, %v3779
        %v3781 = vadd.f32 %v3777, %v3780
        %vm3782 = vweird.f32 %v3695
        %vm3783 = vweird.f32 %v3777
        %vm3784 = vmor %vm3782, %vm3783
        %v3785 = vsel %vm3784, %v3777, %v3781
        %v3786 = vand.u32 2147483647, %v3695
        %vm3787 = vcmp.eq.f32.partialorder %v3786, 8.507059e+37
        %v3788 = vand.u32 %v3695, 2147483648
        %v3789 = vor.u32 1.1754944e-38, %v3788
        %v3790 = vsel %vm3787, %v3789, %v3785
        %v3791 = vmul.f32 %v3673, %v3790
        %v3792 = vrcp.pop %v3698
        %v3793 = vmul.f32 %v3698, %v3792
        %v3794 = vsub.f32 1.0, %v3793
        %v3795 = vmul.f32 %v3792, %v3794
        %v3796 = vadd.f32 %v3792, %v3795
        %vm3797 = vweird.f32 %v3698
        %vm3798 = vweird.f32 %v3792
        %vm3799 = vmor %vm3797, %vm3798
        %v3800 = vsel %vm3799, %v3792, %v3796
        %v3801 = vand.u32 2147483647, %v3698
        %vm3802 = vcmp.eq.f32.partialorder %v3801, 8.507059e+37
        %v3803 = vand.u32 %v3698, 2147483648
        %v3804 = vor.u32 1.1754944e-38, %v3803
        %v3805 = vsel %vm3802, %v3804, %v3800
        %v3806 = vmul.f32 %v3675, %v3805
        %v3807 = vrcp.pop %v3701
        %v3808 = vmul.f32 %v3701, %v3807
        %v3809 = vsub.f32 1.0, %v3808
        %v3810 = vmul.f32 %v3807, %v3809
        %v3811 = vadd.f32 %v3807, %v3810
        %vm3812 = vweird.f32 %v3701
        %vm3813 = vweird.f32 %v3807
        %vm3814 = vmor %vm3812, %vm3813
        %v3815 = vsel %vm3814, %v3807, %v3811
        %v3816 = vand.u32 2147483647, %v3701
        %vm3817 = vcmp.eq.f32.partialorder %v3816, 8.507059e+37
        %v3818 = vand.u32 %v3701, 2147483648
        %v3819 = vor.u32 1.1754944e-38, %v3818
        %v3820 = vsel %vm3817, %v3819, %v3815
        %v3821 = vmul.f32 %v3677, %v3820
        %3822 = vrot.lane.b32.xlu0 %v707, 104
        %v3823 = vpop.permute.xlu0 %3822
        %3824 = vrot.lane.b32.xlu0 %v710, 104
        %v3825 = vpop.permute.xlu0 %3824
        %v3829 = vsel %vm1163, %v3716, 0
        %v3832 = vsel %vm1163, %v3731, 0
        %3834 = vmatpush.msra.mxu0 0.0
        %3835 = vmatpush.msra.mxu0 0.0
        %3836 = vmatpush.msra.mxu0 0.0
        %3837 = vmatpush.msra.mxu0 0.0
        %3838 = vmatpush.msra.mxu0 0.0
        %3839 = vmatpush.msra.mxu0 0.0
        %3840 = vmatpush.msra.mxu0 0.0
        %3841 = vmatpush.msra.mxu0 0.0
        %3842 = vmatpush.msra.mxu0 0.0
        %3843 = vmatpush.msra.mxu0 0.0
        %3844 = vmatpush.msra.mxu0 0.0
        %3845 = vmatpush.msra.mxu0 0.0
        %3846 = vmatpush.msra.mxu0 0.0
        %3847 = vmatpush.msra.mxu0 0.0
        %3848 = vmatpush.msra.mxu0 %v3825
        %3849 = vmatpush.msra.mxu0 %v3823
        %3850 = vmatmul.f32.gmra.mxu0 %v3829
        %v3851 = vpop.f32.mrf.mxu0
        %v3852 = vadd.f32 0.0, %v3851
        %3853 = vmatmul.f32.gmra.mxu0 %v3832
        %v3854 = vpop.f32.mrf.mxu0
        %v3855 = vadd.f32 0.0, %v3854
        %3856 = vdwg.mxu0
        %3857 = vrot.lane.b32.xlu0 %v713, 104
        %v3858 = vpop.permute.xlu0 %3857
        %3859 = vrot.lane.b32.xlu0 %v716, 104
        %v3860 = vpop.permute.xlu0 %3859
        %v3864 = vsel %vm1163, %v3746, 0
        %v3867 = vsel %vm1163, %v3761, 0
        %3869 = vmatpush.msra.mxu0 0.0
        %3870 = vmatpush.msra.mxu0 0.0
        %3871 = vmatpush.msra.mxu0 0.0
        %3872 = vmatpush.msra.mxu0 0.0
        %3873 = vmatpush.msra.mxu0 0.0
        %3874 = vmatpush.msra.mxu0 0.0
        %3875 = vmatpush.msra.mxu0 0.0
        %3876 = vmatpush.msra.mxu0 0.0
        %3877 = vmatpush.msra.mxu0 0.0
        %3878 = vmatpush.msra.mxu0 0.0
        %3879 = vmatpush.msra.mxu0 0.0
        %3880 = vmatpush.msra.mxu0 0.0
        %3881 = vmatpush.msra.mxu0 0.0
        %3882 = vmatpush.msra.mxu0 0.0
        %3883 = vmatpush.msra.mxu0 %v3860
        %3884 = vmatpush.msra.mxu0 %v3858
        %3885 = vmatmul.f32.gmra.mxu0 %v3864
        %v3886 = vpop.f32.mrf.mxu0
        %v3887 = vadd.f32 0.0, %v3886
        %3888 = vmatmul.f32.gmra.mxu0 %v3867
        %v3889 = vpop.f32.mrf.mxu0
        %v3890 = vadd.f32 0.0, %v3889
        %3891 = vdwg.mxu0
        %3892 = vrot.lane.b32.xlu0 %v719, 104
        %v3893 = vpop.permute.xlu0 %3892
        %3894 = vrot.lane.b32.xlu0 %v722, 104
        %v3895 = vpop.permute.xlu0 %3894
        %v3899 = vsel %vm1163, %v3776, 0
        %v3902 = vsel %vm1163, %v3791, 0
        %3904 = vmatpush.msra.mxu0 0.0
        %3905 = vmatpush.msra.mxu0 0.0
        %3906 = vmatpush.msra.mxu0 0.0
        %3907 = vmatpush.msra.mxu0 0.0
        %3908 = vmatpush.msra.mxu0 0.0
        %3909 = vmatpush.msra.mxu0 0.0
        %3910 = vmatpush.msra.mxu0 0.0
        %3911 = vmatpush.msra.mxu0 0.0
        %3912 = vmatpush.msra.mxu0 0.0
        %3913 = vmatpush.msra.mxu0 0.0
        %3914 = vmatpush.msra.mxu0 0.0
        %3915 = vmatpush.msra.mxu0 0.0
        %3916 = vmatpush.msra.mxu0 0.0
        %3917 = vmatpush.msra.mxu0 0.0
        %3918 = vmatpush.msra.mxu0 %v3895
        %3919 = vmatpush.msra.mxu0 %v3893
        %3920 = vmatmul.f32.gmra.mxu0 %v3899
        %v3921 = vpop.f32.mrf.mxu0
        %v3922 = vadd.f32 0.0, %v3921
        %3923 = vmatmul.f32.gmra.mxu0 %v3902
        %v3924 = vpop.f32.mrf.mxu0
        %v3925 = vadd.f32 0.0, %v3924
        %3926 = vdwg.mxu0
        %3927 = vrot.lane.b32.xlu0 %v725, 104
        %v3928 = vpop.permute.xlu0 %3927
        %3929 = vrot.lane.b32.xlu0 %v728, 104
        %v3930 = vpop.permute.xlu0 %3929
        %v3934 = vsel %vm1163, %v3806, 0
        %v3937 = vsel %vm1163, %v3821, 0
        %3939 = vmatpush.msra.mxu0 0.0
        %3940 = vmatpush.msra.mxu0 0.0
        %3941 = vmatpush.msra.mxu0 0.0
        %3942 = vmatpush.msra.mxu0 0.0
        %3943 = vmatpush.msra.mxu0 0.0
        %3944 = vmatpush.msra.mxu0 0.0
        %3945 = vmatpush.msra.mxu0 0.0
        %3946 = vmatpush.msra.mxu0 0.0
        %3947 = vmatpush.msra.mxu0 0.0
        %3948 = vmatpush.msra.mxu0 0.0
        %3949 = vmatpush.msra.mxu0 0.0
        %3950 = vmatpush.msra.mxu0 0.0
        %3951 = vmatpush.msra.mxu0 0.0
        %3952 = vmatpush.msra.mxu0 0.0
        %3953 = vmatpush.msra.mxu0 %v3930
        %3954 = vmatpush.msra.mxu0 %v3928
        %3955 = vmatmul.f32.gmra.mxu0 %v3934
        %v3956 = vpop.f32.mrf.mxu0
        %v3957 = vadd.f32 0.0, %v3956
        %3958 = vmatmul.f32.gmra.mxu0 %v3937
        %v3959 = vpop.f32.mrf.mxu0
        %v3960 = vadd.f32 0.0, %v3959
        %3961 = vdwg.mxu0
        %3970 = vrot.lane.b32.xlu0 %v2202, 8
        %v3971 = vpop.permute.xlu0 %3970
        %3972 = vrot.lane.b32.xlu0 %v2205, 8
        %v3973 = vpop.permute.xlu0 %3972
        %3974 = vrot.lane.b32.xlu0 %v2239, 8
        %v3975 = vpop.permute.xlu0 %3974
        %3976 = vrot.lane.b32.xlu0 %v2242, 8
        %v3977 = vpop.permute.xlu0 %3976
        %3978 = vrot.lane.b32.xlu0 %v2276, 8
        %v3979 = vpop.permute.xlu0 %3978
        %3980 = vrot.lane.b32.xlu0 %v2279, 8
        %v3981 = vpop.permute.xlu0 %3980
        %3982 = vrot.lane.b32.xlu0 %v2313, 8
        %v3983 = vpop.permute.xlu0 %3982
        %3984 = vrot.lane.b32.xlu0 %v2316, 8
        %v3985 = vpop.permute.xlu0 %3984
        %4002 = vrot.lane.b32.xlu0 %v3030, 16
        %v4003 = vpop.permute.xlu0 %4002
        %4004 = vrot.lane.b32.xlu0 %v3033, 16
        %v4005 = vpop.permute.xlu0 %4004
        %4006 = vrot.lane.b32.xlu0 %v3065, 16
        %v4007 = vpop.permute.xlu0 %4006
        %4008 = vrot.lane.b32.xlu0 %v3068, 16
        %v4009 = vpop.permute.xlu0 %4008
        %4010 = vrot.lane.b32.xlu0 %v3100, 16
        %v4011 = vpop.permute.xlu0 %4010
        %4012 = vrot.lane.b32.xlu0 %v3103, 16
        %v4013 = vpop.permute.xlu0 %4012
        %4014 = vrot.lane.b32.xlu0 %v3135, 16
        %v4015 = vpop.permute.xlu0 %4014
        %4016 = vrot.lane.b32.xlu0 %v3138, 16
        %v4017 = vpop.permute.xlu0 %4016
        %4034 = vrot.lane.b32.xlu0 %v3852, 24
        %v4035 = vpop.permute.xlu0 %4034
        %4036 = vrot.lane.b32.xlu0 %v3855, 24
        %v4037 = vpop.permute.xlu0 %4036
        %4038 = vrot.lane.b32.xlu0 %v3887, 24
        %v4039 = vpop.permute.xlu0 %4038
        %4040 = vrot.lane.b32.xlu0 %v3890, 24
        %v4041 = vpop.permute.xlu0 %4040
        %4042 = vrot.lane.b32.xlu0 %v3922, 24
        %v4043 = vpop.permute.xlu0 %4042
        %4044 = vrot.lane.b32.xlu0 %v3925, 24
        %v4045 = vpop.permute.xlu0 %4044
        %4046 = vrot.lane.b32.xlu0 %v3957, 24
        %v4047 = vpop.permute.xlu0 %4046
        %4048 = vrot.lane.b32.xlu0 %v3960, 24
        %v4049 = vpop.permute.xlu0 %4048
        %v4058 = vsel %vm746, %v1380, %v3971
        %v4059 = vsel %vm746, %v1383, %v3973
        %v4060 = vsel %vm746, %v1409, %v3975
        %v4061 = vsel %vm746, %v1412, %v3977
        %v4062 = vsel %vm746, %v1438, %v3979
        %v4063 = vsel %vm746, %v1441, %v3981
        %v4064 = vsel %vm746, %v1467, %v3983
        %v4065 = vsel %vm746, %v1470, %v3985
        %v4066 = vsel %vm1163, %v4058, %v4003
        %v4067 = vsel %vm1163, %v4059, %v4005
        %v4068 = vsel %vm1163, %v4060, %v4007
        %v4069 = vsel %vm1163, %v4061, %v4009
        %v4070 = vsel %vm1163, %v4062, %v4011
        %v4071 = vsel %vm1163, %v4063, %v4013
        %v4072 = vsel %vm1163, %v4064, %v4015
        %v4073 = vsel %vm1163, %v4065, %v4017
        %vm4074 = vcmask 195584
        %v4075 = vsel %vm4074, %v4066, %v4035
        %v4076 = vsel %vm4074, %v4067, %v4037
        %v4077 = vsel %vm4074, %v4068, %v4039
        %v4078 = vsel %vm4074, %v4069, %v4041
        %v4079 = vsel %vm4074, %v4070, %v4043
        %v4080 = vsel %vm4074, %v4071, %v4045
        %v4081 = vsel %vm4074, %v4072, %v4047
        %v4082 = vsel %vm4074, %v4073, %v4049
        %v4083 = vld [vmem:[#allocation14] sm:$0xff]
        %v4084 = vld [vmem:[#allocation14 + $0x8] sm:$0xff]
        %v4085 = vld [vmem:[#allocation14 + $0x10] sm:$0xff]
        %v4086 = vld [vmem:[#allocation14 + $0x18] sm:$0xff]
        %v4087 = vld [vmem:[%s10] sm:$0x1]
        %v4089 = vperm.slane %v4087, 0
        %v4092 = vsel %vm570, %v4075, 0
        %v4095 = vsel %vm570, %v4076, 0
        %v4098 = vsel %vm570, %v4077, 0
        %v4101 = vsel %vm570, %v4078, 0
        %v4104 = vsel %vm570, %v4079, 0
        %v4107 = vsel %vm570, %v4080, 0
        %v4110 = vsel %vm570, %v4081, 0
        %v4113 = vsel %vm570, %v4082, 0
        %4115 = vmatpush.msra.mxu0 0.0
        %4116 = vmatpush.msra.mxu0 0.0
        %4117 = vmatpush.msra.mxu0 0.0
        %4118 = vmatpush.msra.mxu0 0.0
        %4119 = vmatpush.msra.mxu0 0.0
        %4120 = vmatpush.msra.mxu0 0.0
        %4121 = vmatpush.msra.mxu0 0.0
        %4122 = vmatpush.msra.mxu0 0.0
        %4123 = vmatpush.msra.mxu0 0.0
        %4124 = vmatpush.msra.mxu0 0.0
        %4125 = vmatpush.msra.mxu0 0.0
        %4126 = vmatpush.msra.mxu0 0.0
        %4127 = vmatpush.msra.mxu0 %v4086
        %4128 = vmatpush.msra.mxu0 %v4085
        %4129 = vmatpush.msra.mxu0 %v4084
        %4130 = vmatpush.msra.mxu0 %v4083
        %4131 = vmatmul.f32.gmra.mxu0 %v4092
        %v4132 = vpop.f32.mrf.mxu0
        %v4133 = vadd.f32 %v4089, %v4132
        %4134 = vmatmul.f32.gmra.mxu0 %v4095
        %v4135 = vpop.f32.mrf.mxu0
        %v4136 = vadd.f32 %v4089, %v4135
        %4137 = vmatmul.f32.gmra.mxu0 %v4098
        %v4138 = vpop.f32.mrf.mxu0
        %v4139 = vadd.f32 %v4089, %v4138
        %4140 = vmatmul.f32.gmra.mxu0 %v4101
        %v4141 = vpop.f32.mrf.mxu0
        %v4142 = vadd.f32 %v4089, %v4141
        %4143 = vmatmul.f32.gmra.mxu0 %v4104
        %v4144 = vpop.f32.mrf.mxu0
        %v4145 = vadd.f32 %v4089, %v4144
        %4146 = vmatmul.f32.gmra.mxu0 %v4107
        %v4147 = vpop.f32.mrf.mxu0
        %v4148 = vadd.f32 %v4089, %v4147
        %4149 = vmatmul.f32.gmra.mxu0 %v4110
        %v4150 = vpop.f32.mrf.mxu0
        %v4151 = vadd.f32 %v4089, %v4150
        %4152 = vmatmul.f32.gmra.mxu0 %v4113
        %v4153 = vpop.f32.mrf.mxu0
        %v4154 = vadd.f32 %v4089, %v4153
        %4155 = vdwg.mxu0
        %4156 = vst.msk [vmem:[%s550] sm:$0xff] %vm570, %v4133
        %4157 = vst.msk [vmem:[%s550 + $0x8] sm:$0xff] %vm570, %v4136
        %4158 = vst.msk [vmem:[%s550 + $0x10] sm:$0xff] %vm570, %v4139
        %4159 = vst.msk [vmem:[%s550 + $0x18] sm:$0xff] %vm570, %v4142
        %4160 = vst.msk [vmem:[%s550 + $0x20] sm:$0xff] %vm570, %v4145
        %4161 = vst.msk [vmem:[%s550 + $0x28] sm:$0xff] %vm570, %v4148
        %4162 = vst.msk [vmem:[%s550 + $0x30] sm:$0xff] %vm570, %v4151
        %4163 = vst.msk [vmem:[%s550 + $0x38] sm:$0xff] %vm570, %v4154
        %s4164 = sand.u32 %s297, 1
        %s4165 = scalar_lea.sflag [#allocation4], %s4164
        %s4166 = sand.u32 %s297, 1
        %s4167 = smul.addr %s4166, 64
        %s4168 = scalar_lea.vmem [#allocation16], %s4167
        // Predicated region
        $region97: #{tpu_custom_call.1} parent=63 // pred_check
          %p4169 = pneg %p307
        $region98: #{tpu_custom_call.1} parent=63 // pred_check_branch
          %4171 = sbr.rel (%p4169) target = $region100
        $region99: #{tpu_custom_call.1} parent=63 // pred_region
          %s4172 = smul.u32 4, %s37
          %4174 = vsyncadd %s4165, 0
          %s4175 = smul.addr %s4172, 2
          %s4176 = smul.addr %s36, 8
          %s4177 = sadd.s32 %s4175, %s4176
          %s4178 = smul.addr %s4177, 8
          %s4179 = scalar_lea.hbm %s11, %s4178
          %s4180 = sshll.u32 %s4168, 4
          %s4181 = int_to_ptr.vmem [resolvable:$true] %s4180
          %s4182 = sshll.u32 %s4179, 4
          %s4183 = int_to_ptr.hbm [resolvable:$true] %s4182
          %4188 = dma.vmem_to_hbm [thread:$0]  %s4181, 1024, %s4183, %s4165, 128, 128, 8
        $region100: #{tpu_custom_call.1} parent=63 // pred_fallthru
          _
      $region64: #{tpu_custom_call.1} parent=5 // pred_fallthru
        _
      %p4189 = scmp.le.s32.totalorder 2, %s27
      // Predicated region
      $region101: #{tpu_custom_call.1} parent=5 // pred_check
        %p4190 = pneg %p4189
      $region102: #{tpu_custom_call.1} parent=5 // pred_check_branch
        %4192 = sbr.rel (%p4190) target = $region104
      $region103: #{tpu_custom_call.1} parent=5 // pred_region
        %s4193 = ssub.s32 %s27, 2
        // Predicated region
        $region105: #{tpu_custom_call.1} parent=103 // pred_check
          %p4194 = pneg %p313
        $region106: #{tpu_custom_call.1} parent=103 // pred_check_branch
          %4196 = sbr.rel (%p4194) target = $region108
        $region107: #{tpu_custom_call.1} parent=103 // pred_region
          %s4197 = sand.u32 %s298, 1
          %s4198 = scalar_lea.sflag [#allocation4], %s4197
          %s4199 = sand.u32 %s298, 1
          %s4200 = smul.addr %s4199, 64
          %s4201 = scalar_lea.vmem [#allocation16], %s4200
          %4203 = dma.done %s4198, 1024
        $region108: #{tpu_custom_call.1} parent=103 // pred_fallthru
          _
      $region104: #{tpu_custom_call.1} parent=5 // pred_fallthru
        _
    $region6: #{tpu_custom_call.1} parent=1 // loop_footer
      %s31 = sadd.s32 1, %s27
    $region7: #{tpu_custom_call.1} parent=1 // loop_footer_branch
      %26 = sbr.rel target = $region3
    $region8: #{tpu_custom_call.1} parent=1 // loop_exit
      _
    %4204 = vsyncpa [#allocation3], 1
    %s4205 = scalar_lea.sflag [#allocation3], 1
    %4206 = vsyncpa %s4205, 1
    %4207 = vsyncpa [#allocation6], 1
    %4208 = vsyncpa [#allocation9], 1
    %4209 = vsyncpa [#allocation12], 1
    %4210 = vsyncpa [#allocation15], 1
    %4211 = vsyncpa [#allocation4], 1
    %s4212 = scalar_lea.sflag [#allocation4], 1
    %4213 = vsyncpa %s4212, 1

</llo_original>
